<compile_context>
chip_gen: v6e
topology: v6e:2x2x1
jax: 0.10.0
libtpu: 0.0.40
codegen_flags: <defaults>
</compile_context>

<pallas_src>
import jax
import jax.numpy as jnp
from jax.experimental import pallas as pl
from jax.experimental.pallas import tpu as pltpu

# ---------------- small synthetic sizes ----------------
B = 2            # batch
FREQ = 64        # spectrogram frequency bins
T = 128          # spectrogram time frames (lane axis)
HV = WV = 16     # visual spatial size
HW = HV * WV
CIN_V = 3        # visual input channels (RGB)
CV = 32          # visual hidden channels
DV = 32          # visual feature dim
CU = 16          # unet hidden channels
K = 8            # number of classes


class Opt:
    log_freq = False       # TODO(synk): warpgrid() + F.grid_sample log-frequency warp not implemented in Pallas
    weighted_loss = True
    device = None


# ---------------- fused Pallas kernel ----------------
# Inputs : mix_eps (B,F,T) VMEM, vcond (B,CU) SMEM, u_w1/u_w2/u_b2 SMEM scalars,
#          c_w (K,F,T) VMEM (resident), c_b (1,K) VMEM
# Outputs: mask_prediction (B,F,T), label logits (B,K)

def _fused_kernel(mix_ref, vcond_ref, uw1_ref, uw2_ref, ub2_ref,
                  cw_ref, cb_ref,
                  mask_ref, logits_ref):
    # ----- unet: 1->CU 1x1 conv (+visual cond) -> ReLU -> CU->1 1x1 conv -> sigmoid -----
    # Unrolled over batch (B=2) and channel (CU=16); all weights/conditioning are
    # SMEM scalars -> sld + scalar->vreg broadcast on the VPU.
    for b in range(B):
        log_mix = jnp.log(mix_ref[b])                       # audio_log_mags  (F, T)
        logit = jnp.zeros_like(log_mix)
        for c in range(CU):
            hc = jnp.maximum(log_mix * uw1_ref[c] + vcond_ref[b, c], 0.0)
            logit = logit + hc * uw2_ref[c]
        z = logit + ub2_ref[0]
        # sigmoid = 1 / (1 + exp(-z)) with the divide on the EUP approx path
        mask_ref[b] = pl.reciprocal(1.0 + jnp.exp(-z), approx=True)

    # ----- classifier on spectrogram2classify = log(mix * mask + 1e-10) (stays in VMEM) -----
    rows = []
    for b in range(B):
        spec2_b = jnp.log(mix_ref[b] * mask_ref[b] + 1e-10)        # (F, T)
        cols = []
        for k in range(K):
            pk = jnp.sum(spec2_b * cw_ref[k], axis=-1, keepdims=True)   # (F, 1)
            cols.append(jnp.sum(pk, axis=0, keepdims=True))             # (1, 1)
        rows.append(jnp.concatenate(cols, axis=-1))                     # (1, K)
    logits_ref[...] = jnp.concatenate(rows, axis=0) + cb_ref[...]       # (B, K)


# ---------------- wrappers (glue) ----------------

def _visual_cond(visuals, p):
    """Synthetic net_visual + unet conditioning projection (tiny, MXU-hostile) in XLA.

    Returns the per-batch, per-unet-channel conditioning scalars (B, CU),
    with the unet hidden bias u_b1 folded in.
    """
    x = visuals.reshape(B, CIN_V, HW)                                          # (B, 3, H*W)
    h = jnp.maximum(jnp.einsum('oc,bcp->bop', p["v_w1"], x) + p["v_b1"][None], 0.0)
    pooled = jnp.mean(h, axis=2)                                               # (B, CV)
    feat = pooled @ p["v_w2"].T + p["v_b2"][:, 0][None]                        # (B, DV) visual feature
    return feat @ p["u_wv"].T + p["u_b1"][None]                                # (B, CU)


def audio_visual_fused(audio_mix_mags_eps, vcond, p):
    mix = audio_mix_mags_eps.reshape(B, FREQ, T)

    spec_full = pl.BlockSpec((B, FREQ, T), lambda i: (0, 0, 0))
    smem = lambda: pl.BlockSpec(memory_space=pltpu.MemorySpace.SMEM)

    out_shapes = (
        jax.ShapeDtypeStruct((B, FREQ, T), jnp.float32),   # mask_prediction
        jax.ShapeDtypeStruct((B, K), jnp.float32),         # label logits
    )
    out_specs = (
        spec_full,
        pl.BlockSpec((B, K), lambda i: (0, 0)),
    )

    return pl.pallas_call(
        _fused_kernel,
        out_shape=out_shapes,
        grid=(1,),                                           # single step: batch lives in the block
        in_specs=[
            spec_full,                                       # audio_mix_mags + eps
            smem(),                                          # vcond (B, CU) scalars
            smem(), smem(), smem(),                          # u_w1, u_w2, u_b2 scalars
            pl.BlockSpec((K, FREQ, T), lambda i: (0, 0, 0)), # c_w (resident in VMEM)
            pl.BlockSpec((1, K), lambda i: (0, 0)),          # c_b
        ],
        out_specs=out_specs,
        compiler_params=pltpu.CompilerParams(
            dimension_semantics=("arbitrary",)),
    )(mix, vcond, p["u_w1"], p["u_w2"], p["u_b2"], p["c_w"], p["c_b"])


def audio_visual_forward(inputs, params, opt):
    labels = inputs['labels'].squeeze(1).astype(jnp.int32)   # torch .long(); int32 on TPU
    vids = inputs['vids']
    audio_mags = inputs['audio_mags']
    audio_mix_mags = inputs['audio_mix_mags']
    visuals = inputs['visuals']

    if opt.log_freq:
        # TODO(synk): warpgrid + F.grid_sample (log-frequency warp) has no clean Pallas equivalent here.
        pass

    # Pure elementwise functions of the inputs: keep in XLA (fused), not kernel I/O.
    mix_eps = audio_mix_mags + 1e-10                               # audio_mix_mags += 1e-10
    gt_masks = jnp.clip(audio_mags / mix_eps, 0.0, 5.0)            # gt_masks.clamp_(0, 5)

    # Tiny visual net + conditioning projection in XLA -> SMEM scalars for the kernel.
    vcond = _visual_cond(visuals, params)

    mask_pred, label_prediction = audio_visual_fused(mix_eps, vcond, params)

    mask_nchw = mask_pred.reshape(B, 1, FREQ, T)
    separated = mix_eps * mask_nchw                                # recomputed elementwise in XLA

    weight = (jnp.clip(jnp.log1p(mix_eps), 0.001, 10.0)
              if opt.weighted_loss else None)

    return {
        'gt_label': labels,
        'pred_label': label_prediction,
        'pred_mask': mask_nchw,
        'gt_mask': gt_masks,
        'pred_spectrogram': separated,
        'visual_object': visuals,
        'audio_mix_mags': mix_eps,
        'weight': weight,
        'vids': vids,
    }


def init_params(key):
    ks = jax.random.split(key, 6)
    s = 0.1
    return {
        "v_w1": jax.random.normal(ks[0], (CV, CIN_V), jnp.float32) * s,
        "v_b1": jnp.zeros((CV, 1), jnp.float32),
        "v_w2": jax.random.normal(ks[1], (DV, CV), jnp.float32) * s,
        "v_b2": jnp.zeros((DV, 1), jnp.float32),
        "u_wv": jax.random.normal(ks[2], (CU, DV), jnp.float32) * s,
        "u_b1": jnp.zeros((CU,), jnp.float32),
        "u_w1": jax.random.normal(ks[3], (CU,), jnp.float32) * s,
        "u_w2": jax.random.normal(ks[4], (CU,), jnp.float32) * s,
        "u_b2": jnp.zeros((1,), jnp.float32),
        "c_w": jax.random.normal(ks[5], (K, FREQ, T), jnp.float32) * 0.01,
        "c_b": jnp.zeros((1, K), jnp.float32),
    }


if __name__ == "__main__":
    key = jax.random.PRNGKey(0)
    kp, k1, k2, k3, k4 = jax.random.split(key, 5)
    params = init_params(kp)

    src = jnp.abs(jax.random.normal(k1, (B, 1, FREQ, T), jnp.float32))
    other = jnp.abs(jax.random.normal(k2, (B, 1, FREQ, T), jnp.float32))
    inputs = {
        'labels': jax.random.randint(k3, (B, 1), 0, K, dtype=jnp.int32),
        'vids': jnp.arange(B, dtype=jnp.int32),
        'audio_mags': src,
        'audio_mix_mags': src + other,            # mixture magnitude >= source
        'visuals': jax.random.normal(k4, (B, CIN_V, HV, WV), jnp.float32),
    }

    out = audio_visual_forward(inputs, params, Opt())
    jax.block_until_ready(out)
    print("KERNEL_OK")
</pallas_src>

<mosaic_0001>
module attributes {stable_mosaic.version = 11 : i64} {
  func.func @_fused_kernel(%arg0: i32, %arg1: memref<2x64x128xf32, #tpu.memory_space<vmem>>, %arg2: memref<2x16xf32, #tpu.memory_space<smem>>, %arg3: memref<16xf32, #tpu.memory_space<smem>>, %arg4: memref<16xf32, #tpu.memory_space<smem>>, %arg5: memref<1xf32, #tpu.memory_space<smem>>, %arg6: memref<8x64x128xf32, #tpu.memory_space<vmem>>, %arg7: memref<1x8xf32, #tpu.memory_space<vmem>>, %arg8: memref<2x64x128xf32, #tpu.memory_space<vmem>>, %arg9: memref<2x8xf32, #tpu.memory_space<vmem>>) attributes {dimension_semantics = [#tpu.dimension_semantics<arbitrary>], iteration_bounds = array<i64: 1>, scalar_prefetch = 0 : i64, scratch_operands = 0 : i64, tpu.core_type = #tpu.core_type<tc>, window_params = [{pipeline_mode = #tpu.pipeline_mode<synchronous>, transform_indices = @transform_0, window_bounds = array<i64: 2, 64, 128>}, {transform_indices = @transform_1, window_bounds = array<i64: 2, 16>}, {transform_indices = @transform_2, window_bounds = array<i64: 16>}, {transform_indices = @transform_3, window_bounds = array<i64: 16>}, {transform_indices = @transform_4, window_bounds = array<i64: 1>}, {pipeline_mode = #tpu.pipeline_mode<synchronous>, transform_indices = @transform_5, window_bounds = array<i64: 8, 64, 128>}, {pipeline_mode = #tpu.pipeline_mode<synchronous>, transform_indices = @transform_6, window_bounds = array<i64: 1, 8>}, {pipeline_mode = #tpu.pipeline_mode<synchronous>, transform_indices = @transform_7, window_bounds = array<i64: 2, 64, 128>}, {pipeline_mode = #tpu.pipeline_mode<synchronous>, transform_indices = @transform_8, window_bounds = array<i64: 2, 8>}]} {
    %c0 = arith.constant 0 : index
    %c0_0 = arith.constant 0 : index
    %c0_1 = arith.constant 0 : index
    %0 = vector.load %arg1[%c0, %c0_0, %c0_1] : memref<2x64x128xf32, #tpu.memory_space<vmem>>, vector<1x64x128xf32>
    %1 = vector.shape_cast %0 : vector<1x64x128xf32> to vector<64x128xf32>
    %2 = math.log %1 : vector<64x128xf32>
    %cst = arith.constant 0.000000e+00 : f32
    %3 = vector.broadcast %cst : f32 to vector<64x128xf32>
    %c0_2 = arith.constant 0 : index
    %4 = memref.load %arg3[%c0_2] : memref<16xf32, #tpu.memory_space<smem>>
    %5 = vector.broadcast %4 : f32 to vector<64x128xf32>
    %6 = arith.mulf %2, %5 : vector<64x128xf32>
    %c0_3 = arith.constant 0 : index
    %c0_4 = arith.constant 0 : index
    %7 = memref.load %arg2[%c0_3, %c0_4] : memref<2x16xf32, #tpu.memory_space<smem>>
    %8 = vector.broadcast %7 : f32 to vector<64x128xf32>
    %9 = arith.addf %6, %8 : vector<64x128xf32>
    %cst_5 = arith.constant 0.000000e+00 : f32
    %10 = vector.broadcast %cst_5 : f32 to vector<64x128xf32>
    %11 = arith.maximumf %9, %10 : vector<64x128xf32>
    %c0_6 = arith.constant 0 : index
    %12 = memref.load %arg4[%c0_6] : memref<16xf32, #tpu.memory_space<smem>>
    %13 = vector.broadcast %12 : f32 to vector<64x128xf32>
    %14 = arith.mulf %11, %13 : vector<64x128xf32>
    %15 = arith.addf %3, %14 : vector<64x128xf32>
    %c1 = arith.constant 1 : index
    %16 = memref.load %arg3[%c1] : memref<16xf32, #tpu.memory_space<smem>>
    %17 = vector.broadcast %16 : f32 to vector<64x128xf32>
    %18 = arith.mulf %2, %17 : vector<64x128xf32>
    %c0_7 = arith.constant 0 : index
    %c1_8 = arith.constant 1 : index
    %19 = memref.load %arg2[%c0_7, %c1_8] : memref<2x16xf32, #tpu.memory_space<smem>>
    %20 = vector.broadcast %19 : f32 to vector<64x128xf32>
    %21 = arith.addf %18, %20 : vector<64x128xf32>
    %cst_9 = arith.constant 0.000000e+00 : f32
    %22 = vector.broadcast %cst_9 : f32 to vector<64x128xf32>
    %23 = arith.maximumf %21, %22 : vector<64x128xf32>
    %c1_10 = arith.constant 1 : index
    %24 = memref.load %arg4[%c1_10] : memref<16xf32, #tpu.memory_space<smem>>
    %25 = vector.broadcast %24 : f32 to vector<64x128xf32>
    %26 = arith.mulf %23, %25 : vector<64x128xf32>
    %27 = arith.addf %15, %26 : vector<64x128xf32>
    %c2 = arith.constant 2 : index
    %28 = memref.load %arg3[%c2] : memref<16xf32, #tpu.memory_space<smem>>
    %29 = vector.broadcast %28 : f32 to vector<64x128xf32>
    %30 = arith.mulf %2, %29 : vector<64x128xf32>
    %c0_11 = arith.constant 0 : index
    %c2_12 = arith.constant 2 : index
    %31 = memref.load %arg2[%c0_11, %c2_12] : memref<2x16xf32, #tpu.memory_space<smem>>
    %32 = vector.broadcast %31 : f32 to vector<64x128xf32>
    %33 = arith.addf %30, %32 : vector<64x128xf32>
    %cst_13 = arith.constant 0.000000e+00 : f32
    %34 = vector.broadcast %cst_13 : f32 to vector<64x128xf32>
    %35 = arith.maximumf %33, %34 : vector<64x128xf32>
    %c2_14 = arith.constant 2 : index
    %36 = memref.load %arg4[%c2_14] : memref<16xf32, #tpu.memory_space<smem>>
    %37 = vector.broadcast %36 : f32 to vector<64x128xf32>
    %38 = arith.mulf %35, %37 : vector<64x128xf32>
    %39 = arith.addf %27, %38 : vector<64x128xf32>
    %c3 = arith.constant 3 : index
    %40 = memref.load %arg3[%c3] : memref<16xf32, #tpu.memory_space<smem>>
    %41 = vector.broadcast %40 : f32 to vector<64x128xf32>
    %42 = arith.mulf %2, %41 : vector<64x128xf32>
    %c0_15 = arith.constant 0 : index
    %c3_16 = arith.constant 3 : index
    %43 = memref.load %arg2[%c0_15, %c3_16] : memref<2x16xf32, #tpu.memory_space<smem>>
    %44 = vector.broadcast %43 : f32 to vector<64x128xf32>
    %45 = arith.addf %42, %44 : vector<64x128xf32>
    %cst_17 = arith.constant 0.000000e+00 : f32
    %46 = vector.broadcast %cst_17 : f32 to vector<64x128xf32>
    %47 = arith.maximumf %45, %46 : vector<64x128xf32>
    %c3_18 = arith.constant 3 : index
    %48 = memref.load %arg4[%c3_18] : memref<16xf32, #tpu.memory_space<smem>>
    %49 = vector.broadcast %48 : f32 to vector<64x128xf32>
    %50 = arith.mulf %47, %49 : vector<64x128xf32>
    %51 = arith.addf %39, %50 : vector<64x128xf32>
    %c4 = arith.constant 4 : index
    %52 = memref.load %arg3[%c4] : memref<16xf32, #tpu.memory_space<smem>>
    %53 = vector.broadcast %52 : f32 to vector<64x128xf32>
    %54 = arith.mulf %2, %53 : vector<64x128xf32>
    %c0_19 = arith.constant 0 : index
    %c4_20 = arith.constant 4 : index
    %55 = memref.load %arg2[%c0_19, %c4_20] : memref<2x16xf32, #tpu.memory_space<smem>>
    %56 = vector.broadcast %55 : f32 to vector<64x128xf32>
    %57 = arith.addf %54, %56 : vector<64x128xf32>
    %cst_21 = arith.constant 0.000000e+00 : f32
    %58 = vector.broadcast %cst_21 : f32 to vector<64x128xf32>
    %59 = arith.maximumf %57, %58 : vector<64x128xf32>
    %c4_22 = arith.constant 4 : index
    %60 = memref.load %arg4[%c4_22] : memref<16xf32, #tpu.memory_space<smem>>
    %61 = vector.broadcast %60 : f32 to vector<64x128xf32>
    %62 = arith.mulf %59, %61 : vector<64x128xf32>
    %63 = arith.addf %51, %62 : vector<64x128xf32>
    %c5 = arith.constant 5 : index
    %64 = memref.load %arg3[%c5] : memref<16xf32, #tpu.memory_space<smem>>
    %65 = vector.broadcast %64 : f32 to vector<64x128xf32>
    %66 = arith.mulf %2, %65 : vector<64x128xf32>
    %c0_23 = arith.constant 0 : index
    %c5_24 = arith.constant 5 : index
    %67 = memref.load %arg2[%c0_23, %c5_24] : memref<2x16xf32, #tpu.memory_space<smem>>
    %68 = vector.broadcast %67 : f32 to vector<64x128xf32>
    %69 = arith.addf %66, %68 : vector<64x128xf32>
    %cst_25 = arith.constant 0.000000e+00 : f32
    %70 = vector.broadcast %cst_25 : f32 to vector<64x128xf32>
    %71 = arith.maximumf %69, %70 : vector<64x128xf32>
    %c5_26 = arith.constant 5 : index
    %72 = memref.load %arg4[%c5_26] : memref<16xf32, #tpu.memory_space<smem>>
    %73 = vector.broadcast %72 : f32 to vector<64x128xf32>
    %74 = arith.mulf %71, %73 : vector<64x128xf32>
    %75 = arith.addf %63, %74 : vector<64x128xf32>
    %c6 = arith.constant 6 : index
    %76 = memref.load %arg3[%c6] : memref<16xf32, #tpu.memory_space<smem>>
    %77 = vector.broadcast %76 : f32 to vector<64x128xf32>
    %78 = arith.mulf %2, %77 : vector<64x128xf32>
    %c0_27 = arith.constant 0 : index
    %c6_28 = arith.constant 6 : index
    %79 = memref.load %arg2[%c0_27, %c6_28] : memref<2x16xf32, #tpu.memory_space<smem>>
    %80 = vector.broadcast %79 : f32 to vector<64x128xf32>
    %81 = arith.addf %78, %80 : vector<64x128xf32>
    %cst_29 = arith.constant 0.000000e+00 : f32
    %82 = vector.broadcast %cst_29 : f32 to vector<64x128xf32>
    %83 = arith.maximumf %81, %82 : vector<64x128xf32>
    %c6_30 = arith.constant 6 : index
    %84 = memref.load %arg4[%c6_30] : memref<16xf32, #tpu.memory_space<smem>>
    %85 = vector.broadcast %84 : f32 to vector<64x128xf32>
    %86 = arith.mulf %83, %85 : vector<64x128xf32>
    %87 = arith.addf %75, %86 : vector<64x128xf32>
    %c7 = arith.constant 7 : index
    %88 = memref.load %arg3[%c7] : memref<16xf32, #tpu.memory_space<smem>>
    %89 = vector.broadcast %88 : f32 to vector<64x128xf32>
    %90 = arith.mulf %2, %89 : vector<64x128xf32>
    %c0_31 = arith.constant 0 : index
    %c7_32 = arith.constant 7 : index
    %91 = memref.load %arg2[%c0_31, %c7_32] : memref<2x16xf32, #tpu.memory_space<smem>>
    %92 = vector.broadcast %91 : f32 to vector<64x128xf32>
    %93 = arith.addf %90, %92 : vector<64x128xf32>
    %cst_33 = arith.constant 0.000000e+00 : f32
    %94 = vector.broadcast %cst_33 : f32 to vector<64x128xf32>
    %95 = arith.maximumf %93, %94 : vector<64x128xf32>
    %c7_34 = arith.constant 7 : index
    %96 = memref.load %arg4[%c7_34] : memref<16xf32, #tpu.memory_space<smem>>
    %97 = vector.broadcast %96 : f32 to vector<64x128xf32>
    %98 = arith.mulf %95, %97 : vector<64x128xf32>
    %99 = arith.addf %87, %98 : vector<64x128xf32>
    %c8 = arith.constant 8 : index
    %100 = memref.load %arg3[%c8] : memref<16xf32, #tpu.memory_space<smem>>
    %101 = vector.broadcast %100 : f32 to vector<64x128xf32>
    %102 = arith.mulf %2, %101 : vector<64x128xf32>
    %c0_35 = arith.constant 0 : index
    %c8_36 = arith.constant 8 : index
    %103 = memref.load %arg2[%c0_35, %c8_36] : memref<2x16xf32, #tpu.memory_space<smem>>
    %104 = vector.broadcast %103 : f32 to vector<64x128xf32>
    %105 = arith.addf %102, %104 : vector<64x128xf32>
    %cst_37 = arith.constant 0.000000e+00 : f32
    %106 = vector.broadcast %cst_37 : f32 to vector<64x128xf32>
    %107 = arith.maximumf %105, %106 : vector<64x128xf32>
    %c8_38 = arith.constant 8 : index
    %108 = memref.load %arg4[%c8_38] : memref<16xf32, #tpu.memory_space<smem>>
    %109 = vector.broadcast %108 : f32 to vector<64x128xf32>
    %110 = arith.mulf %107, %109 : vector<64x128xf32>
    %111 = arith.addf %99, %110 : vector<64x128xf32>
    %c9 = arith.constant 9 : index
    %112 = memref.load %arg3[%c9] : memref<16xf32, #tpu.memory_space<smem>>
    %113 = vector.broadcast %112 : f32 to vector<64x128xf32>
    %114 = arith.mulf %2, %113 : vector<64x128xf32>
    %c0_39 = arith.constant 0 : index
    %c9_40 = arith.constant 9 : index
    %115 = memref.load %arg2[%c0_39, %c9_40] : memref<2x16xf32, #tpu.memory_space<smem>>
    %116 = vector.broadcast %115 : f32 to vector<64x128xf32>
    %117 = arith.addf %114, %116 : vector<64x128xf32>
    %cst_41 = arith.constant 0.000000e+00 : f32
    %118 = vector.broadcast %cst_41 : f32 to vector<64x128xf32>
    %119 = arith.maximumf %117, %118 : vector<64x128xf32>
    %c9_42 = arith.constant 9 : index
    %120 = memref.load %arg4[%c9_42] : memref<16xf32, #tpu.memory_space<smem>>
    %121 = vector.broadcast %120 : f32 to vector<64x128xf32>
    %122 = arith.mulf %119, %121 : vector<64x128xf32>
    %123 = arith.addf %111, %122 : vector<64x128xf32>
    %c10 = arith.constant 10 : index
    %124 = memref.load %arg3[%c10] : memref<16xf32, #tpu.memory_space<smem>>
    %125 = vector.broadcast %124 : f32 to vector<64x128xf32>
    %126 = arith.mulf %2, %125 : vector<64x128xf32>
    %c0_43 = arith.constant 0 : index
    %c10_44 = arith.constant 10 : index
    %127 = memref.load %arg2[%c0_43, %c10_44] : memref<2x16xf32, #tpu.memory_space<smem>>
    %128 = vector.broadcast %127 : f32 to vector<64x128xf32>
    %129 = arith.addf %126, %128 : vector<64x128xf32>
    %cst_45 = arith.constant 0.000000e+00 : f32
    %130 = vector.broadcast %cst_45 : f32 to vector<64x128xf32>
    %131 = arith.maximumf %129, %130 : vector<64x128xf32>
    %c10_46 = arith.constant 10 : index
    %132 = memref.load %arg4[%c10_46] : memref<16xf32, #tpu.memory_space<smem>>
    %133 = vector.broadcast %132 : f32 to vector<64x128xf32>
    %134 = arith.mulf %131, %133 : vector<64x128xf32>
    %135 = arith.addf %123, %134 : vector<64x128xf32>
    %c11 = arith.constant 11 : index
    %136 = memref.load %arg3[%c11] : memref<16xf32, #tpu.memory_space<smem>>
    %137 = vector.broadcast %136 : f32 to vector<64x128xf32>
    %138 = arith.mulf %2, %137 : vector<64x128xf32>
    %c0_47 = arith.constant 0 : index
    %c11_48 = arith.constant 11 : index
    %139 = memref.load %arg2[%c0_47, %c11_48] : memref<2x16xf32, #tpu.memory_space<smem>>
    %140 = vector.broadcast %139 : f32 to vector<64x128xf32>
    %141 = arith.addf %138, %140 : vector<64x128xf32>
    %cst_49 = arith.constant 0.000000e+00 : f32
    %142 = vector.broadcast %cst_49 : f32 to vector<64x128xf32>
    %143 = arith.maximumf %141, %142 : vector<64x128xf32>
    %c11_50 = arith.constant 11 : index
    %144 = memref.load %arg4[%c11_50] : memref<16xf32, #tpu.memory_space<smem>>
    %145 = vector.broadcast %144 : f32 to vector<64x128xf32>
    %146 = arith.mulf %143, %145 : vector<64x128xf32>
    %147 = arith.addf %135, %146 : vector<64x128xf32>
    %c12 = arith.constant 12 : index
    %148 = memref.load %arg3[%c12] : memref<16xf32, #tpu.memory_space<smem>>
    %149 = vector.broadcast %148 : f32 to vector<64x128xf32>
    %150 = arith.mulf %2, %149 : vector<64x128xf32>
    %c0_51 = arith.constant 0 : index
    %c12_52 = arith.constant 12 : index
    %151 = memref.load %arg2[%c0_51, %c12_52] : memref<2x16xf32, #tpu.memory_space<smem>>
    %152 = vector.broadcast %151 : f32 to vector<64x128xf32>
    %153 = arith.addf %150, %152 : vector<64x128xf32>
    %cst_53 = arith.constant 0.000000e+00 : f32
    %154 = vector.broadcast %cst_53 : f32 to vector<64x128xf32>
    %155 = arith.maximumf %153, %154 : vector<64x128xf32>
    %c12_54 = arith.constant 12 : index
    %156 = memref.load %arg4[%c12_54] : memref<16xf32, #tpu.memory_space<smem>>
    %157 = vector.broadcast %156 : f32 to vector<64x128xf32>
    %158 = arith.mulf %155, %157 : vector<64x128xf32>
    %159 = arith.addf %147, %158 : vector<64x128xf32>
    %c13 = arith.constant 13 : index
    %160 = memref.load %arg3[%c13] : memref<16xf32, #tpu.memory_space<smem>>
    %161 = vector.broadcast %160 : f32 to vector<64x128xf32>
    %162 = arith.mulf %2, %161 : vector<64x128xf32>
    %c0_55 = arith.constant 0 : index
    %c13_56 = arith.constant 13 : index
    %163 = memref.load %arg2[%c0_55, %c13_56] : memref<2x16xf32, #tpu.memory_space<smem>>
    %164 = vector.broadcast %163 : f32 to vector<64x128xf32>
    %165 = arith.addf %162, %164 : vector<64x128xf32>
    %cst_57 = arith.constant 0.000000e+00 : f32
    %166 = vector.broadcast %cst_57 : f32 to vector<64x128xf32>
    %167 = arith.maximumf %165, %166 : vector<64x128xf32>
    %c13_58 = arith.constant 13 : index
    %168 = memref.load %arg4[%c13_58] : memref<16xf32, #tpu.memory_space<smem>>
    %169 = vector.broadcast %168 : f32 to vector<64x128xf32>
    %170 = arith.mulf %167, %169 : vector<64x128xf32>
    %171 = arith.addf %159, %170 : vector<64x128xf32>
    %c14 = arith.constant 14 : index
    %172 = memref.load %arg3[%c14] : memref<16xf32, #tpu.memory_space<smem>>
    %173 = vector.broadcast %172 : f32 to vector<64x128xf32>
    %174 = arith.mulf %2, %173 : vector<64x128xf32>
    %c0_59 = arith.constant 0 : index
    %c14_60 = arith.constant 14 : index
    %175 = memref.load %arg2[%c0_59, %c14_60] : memref<2x16xf32, #tpu.memory_space<smem>>
    %176 = vector.broadcast %175 : f32 to vector<64x128xf32>
    %177 = arith.addf %174, %176 : vector<64x128xf32>
    %cst_61 = arith.constant 0.000000e+00 : f32
    %178 = vector.broadcast %cst_61 : f32 to vector<64x128xf32>
    %179 = arith.maximumf %177, %178 : vector<64x128xf32>
    %c14_62 = arith.constant 14 : index
    %180 = memref.load %arg4[%c14_62] : memref<16xf32, #tpu.memory_space<smem>>
    %181 = vector.broadcast %180 : f32 to vector<64x128xf32>
    %182 = arith.mulf %179, %181 : vector<64x128xf32>
    %183 = arith.addf %171, %182 : vector<64x128xf32>
    %c15 = arith.constant 15 : index
    %184 = memref.load %arg3[%c15] : memref<16xf32, #tpu.memory_space<smem>>
    %185 = vector.broadcast %184 : f32 to vector<64x128xf32>
    %186 = arith.mulf %2, %185 : vector<64x128xf32>
    %c0_63 = arith.constant 0 : index
    %c15_64 = arith.constant 15 : index
    %187 = memref.load %arg2[%c0_63, %c15_64] : memref<2x16xf32, #tpu.memory_space<smem>>
    %188 = vector.broadcast %187 : f32 to vector<64x128xf32>
    %189 = arith.addf %186, %188 : vector<64x128xf32>
    %cst_65 = arith.constant 0.000000e+00 : f32
    %190 = vector.broadcast %cst_65 : f32 to vector<64x128xf32>
    %191 = arith.maximumf %189, %190 : vector<64x128xf32>
    %c15_66 = arith.constant 15 : index
    %192 = memref.load %arg4[%c15_66] : memref<16xf32, #tpu.memory_space<smem>>
    %193 = vector.broadcast %192 : f32 to vector<64x128xf32>
    %194 = arith.mulf %191, %193 : vector<64x128xf32>
    %195 = arith.addf %183, %194 : vector<64x128xf32>
    %c0_67 = arith.constant 0 : index
    %196 = memref.load %arg5[%c0_67] : memref<1xf32, #tpu.memory_space<smem>>
    %197 = vector.broadcast %196 : f32 to vector<64x128xf32>
    %198 = arith.addf %195, %197 : vector<64x128xf32>
    %cst_68 = arith.constant 0.000000e+00 : f32
    %199 = vector.broadcast %cst_68 : f32 to vector<64x128xf32>
    %200 = arith.subf %199, %198 : vector<64x128xf32>
    %201 = math.exp %200 : vector<64x128xf32>
    %cst_69 = arith.constant 1.000000e+00 : f32
    %202 = vector.broadcast %cst_69 : f32 to vector<64x128xf32>
    %203 = arith.addf %202, %201 : vector<64x128xf32>
    %204 = tpu.reciprocal %203 {approx = true} : vector<64x128xf32> -> vector<64x128xf32>
    %c0_70 = arith.constant 0 : index
    %c0_71 = arith.constant 0 : index
    %c0_72 = arith.constant 0 : index
    %205 = vector.load %arg8[%c0_70, %c0_71, %c0_72] : memref<2x64x128xf32, #tpu.memory_space<vmem>>, vector<1x64x128xf32>
    %206 = vector.shape_cast %205 : vector<1x64x128xf32> to vector<64x128xf32>
    %207 = vector.shape_cast %204 : vector<64x128xf32> to vector<1x64x128xf32>
    tpu.vector_store %arg8[%c0_70, %c0_71, %c0_72], %207 {strides = array<i32>} : memref<2x64x128xf32, #tpu.memory_space<vmem>>, vector<1x64x128xf32>,
    %c1_73 = arith.constant 1 : index
    %c0_74 = arith.constant 0 : index
    %c0_75 = arith.constant 0 : index
    %208 = vector.load %arg1[%c1_73, %c0_74, %c0_75] : memref<2x64x128xf32, #tpu.memory_space<vmem>>, vector<1x64x128xf32>
    %209 = vector.shape_cast %208 : vector<1x64x128xf32> to vector<64x128xf32>
    %210 = math.log %209 : vector<64x128xf32>
    %cst_76 = arith.constant 0.000000e+00 : f32
    %211 = vector.broadcast %cst_76 : f32 to vector<64x128xf32>
    %c0_77 = arith.constant 0 : index
    %212 = memref.load %arg3[%c0_77] : memref<16xf32, #tpu.memory_space<smem>>
    %213 = vector.broadcast %212 : f32 to vector<64x128xf32>
    %214 = arith.mulf %210, %213 : vector<64x128xf32>
    %c1_78 = arith.constant 1 : index
    %c0_79 = arith.constant 0 : index
    %215 = memref.load %arg2[%c1_78, %c0_79] : memref<2x16xf32, #tpu.memory_space<smem>>
    %216 = vector.broadcast %215 : f32 to vector<64x128xf32>
    %217 = arith.addf %214, %216 : vector<64x128xf32>
    %cst_80 = arith.constant 0.000000e+00 : f32
    %218 = vector.broadcast %cst_80 : f32 to vector<64x128xf32>
    %219 = arith.maximumf %217, %218 : vector<64x128xf32>
    %c0_81 = arith.constant 0 : index
    %220 = memref.load %arg4[%c0_81] : memref<16xf32, #tpu.memory_space<smem>>
    %221 = vector.broadcast %220 : f32 to vector<64x128xf32>
    %222 = arith.mulf %219, %221 : vector<64x128xf32>
    %223 = arith.addf %211, %222 : vector<64x128xf32>
    %c1_82 = arith.constant 1 : index
    %224 = memref.load %arg3[%c1_82] : memref<16xf32, #tpu.memory_space<smem>>
    %225 = vector.broadcast %224 : f32 to vector<64x128xf32>
    %226 = arith.mulf %210, %225 : vector<64x128xf32>
    %c1_83 = arith.constant 1 : index
    %c1_84 = arith.constant 1 : index
    %227 = memref.load %arg2[%c1_83, %c1_84] : memref<2x16xf32, #tpu.memory_space<smem>>
    %228 = vector.broadcast %227 : f32 to vector<64x128xf32>
    %229 = arith.addf %226, %228 : vector<64x128xf32>
    %cst_85 = arith.constant 0.000000e+00 : f32
    %230 = vector.broadcast %cst_85 : f32 to vector<64x128xf32>
    %231 = arith.maximumf %229, %230 : vector<64x128xf32>
    %c1_86 = arith.constant 1 : index
    %232 = memref.load %arg4[%c1_86] : memref<16xf32, #tpu.memory_space<smem>>
    %233 = vector.broadcast %232 : f32 to vector<64x128xf32>
    %234 = arith.mulf %231, %233 : vector<64x128xf32>
    %235 = arith.addf %223, %234 : vector<64x128xf32>
    %c2_87 = arith.constant 2 : index
    %236 = memref.load %arg3[%c2_87] : memref<16xf32, #tpu.memory_space<smem>>
    %237 = vector.broadcast %236 : f32 to vector<64x128xf32>
    %238 = arith.mulf %210, %237 : vector<64x128xf32>
    %c1_88 = arith.constant 1 : index
    %c2_89 = arith.constant 2 : index
    %239 = memref.load %arg2[%c1_88, %c2_89] : memref<2x16xf32, #tpu.memory_space<smem>>
    %240 = vector.broadcast %239 : f32 to vector<64x128xf32>
    %241 = arith.addf %238, %240 : vector<64x128xf32>
    %cst_90 = arith.constant 0.000000e+00 : f32
    %242 = vector.broadcast %cst_90 : f32 to vector<64x128xf32>
    %243 = arith.maximumf %241, %242 : vector<64x128xf32>
    %c2_91 = arith.constant 2 : index
    %244 = memref.load %arg4[%c2_91] : memref<16xf32, #tpu.memory_space<smem>>
    %245 = vector.broadcast %244 : f32 to vector<64x128xf32>
    %246 = arith.mulf %243, %245 : vector<64x128xf32>
    %247 = arith.addf %235, %246 : vector<64x128xf32>
    %c3_92 = arith.constant 3 : index
    %248 = memref.load %arg3[%c3_92] : memref<16xf32, #tpu.memory_space<smem>>
    %249 = vector.broadcast %248 : f32 to vector<64x128xf32>
    %250 = arith.mulf %210, %249 : vector<64x128xf32>
    %c1_93 = arith.constant 1 : index
    %c3_94 = arith.constant 3 : index
    %251 = memref.load %arg2[%c1_93, %c3_94] : memref<2x16xf32, #tpu.memory_space<smem>>
    %252 = vector.broadcast %251 : f32 to vector<64x128xf32>
    %253 = arith.addf %250, %252 : vector<64x128xf32>
    %cst_95 = arith.constant 0.000000e+00 : f32
    %254 = vector.broadcast %cst_95 : f32 to vector<64x128xf32>
    %255 = arith.maximumf %253, %254 : vector<64x128xf32>
    %c3_96 = arith.constant 3 : index
    %256 = memref.load %arg4[%c3_96] : memref<16xf32, #tpu.memory_space<smem>>
    %257 = vector.broadcast %256 : f32 to vector<64x128xf32>
    %258 = arith.mulf %255, %257 : vector<64x128xf32>
    %259 = arith.addf %247, %258 : vector<64x128xf32>
    %c4_97 = arith.constant 4 : index
    %260 = memref.load %arg3[%c4_97] : memref<16xf32, #tpu.memory_space<smem>>
    %261 = vector.broadcast %260 : f32 to vector<64x128xf32>
    %262 = arith.mulf %210, %261 : vector<64x128xf32>
    %c1_98 = arith.constant 1 : index
    %c4_99 = arith.constant 4 : index
    %263 = memref.load %arg2[%c1_98, %c4_99] : memref<2x16xf32, #tpu.memory_space<smem>>
    %264 = vector.broadcast %263 : f32 to vector<64x128xf32>
    %265 = arith.addf %262, %264 : vector<64x128xf32>
    %cst_100 = arith.constant 0.000000e+00 : f32
    %266 = vector.broadcast %cst_100 : f32 to vector<64x128xf32>
    %267 = arith.maximumf %265, %266 : vector<64x128xf32>
    %c4_101 = arith.constant 4 : index
    %268 = memref.load %arg4[%c4_101] : memref<16xf32, #tpu.memory_space<smem>>
    %269 = vector.broadcast %268 : f32 to vector<64x128xf32>
    %270 = arith.mulf %267, %269 : vector<64x128xf32>
    %271 = arith.addf %259, %270 : vector<64x128xf32>
    %c5_102 = arith.constant 5 : index
    %272 = memref.load %arg3[%c5_102] : memref<16xf32, #tpu.memory_space<smem>>
    %273 = vector.broadcast %272 : f32 to vector<64x128xf32>
    %274 = arith.mulf %210, %273 : vector<64x128xf32>
    %c1_103 = arith.constant 1 : index
    %c5_104 = arith.constant 5 : index
    %275 = memref.load %arg2[%c1_103, %c5_104] : memref<2x16xf32, #tpu.memory_space<smem>>
    %276 = vector.broadcast %275 : f32 to vector<64x128xf32>
    %277 = arith.addf %274, %276 : vector<64x128xf32>
    %cst_105 = arith.constant 0.000000e+00 : f32
    %278 = vector.broadcast %cst_105 : f32 to vector<64x128xf32>
    %279 = arith.maximumf %277, %278 : vector<64x128xf32>
    %c5_106 = arith.constant 5 : index
    %280 = memref.load %arg4[%c5_106] : memref<16xf32, #tpu.memory_space<smem>>
    %281 = vector.broadcast %280 : f32 to vector<64x128xf32>
    %282 = arith.mulf %279, %281 : vector<64x128xf32>
    %283 = arith.addf %271, %282 : vector<64x128xf32>
    %c6_107 = arith.constant 6 : index
    %284 = memref.load %arg3[%c6_107] : memref<16xf32, #tpu.memory_space<smem>>
    %285 = vector.broadcast %284 : f32 to vector<64x128xf32>
    %286 = arith.mulf %210, %285 : vector<64x128xf32>
    %c1_108 = arith.constant 1 : index
    %c6_109 = arith.constant 6 : index
    %287 = memref.load %arg2[%c1_108, %c6_109] : memref<2x16xf32, #tpu.memory_space<smem>>
    %288 = vector.broadcast %287 : f32 to vector<64x128xf32>
    %289 = arith.addf %286, %288 : vector<64x128xf32>
    %cst_110 = arith.constant 0.000000e+00 : f32
    %290 = vector.broadcast %cst_110 : f32 to vector<64x128xf32>
    %291 = arith.maximumf %289, %290 : vector<64x128xf32>
    %c6_111 = arith.constant 6 : index
    %292 = memref.load %arg4[%c6_111] : memref<16xf32, #tpu.memory_space<smem>>
    %293 = vector.broadcast %292 : f32 to vector<64x128xf32>
    %294 = arith.mulf %291, %293 : vector<64x128xf32>
    %295 = arith.addf %283, %294 : vector<64x128xf32>
    %c7_112 = arith.constant 7 : index
    %296 = memref.load %arg3[%c7_112] : memref<16xf32, #tpu.memory_space<smem>>
    %297 = vector.broadcast %296 : f32 to vector<64x128xf32>
    %298 = arith.mulf %210, %297 : vector<64x128xf32>
    %c1_113 = arith.constant 1 : index
    %c7_114 = arith.constant 7 : index
    %299 = memref.load %arg2[%c1_113, %c7_114] : memref<2x16xf32, #tpu.memory_space<smem>>
    %300 = vector.broadcast %299 : f32 to vector<64x128xf32>
    %301 = arith.addf %298, %300 : vector<64x128xf32>
    %cst_115 = arith.constant 0.000000e+00 : f32
    %302 = vector.broadcast %cst_115 : f32 to vector<64x128xf32>
    %303 = arith.maximumf %301, %302 : vector<64x128xf32>
    %c7_116 = arith.constant 7 : index
    %304 = memref.load %arg4[%c7_116] : memref<16xf32, #tpu.memory_space<smem>>
    %305 = vector.broadcast %304 : f32 to vector<64x128xf32>
    %306 = arith.mulf %303, %305 : vector<64x128xf32>
    %307 = arith.addf %295, %306 : vector<64x128xf32>
    %c8_117 = arith.constant 8 : index
    %308 = memref.load %arg3[%c8_117] : memref<16xf32, #tpu.memory_space<smem>>
    %309 = vector.broadcast %308 : f32 to vector<64x128xf32>
    %310 = arith.mulf %210, %309 : vector<64x128xf32>
    %c1_118 = arith.constant 1 : index
    %c8_119 = arith.constant 8 : index
    %311 = memref.load %arg2[%c1_118, %c8_119] : memref<2x16xf32, #tpu.memory_space<smem>>
    %312 = vector.broadcast %311 : f32 to vector<64x128xf32>
    %313 = arith.addf %310, %312 : vector<64x128xf32>
    %cst_120 = arith.constant 0.000000e+00 : f32
    %314 = vector.broadcast %cst_120 : f32 to vector<64x128xf32>
    %315 = arith.maximumf %313, %314 : vector<64x128xf32>
    %c8_121 = arith.constant 8 : index
    %316 = memref.load %arg4[%c8_121] : memref<16xf32, #tpu.memory_space<smem>>
    %317 = vector.broadcast %316 : f32 to vector<64x128xf32>
    %318 = arith.mulf %315, %317 : vector<64x128xf32>
    %319 = arith.addf %307, %318 : vector<64x128xf32>
    %c9_122 = arith.constant 9 : index
    %320 = memref.load %arg3[%c9_122] : memref<16xf32, #tpu.memory_space<smem>>
    %321 = vector.broadcast %320 : f32 to vector<64x128xf32>
    %322 = arith.mulf %210, %321 : vector<64x128xf32>
    %c1_123 = arith.constant 1 : index
    %c9_124 = arith.constant 9 : index
    %323 = memref.load %arg2[%c1_123, %c9_124] : memref<2x16xf32, #tpu.memory_space<smem>>
    %324 = vector.broadcast %323 : f32 to vector<64x128xf32>
    %325 = arith.addf %322, %324 : vector<64x128xf32>
    %cst_125 = arith.constant 0.000000e+00 : f32
    %326 = vector.broadcast %cst_125 : f32 to vector<64x128xf32>
    %327 = arith.maximumf %325, %326 : vector<64x128xf32>
    %c9_126 = arith.constant 9 : index
    %328 = memref.load %arg4[%c9_126] : memref<16xf32, #tpu.memory_space<smem>>
    %329 = vector.broadcast %328 : f32 to vector<64x128xf32>
    %330 = arith.mulf %327, %329 : vector<64x128xf32>
    %331 = arith.addf %319, %330 : vector<64x128xf32>
    %c10_127 = arith.constant 10 : index
    %332 = memref.load %arg3[%c10_127] : memref<16xf32, #tpu.memory_space<smem>>
    %333 = vector.broadcast %332 : f32 to vector<64x128xf32>
    %334 = arith.mulf %210, %333 : vector<64x128xf32>
    %c1_128 = arith.constant 1 : index
    %c10_129 = arith.constant 10 : index
    %335 = memref.load %arg2[%c1_128, %c10_129] : memref<2x16xf32, #tpu.memory_space<smem>>
    %336 = vector.broadcast %335 : f32 to vector<64x128xf32>
    %337 = arith.addf %334, %336 : vector<64x128xf32>
    %cst_130 = arith.constant 0.000000e+00 : f32
    %338 = vector.broadcast %cst_130 : f32 to vector<64x128xf32>
    %339 = arith.maximumf %337, %338 : vector<64x128xf32>
    %c10_131 = arith.constant 10 : index
    %340 = memref.load %arg4[%c10_131] : memref<16xf32, #tpu.memory_space<smem>>
    %341 = vector.broadcast %340 : f32 to vector<64x128xf32>
    %342 = arith.mulf %339, %341 : vector<64x128xf32>
    %343 = arith.addf %331, %342 : vector<64x128xf32>
    %c11_132 = arith.constant 11 : index
    %344 = memref.load %arg3[%c11_132] : memref<16xf32, #tpu.memory_space<smem>>
    %345 = vector.broadcast %344 : f32 to vector<64x128xf32>
    %346 = arith.mulf %210, %345 : vector<64x128xf32>
    %c1_133 = arith.constant 1 : index
    %c11_134 = arith.constant 11 : index
    %347 = memref.load %arg2[%c1_133, %c11_134] : memref<2x16xf32, #tpu.memory_space<smem>>
    %348 = vector.broadcast %347 : f32 to vector<64x128xf32>
    %349 = arith.addf %346, %348 : vector<64x128xf32>
    %cst_135 = arith.constant 0.000000e+00 : f32
    %350 = vector.broadcast %cst_135 : f32 to vector<64x128xf32>
    %351 = arith.maximumf %349, %350 : vector<64x128xf32>
    %c11_136 = arith.constant 11 : index
    %352 = memref.load %arg4[%c11_136] : memref<16xf32, #tpu.memory_space<smem>>
    %353 = vector.broadcast %352 : f32 to vector<64x128xf32>
    %354 = arith.mulf %351, %353 : vector<64x128xf32>
    %355 = arith.addf %343, %354 : vector<64x128xf32>
    %c12_137 = arith.constant 12 : index
    %356 = memref.load %arg3[%c12_137] : memref<16xf32, #tpu.memory_space<smem>>
    %357 = vector.broadcast %356 : f32 to vector<64x128xf32>
    %358 = arith.mulf %210, %357 : vector<64x128xf32>
    %c1_138 = arith.constant 1 : index
    %c12_139 = arith.constant 12 : index
    %359 = memref.load %arg2[%c1_138, %c12_139] : memref<2x16xf32, #tpu.memory_space<smem>>
    %360 = vector.broadcast %359 : f32 to vector<64x128xf32>
    %361 = arith.addf %358, %360 : vector<64x128xf32>
    %cst_140 = arith.constant 0.000000e+00 : f32
    %362 = vector.broadcast %cst_140 : f32 to vector<64x128xf32>
    %363 = arith.maximumf %361, %362 : vector<64x128xf32>
    %c12_141 = arith.constant 12 : index
    %364 = memref.load %arg4[%c12_141] : memref<16xf32, #tpu.memory_space<smem>>
    %365 = vector.broadcast %364 : f32 to vector<64x128xf32>
    %366 = arith.mulf %363, %365 : vector<64x128xf32>
    %367 = arith.addf %355, %366 : vector<64x128xf32>
    %c13_142 = arith.constant 13 : index
    %368 = memref.load %arg3[%c13_142] : memref<16xf32, #tpu.memory_space<smem>>
    %369 = vector.broadcast %368 : f32 to vector<64x128xf32>
    %370 = arith.mulf %210, %369 : vector<64x128xf32>
    %c1_143 = arith.constant 1 : index
    %c13_144 = arith.constant 13 : index
    %371 = memref.load %arg2[%c1_143, %c13_144] : memref<2x16xf32, #tpu.memory_space<smem>>
    %372 = vector.broadcast %371 : f32 to vector<64x128xf32>
    %373 = arith.addf %370, %372 : vector<64x128xf32>
    %cst_145 = arith.constant 0.000000e+00 : f32
    %374 = vector.broadcast %cst_145 : f32 to vector<64x128xf32>
    %375 = arith.maximumf %373, %374 : vector<64x128xf32>
    %c13_146 = arith.constant 13 : index
    %376 = memref.load %arg4[%c13_146] : memref<16xf32, #tpu.memory_space<smem>>
    %377 = vector.broadcast %376 : f32 to vector<64x128xf32>
    %378 = arith.mulf %375, %377 : vector<64x128xf32>
    %379 = arith.addf %367, %378 : vector<64x128xf32>
    %c14_147 = arith.constant 14 : index
    %380 = memref.load %arg3[%c14_147] : memref<16xf32, #tpu.memory_space<smem>>
    %381 = vector.broadcast %380 : f32 to vector<64x128xf32>
    %382 = arith.mulf %210, %381 : vector<64x128xf32>
    %c1_148 = arith.constant 1 : index
    %c14_149 = arith.constant 14 : index
    %383 = memref.load %arg2[%c1_148, %c14_149] : memref<2x16xf32, #tpu.memory_space<smem>>
    %384 = vector.broadcast %383 : f32 to vector<64x128xf32>
    %385 = arith.addf %382, %384 : vector<64x128xf32>
    %cst_150 = arith.constant 0.000000e+00 : f32
    %386 = vector.broadcast %cst_150 : f32 to vector<64x128xf32>
    %387 = arith.maximumf %385, %386 : vector<64x128xf32>
    %c14_151 = arith.constant 14 : index
    %388 = memref.load %arg4[%c14_151] : memref<16xf32, #tpu.memory_space<smem>>
    %389 = vector.broadcast %388 : f32 to vector<64x128xf32>
    %390 = arith.mulf %387, %389 : vector<64x128xf32>
    %391 = arith.addf %379, %390 : vector<64x128xf32>
    %c15_152 = arith.constant 15 : index
    %392 = memref.load %arg3[%c15_152] : memref<16xf32, #tpu.memory_space<smem>>
    %393 = vector.broadcast %392 : f32 to vector<64x128xf32>
    %394 = arith.mulf %210, %393 : vector<64x128xf32>
    %c1_153 = arith.constant 1 : index
    %c15_154 = arith.constant 15 : index
    %395 = memref.load %arg2[%c1_153, %c15_154] : memref<2x16xf32, #tpu.memory_space<smem>>
    %396 = vector.broadcast %395 : f32 to vector<64x128xf32>
    %397 = arith.addf %394, %396 : vector<64x128xf32>
    %cst_155 = arith.constant 0.000000e+00 : f32
    %398 = vector.broadcast %cst_155 : f32 to vector<64x128xf32>
    %399 = arith.maximumf %397, %398 : vector<64x128xf32>
    %c15_156 = arith.constant 15 : index
    %400 = memref.load %arg4[%c15_156] : memref<16xf32, #tpu.memory_space<smem>>
    %401 = vector.broadcast %400 : f32 to vector<64x128xf32>
    %402 = arith.mulf %399, %401 : vector<64x128xf32>
    %403 = arith.addf %391, %402 : vector<64x128xf32>
    %c0_157 = arith.constant 0 : index
    %404 = memref.load %arg5[%c0_157] : memref<1xf32, #tpu.memory_space<smem>>
    %405 = vector.broadcast %404 : f32 to vector<64x128xf32>
    %406 = arith.addf %403, %405 : vector<64x128xf32>
    %cst_158 = arith.constant 0.000000e+00 : f32
    %407 = vector.broadcast %cst_158 : f32 to vector<64x128xf32>
    %408 = arith.subf %407, %406 : vector<64x128xf32>
    %409 = math.exp %408 : vector<64x128xf32>
    %cst_159 = arith.constant 1.000000e+00 : f32
    %410 = vector.broadcast %cst_159 : f32 to vector<64x128xf32>
    %411 = arith.addf %410, %409 : vector<64x128xf32>
    %412 = tpu.reciprocal %411 {approx = true} : vector<64x128xf32> -> vector<64x128xf32>
    %c1_160 = arith.constant 1 : index
    %c0_161 = arith.constant 0 : index
    %c0_162 = arith.constant 0 : index
    %413 = vector.load %arg8[%c1_160, %c0_161, %c0_162] : memref<2x64x128xf32, #tpu.memory_space<vmem>>, vector<1x64x128xf32>
    %414 = vector.shape_cast %413 : vector<1x64x128xf32> to vector<64x128xf32>
    %415 = vector.shape_cast %412 : vector<64x128xf32> to vector<1x64x128xf32>
    tpu.vector_store %arg8[%c1_160, %c0_161, %c0_162], %415 {strides = array<i32>} : memref<2x64x128xf32, #tpu.memory_space<vmem>>, vector<1x64x128xf32>,
    %c0_163 = arith.constant 0 : index
    %c0_164 = arith.constant 0 : index
    %c0_165 = arith.constant 0 : index
    %416 = vector.load %arg1[%c0_163, %c0_164, %c0_165] : memref<2x64x128xf32, #tpu.memory_space<vmem>>, vector<1x64x128xf32>
    %417 = vector.shape_cast %416 : vector<1x64x128xf32> to vector<64x128xf32>
    %c0_166 = arith.constant 0 : index
    %c0_167 = arith.constant 0 : index
    %c0_168 = arith.constant 0 : index
    %418 = vector.load %arg8[%c0_166, %c0_167, %c0_168] : memref<2x64x128xf32, #tpu.memory_space<vmem>>, vector<1x64x128xf32>
    %419 = vector.shape_cast %418 : vector<1x64x128xf32> to vector<64x128xf32>
    %420 = arith.mulf %417, %419 : vector<64x128xf32>
    %cst_169 = arith.constant 1.000000e-10 : f32
    %421 = vector.broadcast %cst_169 : f32 to vector<64x128xf32>
    %422 = arith.addf %420, %421 : vector<64x128xf32>
    %423 = math.log %422 : vector<64x128xf32>
    %c0_170 = arith.constant 0 : index
    %c0_171 = arith.constant 0 : index
    %c0_172 = arith.constant 0 : index
    %424 = vector.load %arg6[%c0_170, %c0_171, %c0_172] : memref<8x64x128xf32, #tpu.memory_space<vmem>>, vector<1x64x128xf32>
    %425 = vector.shape_cast %424 : vector<1x64x128xf32> to vector<64x128xf32>
    %426 = arith.mulf %423, %425 : vector<64x128xf32>
    %cst_173 = arith.constant dense<0.000000e+00> : vector<64xf32>
    %427 = vector.multi_reduction <add>, %426, %cst_173 [1] : vector<64x128xf32> to vector<64xf32>
    %428 = vector.shape_cast %427 : vector<64xf32> to vector<64x1xf32>
    %cst_174 = arith.constant dense<0.000000e+00> : vector<1xf32>
    %429 = vector.multi_reduction <add>, %428, %cst_174 [0] : vector<64x1xf32> to vector<1xf32>
    %430 = vector.shape_cast %429 : vector<1xf32> to vector<1x1xf32>
    %c1_175 = arith.constant 1 : index
    %c0_176 = arith.constant 0 : index
    %c0_177 = arith.constant 0 : index
    %431 = vector.load %arg6[%c1_175, %c0_176, %c0_177] : memref<8x64x128xf32, #tpu.memory_space<vmem>>, vector<1x64x128xf32>
    %432 = vector.shape_cast %431 : vector<1x64x128xf32> to vector<64x128xf32>
    %433 = arith.mulf %423, %432 : vector<64x128xf32>
    %cst_178 = arith.constant dense<0.000000e+00> : vector<64xf32>
    %434 = vector.multi_reduction <add>, %433, %cst_178 [1] : vector<64x128xf32> to vector<64xf32>
    %435 = vector.shape_cast %434 : vector<64xf32> to vector<64x1xf32>
    %cst_179 = arith.constant dense<0.000000e+00> : vector<1xf32>
    %436 = vector.multi_reduction <add>, %435, %cst_179 [0] : vector<64x1xf32> to vector<1xf32>
    %437 = vector.shape_cast %436 : vector<1xf32> to vector<1x1xf32>
    %c2_180 = arith.constant 2 : index
    %c0_181 = arith.constant 0 : index
    %c0_182 = arith.constant 0 : index
    %438 = vector.load %arg6[%c2_180, %c0_181, %c0_182] : memref<8x64x128xf32, #tpu.memory_space<vmem>>, vector<1x64x128xf32>
    %439 = vector.shape_cast %438 : vector<1x64x128xf32> to vector<64x128xf32>
    %440 = arith.mulf %423, %439 : vector<64x128xf32>
    %cst_183 = arith.constant dense<0.000000e+00> : vector<64xf32>
    %441 = vector.multi_reduction <add>, %440, %cst_183 [1] : vector<64x128xf32> to vector<64xf32>
    %442 = vector.shape_cast %441 : vector<64xf32> to vector<64x1xf32>
    %cst_184 = arith.constant dense<0.000000e+00> : vector<1xf32>
    %443 = vector.multi_reduction <add>, %442, %cst_184 [0] : vector<64x1xf32> to vector<1xf32>
    %444 = vector.shape_cast %443 : vector<1xf32> to vector<1x1xf32>
    %c3_185 = arith.constant 3 : index
    %c0_186 = arith.constant 0 : index
    %c0_187 = arith.constant 0 : index
    %445 = vector.load %arg6[%c3_185, %c0_186, %c0_187] : memref<8x64x128xf32, #tpu.memory_space<vmem>>, vector<1x64x128xf32>
    %446 = vector.shape_cast %445 : vector<1x64x128xf32> to vector<64x128xf32>
    %447 = arith.mulf %423, %446 : vector<64x128xf32>
    %cst_188 = arith.constant dense<0.000000e+00> : vector<64xf32>
    %448 = vector.multi_reduction <add>, %447, %cst_188 [1] : vector<64x128xf32> to vector<64xf32>
    %449 = vector.shape_cast %448 : vector<64xf32> to vector<64x1xf32>
    %cst_189 = arith.constant dense<0.000000e+00> : vector<1xf32>
    %450 = vector.multi_reduction <add>, %449, %cst_189 [0] : vector<64x1xf32> to vector<1xf32>
    %451 = vector.shape_cast %450 : vector<1xf32> to vector<1x1xf32>
    %c4_190 = arith.constant 4 : index
    %c0_191 = arith.constant 0 : index
    %c0_192 = arith.constant 0 : index
    %452 = vector.load %arg6[%c4_190, %c0_191, %c0_192] : memref<8x64x128xf32, #tpu.memory_space<vmem>>, vector<1x64x128xf32>
    %453 = vector.shape_cast %452 : vector<1x64x128xf32> to vector<64x128xf32>
    %454 = arith.mulf %423, %453 : vector<64x128xf32>
    %cst_193 = arith.constant dense<0.000000e+00> : vector<64xf32>
    %455 = vector.multi_reduction <add>, %454, %cst_193 [1] : vector<64x128xf32> to vector<64xf32>
    %456 = vector.shape_cast %455 : vector<64xf32> to vector<64x1xf32>
    %cst_194 = arith.constant dense<0.000000e+00> : vector<1xf32>
    %457 = vector.multi_reduction <add>, %456, %cst_194 [0] : vector<64x1xf32> to vector<1xf32>
    %458 = vector.shape_cast %457 : vector<1xf32> to vector<1x1xf32>
    %c5_195 = arith.constant 5 : index
    %c0_196 = arith.constant 0 : index
    %c0_197 = arith.constant 0 : index
    %459 = vector.load %arg6[%c5_195, %c0_196, %c0_197] : memref<8x64x128xf32, #tpu.memory_space<vmem>>, vector<1x64x128xf32>
    %460 = vector.shape_cast %459 : vector<1x64x128xf32> to vector<64x128xf32>
    %461 = arith.mulf %423, %460 : vector<64x128xf32>
    %cst_198 = arith.constant dense<0.000000e+00> : vector<64xf32>
    %462 = vector.multi_reduction <add>, %461, %cst_198 [1] : vector<64x128xf32> to vector<64xf32>
    %463 = vector.shape_cast %462 : vector<64xf32> to vector<64x1xf32>
    %cst_199 = arith.constant dense<0.000000e+00> : vector<1xf32>
    %464 = vector.multi_reduction <add>, %463, %cst_199 [0] : vector<64x1xf32> to vector<1xf32>
    %465 = vector.shape_cast %464 : vector<1xf32> to vector<1x1xf32>
    %c6_200 = arith.constant 6 : index
    %c0_201 = arith.constant 0 : index
    %c0_202 = arith.constant 0 : index
    %466 = vector.load %arg6[%c6_200, %c0_201, %c0_202] : memref<8x64x128xf32, #tpu.memory_space<vmem>>, vector<1x64x128xf32>
    %467 = vector.shape_cast %466 : vector<1x64x128xf32> to vector<64x128xf32>
    %468 = arith.mulf %423, %467 : vector<64x128xf32>
    %cst_203 = arith.constant dense<0.000000e+00> : vector<64xf32>
    %469 = vector.multi_reduction <add>, %468, %cst_203 [1] : vector<64x128xf32> to vector<64xf32>
    %470 = vector.shape_cast %469 : vector<64xf32> to vector<64x1xf32>
    %cst_204 = arith.constant dense<0.000000e+00> : vector<1xf32>
    %471 = vector.multi_reduction <add>, %470, %cst_204 [0] : vector<64x1xf32> to vector<1xf32>
    %472 = vector.shape_cast %471 : vector<1xf32> to vector<1x1xf32>
    %c7_205 = arith.constant 7 : index
    %c0_206 = arith.constant 0 : index
    %c0_207 = arith.constant 0 : index
    %473 = vector.load %arg6[%c7_205, %c0_206, %c0_207] : memref<8x64x128xf32, #tpu.memory_space<vmem>>, vector<1x64x128xf32>
    %474 = vector.shape_cast %473 : vector<1x64x128xf32> to vector<64x128xf32>
    %475 = arith.mulf %423, %474 : vector<64x128xf32>
    %cst_208 = arith.constant dense<0.000000e+00> : vector<64xf32>
    %476 = vector.multi_reduction <add>, %475, %cst_208 [1] : vector<64x128xf32> to vector<64xf32>
    %477 = vector.shape_cast %476 : vector<64xf32> to vector<64x1xf32>
    %cst_209 = arith.constant dense<0.000000e+00> : vector<1xf32>
    %478 = vector.multi_reduction <add>, %477, %cst_209 [0] : vector<64x1xf32> to vector<1xf32>
    %479 = vector.shape_cast %478 : vector<1xf32> to vector<1x1xf32>
    %480 = tpu.concatenate %430, %437, %444, %451, %458, %465, %472, %479 in 1 : vector<1x1xf32>, vector<1x1xf32>, vector<1x1xf32>, vector<1x1xf32>, vector<1x1xf32>, vector<1x1xf32>, vector<1x1xf32>, vector<1x1xf32> -> vector<1x8xf32>
    %c1_210 = arith.constant 1 : index
    %c0_211 = arith.constant 0 : index
    %c0_212 = arith.constant 0 : index
    %481 = vector.load %arg1[%c1_210, %c0_211, %c0_212] : memref<2x64x128xf32, #tpu.memory_space<vmem>>, vector<1x64x128xf32>
    %482 = vector.shape_cast %481 : vector<1x64x128xf32> to vector<64x128xf32>
    %c1_213 = arith.constant 1 : index
    %c0_214 = arith.constant 0 : index
    %c0_215 = arith.constant 0 : index
    %483 = vector.load %arg8[%c1_213, %c0_214, %c0_215] : memref<2x64x128xf32, #tpu.memory_space<vmem>>, vector<1x64x128xf32>
    %484 = vector.shape_cast %483 : vector<1x64x128xf32> to vector<64x128xf32>
    %485 = arith.mulf %482, %484 : vector<64x128xf32>
    %cst_216 = arith.constant 1.000000e-10 : f32
    %486 = vector.broadcast %cst_216 : f32 to vector<64x128xf32>
    %487 = arith.addf %485, %486 : vector<64x128xf32>
    %488 = math.log %487 : vector<64x128xf32>
    %c0_217 = arith.constant 0 : index
    %c0_218 = arith.constant 0 : index
    %c0_219 = arith.constant 0 : index
    %489 = vector.load %arg6[%c0_217, %c0_218, %c0_219] : memref<8x64x128xf32, #tpu.memory_space<vmem>>, vector<1x64x128xf32>
    %490 = vector.shape_cast %489 : vector<1x64x128xf32> to vector<64x128xf32>
    %491 = arith.mulf %488, %490 : vector<64x128xf32>
    %cst_220 = arith.constant dense<0.000000e+00> : vector<64xf32>
    %492 = vector.multi_reduction <add>, %491, %cst_220 [1] : vector<64x128xf32> to vector<64xf32>
    %493 = vector.shape_cast %492 : vector<64xf32> to vector<64x1xf32>
    %cst_221 = arith.constant dense<0.000000e+00> : vector<1xf32>
    %494 = vector.multi_reduction <add>, %493, %cst_221 [0] : vector<64x1xf32> to vector<1xf32>
    %495 = vector.shape_cast %494 : vector<1xf32> to vector<1x1xf32>
    %c1_222 = arith.constant 1 : index
    %c0_223 = arith.constant 0 : index
    %c0_224 = arith.constant 0 : index
    %496 = vector.load %arg6[%c1_222, %c0_223, %c0_224] : memref<8x64x128xf32, #tpu.memory_space<vmem>>, vector<1x64x128xf32>
    %497 = vector.shape_cast %496 : vector<1x64x128xf32> to vector<64x128xf32>
    %498 = arith.mulf %488, %497 : vector<64x128xf32>
    %cst_225 = arith.constant dense<0.000000e+00> : vector<64xf32>
    %499 = vector.multi_reduction <add>, %498, %cst_225 [1] : vector<64x128xf32> to vector<64xf32>
    %500 = vector.shape_cast %499 : vector<64xf32> to vector<64x1xf32>
    %cst_226 = arith.constant dense<0.000000e+00> : vector<1xf32>
    %501 = vector.multi_reduction <add>, %500, %cst_226 [0] : vector<64x1xf32> to vector<1xf32>
    %502 = vector.shape_cast %501 : vector<1xf32> to vector<1x1xf32>
    %c2_227 = arith.constant 2 : index
    %c0_228 = arith.constant 0 : index
    %c0_229 = arith.constant 0 : index
    %503 = vector.load %arg6[%c2_227, %c0_228, %c0_229] : memref<8x64x128xf32, #tpu.memory_space<vmem>>, vector<1x64x128xf32>
    %504 = vector.shape_cast %503 : vector<1x64x128xf32> to vector<64x128xf32>
    %505 = arith.mulf %488, %504 : vector<64x128xf32>
    %cst_230 = arith.constant dense<0.000000e+00> : vector<64xf32>
    %506 = vector.multi_reduction <add>, %505, %cst_230 [1] : vector<64x128xf32> to vector<64xf32>
    %507 = vector.shape_cast %506 : vector<64xf32> to vector<64x1xf32>
    %cst_231 = arith.constant dense<0.000000e+00> : vector<1xf32>
    %508 = vector.multi_reduction <add>, %507, %cst_231 [0] : vector<64x1xf32> to vector<1xf32>
    %509 = vector.shape_cast %508 : vector<1xf32> to vector<1x1xf32>
    %c3_232 = arith.constant 3 : index
    %c0_233 = arith.constant 0 : index
    %c0_234 = arith.constant 0 : index
    %510 = vector.load %arg6[%c3_232, %c0_233, %c0_234] : memref<8x64x128xf32, #tpu.memory_space<vmem>>, vector<1x64x128xf32>
    %511 = vector.shape_cast %510 : vector<1x64x128xf32> to vector<64x128xf32>
    %512 = arith.mulf %488, %511 : vector<64x128xf32>
    %cst_235 = arith.constant dense<0.000000e+00> : vector<64xf32>
    %513 = vector.multi_reduction <add>, %512, %cst_235 [1] : vector<64x128xf32> to vector<64xf32>
    %514 = vector.shape_cast %513 : vector<64xf32> to vector<64x1xf32>
    %cst_236 = arith.constant dense<0.000000e+00> : vector<1xf32>
    %515 = vector.multi_reduction <add>, %514, %cst_236 [0] : vector<64x1xf32> to vector<1xf32>
    %516 = vector.shape_cast %515 : vector<1xf32> to vector<1x1xf32>
    %c4_237 = arith.constant 4 : index
    %c0_238 = arith.constant 0 : index
    %c0_239 = arith.constant 0 : index
    %517 = vector.load %arg6[%c4_237, %c0_238, %c0_239] : memref<8x64x128xf32, #tpu.memory_space<vmem>>, vector<1x64x128xf32>
    %518 = vector.shape_cast %517 : vector<1x64x128xf32> to vector<64x128xf32>
    %519 = arith.mulf %488, %518 : vector<64x128xf32>
    %cst_240 = arith.constant dense<0.000000e+00> : vector<64xf32>
    %520 = vector.multi_reduction <add>, %519, %cst_240 [1] : vector<64x128xf32> to vector<64xf32>
    %521 = vector.shape_cast %520 : vector<64xf32> to vector<64x1xf32>
    %cst_241 = arith.constant dense<0.000000e+00> : vector<1xf32>
    %522 = vector.multi_reduction <add>, %521, %cst_241 [0] : vector<64x1xf32> to vector<1xf32>
    %523 = vector.shape_cast %522 : vector<1xf32> to vector<1x1xf32>
    %c5_242 = arith.constant 5 : index
    %c0_243 = arith.constant 0 : index
    %c0_244 = arith.constant 0 : index
    %524 = vector.load %arg6[%c5_242, %c0_243, %c0_244] : memref<8x64x128xf32, #tpu.memory_space<vmem>>, vector<1x64x128xf32>
    %525 = vector.shape_cast %524 : vector<1x64x128xf32> to vector<64x128xf32>
    %526 = arith.mulf %488, %525 : vector<64x128xf32>
    %cst_245 = arith.constant dense<0.000000e+00> : vector<64xf32>
    %527 = vector.multi_reduction <add>, %526, %cst_245 [1] : vector<64x128xf32> to vector<64xf32>
    %528 = vector.shape_cast %527 : vector<64xf32> to vector<64x1xf32>
    %cst_246 = arith.constant dense<0.000000e+00> : vector<1xf32>
    %529 = vector.multi_reduction <add>, %528, %cst_246 [0] : vector<64x1xf32> to vector<1xf32>
    %530 = vector.shape_cast %529 : vector<1xf32> to vector<1x1xf32>
    %c6_247 = arith.constant 6 : index
    %c0_248 = arith.constant 0 : index
    %c0_249 = arith.constant 0 : index
    %531 = vector.load %arg6[%c6_247, %c0_248, %c0_249] : memref<8x64x128xf32, #tpu.memory_space<vmem>>, vector<1x64x128xf32>
    %532 = vector.shape_cast %531 : vector<1x64x128xf32> to vector<64x128xf32>
    %533 = arith.mulf %488, %532 : vector<64x128xf32>
    %cst_250 = arith.constant dense<0.000000e+00> : vector<64xf32>
    %534 = vector.multi_reduction <add>, %533, %cst_250 [1] : vector<64x128xf32> to vector<64xf32>
    %535 = vector.shape_cast %534 : vector<64xf32> to vector<64x1xf32>
    %cst_251 = arith.constant dense<0.000000e+00> : vector<1xf32>
    %536 = vector.multi_reduction <add>, %535, %cst_251 [0] : vector<64x1xf32> to vector<1xf32>
    %537 = vector.shape_cast %536 : vector<1xf32> to vector<1x1xf32>
    %c7_252 = arith.constant 7 : index
    %c0_253 = arith.constant 0 : index
    %c0_254 = arith.constant 0 : index
    %538 = vector.load %arg6[%c7_252, %c0_253, %c0_254] : memref<8x64x128xf32, #tpu.memory_space<vmem>>, vector<1x64x128xf32>
    %539 = vector.shape_cast %538 : vector<1x64x128xf32> to vector<64x128xf32>
    %540 = arith.mulf %488, %539 : vector<64x128xf32>
    %cst_255 = arith.constant dense<0.000000e+00> : vector<64xf32>
    %541 = vector.multi_reduction <add>, %540, %cst_255 [1] : vector<64x128xf32> to vector<64xf32>
    %542 = vector.shape_cast %541 : vector<64xf32> to vector<64x1xf32>
    %cst_256 = arith.constant dense<0.000000e+00> : vector<1xf32>
    %543 = vector.multi_reduction <add>, %542, %cst_256 [0] : vector<64x1xf32> to vector<1xf32>
    %544 = vector.shape_cast %543 : vector<1xf32> to vector<1x1xf32>
    %545 = tpu.concatenate %495, %502, %509, %516, %523, %530, %537, %544 in 1 : vector<1x1xf32>, vector<1x1xf32>, vector<1x1xf32>, vector<1x1xf32>, vector<1x1xf32>, vector<1x1xf32>, vector<1x1xf32>, vector<1x1xf32> -> vector<1x8xf32>
    %546 = tpu.concatenate %480, %545 in 0 : vector<1x8xf32>, vector<1x8xf32> -> vector<2x8xf32>
    %c0_257 = arith.constant 0 : index
    %c0_258 = arith.constant 0 : index
    %547 = vector.load %arg7[%c0_257, %c0_258] : memref<1x8xf32, #tpu.memory_space<vmem>>, vector<1x8xf32>
    %548 = vector.broadcast %547 : vector<1x8xf32> to vector<2x8xf32>
    %549 = arith.addf %546, %548 : vector<2x8xf32>
    %c0_259 = arith.constant 0 : index
    %c0_260 = arith.constant 0 : index
    %550 = vector.load %arg9[%c0_259, %c0_260] : memref<2x8xf32, #tpu.memory_space<vmem>>, vector<2x8xf32>
    tpu.vector_store %arg9[%c0_259, %c0_260], %549 {strides = array<i32>} : memref<2x8xf32, #tpu.memory_space<vmem>>, vector<2x8xf32>,
    return
  }
  func.func @transform_0(%arg0: i32) -> (i32, i32, i32) {
    %c0_i32 = arith.constant 0 : i32
    %c0_i32_0 = arith.constant 0 : i32
    %c0_i32_1 = arith.constant 0 : i32
    %c0_i32_2 = arith.constant 0 : i32
    return %c0_i32, %c0_i32_0, %c0_i32_1 : i32, i32, i32
  }
  func.func @transform_1(%arg0: i32) -> (i32, i32) {
    %c0_i32 = arith.constant 0 : i32
    %c0_i32_0 = arith.constant 0 : i32
    %c0_i32_1 = arith.constant 0 : i32
    return %c0_i32, %c0_i32_0 : i32, i32
  }
  func.func @transform_2(%arg0: i32) -> i32 {
    %c0_i32 = arith.constant 0 : i32
    %c0_i32_0 = arith.constant 0 : i32
    return %c0_i32 : i32
  }
  func.func @transform_3(%arg0: i32) -> i32 {
    %c0_i32 = arith.constant 0 : i32
    %c0_i32_0 = arith.constant 0 : i32
    return %c0_i32 : i32
  }
  func.func @transform_4(%arg0: i32) -> i32 {
    %c0_i32 = arith.constant 0 : i32
    %c0_i32_0 = arith.constant 0 : i32
    return %c0_i32 : i32
  }
  func.func @transform_5(%arg0: i32) -> (i32, i32, i32) {
    %c0_i32 = arith.constant 0 : i32
    %c0_i32_0 = arith.constant 0 : i32
    %c0_i32_1 = arith.constant 0 : i32
    %c0_i32_2 = arith.constant 0 : i32
    return %c0_i32, %c0_i32_0, %c0_i32_1 : i32, i32, i32
  }
  func.func @transform_6(%arg0: i32) -> (i32, i32) {
    %c0_i32 = arith.constant 0 : i32
    %c0_i32_0 = arith.constant 0 : i32
    %c0_i32_1 = arith.constant 0 : i32
    return %c0_i32, %c0_i32_0 : i32, i32
  }
  func.func @transform_7(%arg0: i32) -> (i32, i32, i32) {
    %c0_i32 = arith.constant 0 : i32
    %c0_i32_0 = arith.constant 0 : i32
    %c0_i32_1 = arith.constant 0 : i32
    %c0_i32_2 = arith.constant 0 : i32
    return %c0_i32, %c0_i32_0, %c0_i32_1 : i32, i32, i32
  }
  func.func @transform_8(%arg0: i32) -> (i32, i32) {
    %c0_i32 = arith.constant 0 : i32
    %c0_i32_0 = arith.constant 0 : i32
    %c0_i32_1 = arith.constant 0 : i32
    return %c0_i32, %c0_i32_0 : i32, i32
  }
}

</mosaic_0001>

<llo_original>
// kernel: tpu_custom_call.1
$region0: #{tpu_custom_call.1}
  #allocation0 [shape = 'u32[]', space=smem, size = 0x4, offset = 0x4, fixed_abs, tag = 'smem constant byte address 0x4 - core index']
  #allocation1 [shape = 'u32[144,128]{1,0:T(1,128)}', space=vmem, size = 0x12000, scoped, tag = 'internal scratch']
  #allocation2 [shape = 'f32[1]{0:T(128)S(6)}', space=smem, size = 0x200, scoped, tag = 'scoped memory for tpu_custom_call.1']
  %s0 = inlined_call_operand.hbm [shape: f32[2,64,128], index: 0, kind: input, shape index: {}]
  %s1 = inlined_call_operand.vmem [shape: f32[2,16], index: 1, kind: input, shape index: {}]
  %s2 = inlined_call_operand.vmem [shape: f32[16], index: 2, kind: input, shape index: {}]
  %s3 = inlined_call_operand.vmem [shape: f32[16], index: 3, kind: input, shape index: {}]
  %s4 = inlined_call_operand.<no memory space> [shape: f32[1], index: 4, kind: input, shape index: {}]
  %s5 = inlined_call_operand.hbm [shape: f32[8,64,128], index: 5, kind: input, shape index: {}]
  %s6 = inlined_call_operand.vmem [shape: f32[1,8], index: 6, kind: input, shape index: {}]
  %s7 = inlined_call_operand.hbm [shape: f32[2,64,128], index: 7, kind: output, shape index: {0}]
  %s8 = inlined_call_operand.hbm [shape: f32[2,8], index: 8, kind: output, shape index: {1}]
  %9 = xla_tuple %s7, %s8
  %s10 = sld [smem:[#allocation0]]
  $region66: #{tpu_custom_call.1} parent=0
    _
  %s12 = ssub.s32 1, %s10
  %s13 = scalar_select 0, %s12, %s10
  %14 = sst [smem:[#allocation2]] %s4
  $region1: #{tpu_custom_call.1} parent=0
    #allocation3 [shape = 'u8[65536]{0}', space=vmem, size = 0x10000, scoped, tag = 'input window, operand 0, single buffered']
    #allocation4 [shape = 's32[1]{0}', space=sflag, size = 0x4, scoped, tag = 'scoped memory for tpu_custom_call.1']
    #allocation5 [shape = 's32[1]{0}', space=sflag, size = 0x4, scoped, tag = 'scoped memory for tpu_custom_call.1']
    #allocation6 [shape = 's32[1]{0}', space=sflag, size = 0x4, scoped, tag = 'scoped memory for tpu_custom_call.1']
    #allocation7 [shape = 'u8[1024]{0}', space=smem, size = 0x400, scoped, tag = 'input window, operand 1, single buffered']
    #allocation8 [shape = 'u8[512]{0}', space=smem, size = 0x200, scoped, tag = 'input window, operand 2, single buffered']
    #allocation9 [shape = 's32[1]{0}', space=sflag, size = 0x4, scoped, tag = 'scoped memory for tpu_custom_call.1']
    #allocation10 [shape = 'u8[512]{0}', space=smem, size = 0x200, scoped, tag = 'input window, operand 3, single buffered']
    #allocation11 [shape = 'u8[262144]{0}', space=vmem, size = 0x40000, scoped, tag = 'input window, operand 5, single buffered']
    #allocation12 [shape = 's32[1]{0}', space=sflag, size = 0x4, scoped, tag = 'scoped memory for tpu_custom_call.1']
    #allocation13 [shape = 'u8[65536]{0}', space=vmem, size = 0x10000, scoped, tag = 'output window, operand 0, single buffered']
    #allocation14 [shape = 'u8[1024]{0}', space=vmem, size = 0x400, scoped, tag = 'output window, operand 1, single buffered']
    #allocation15 [shape = 's32[1]{0}', space=sflag, size = 0x4, scoped, tag = 'scoped memory for tpu_custom_call.1']
    %15 = vsyncpa [#allocation4], 0
    %16 = vsyncpa [#allocation6], 0
    %17 = vsyncpa [#allocation9], 0
    %18 = vsyncpa [#allocation12], 0
    %19 = vsyncpa [#allocation5], 0
    %20 = vsyncpa [#allocation15], 0
    // Predicated region
    $region2: #{tpu_custom_call.1} parent=1 // pred_check
      _
    $region3: #{tpu_custom_call.1} parent=1 // pred_check_branch
      %22 = sbr.rel (0) target = $region5
    $region4: #{tpu_custom_call.1} parent=1 // pred_region
      %s24 = ssub.s32 2048, 2048
      %25 = vsyncadd [#allocation4], %s24
      %s26 = sshll.u32 [#allocation3], 4
      %s27 = int_to_ptr.vmem [resolvable:$true] %s26
      %32 = dma.hbm_to_vmem [thread:$0]  %s0, 2048, %s27, [#allocation4], 128, 128, 8
    $region5: #{tpu_custom_call.1} parent=1 // pred_fallthru
      _
    // Predicated region
    $region6: #{tpu_custom_call.1} parent=1 // pred_check
      _
    $region7: #{tpu_custom_call.1} parent=1 // pred_check_branch
      %34 = sbr.rel (0) target = $region9
    $region8: #{tpu_custom_call.1} parent=1 // pred_region
      %s36 = ssub.s32 32, 32
      %37 = vsyncadd [#allocation6], %s36
      %s39 = sshll.u32 %s1, 4
      %s40 = int_to_ptr.vmem [resolvable:$true] %s39
      %42 = dma.vmem_to_smem %s40, 32, [#allocation7], [#allocation6]
    $region9: #{tpu_custom_call.1} parent=1 // pred_fallthru
      _
    // Predicated region
    $region10: #{tpu_custom_call.1} parent=1 // pred_check
      _
    $region11: #{tpu_custom_call.1} parent=1 // pred_check_branch
      %44 = sbr.rel (0) target = $region13
    $region12: #{tpu_custom_call.1} parent=1 // pred_region
      %s46 = ssub.s32 16, 16
      %47 = vsyncadd [#allocation9], %s46
      %s49 = sshll.u32 %s2, 4
      %s50 = int_to_ptr.vmem [resolvable:$true] %s49
      %52 = dma.vmem_to_smem %s50, 16, [#allocation8], [#allocation9]
    $region13: #{tpu_custom_call.1} parent=1 // pred_fallthru
      _
    // Predicated region
    $region14: #{tpu_custom_call.1} parent=1 // pred_check
      _
    $region15: #{tpu_custom_call.1} parent=1 // pred_check_branch
      %54 = sbr.rel (0) target = $region17
    $region16: #{tpu_custom_call.1} parent=1 // pred_region
      %s56 = ssub.s32 16, 16
      %57 = vsyncadd [#allocation9], %s56
      %s59 = sshll.u32 %s3, 4
      %s60 = int_to_ptr.vmem [resolvable:$true] %s59
      %62 = dma.vmem_to_smem %s60, 16, [#allocation10], [#allocation9]
    $region17: #{tpu_custom_call.1} parent=1 // pred_fallthru
      _
    // Predicated region
    $region18: #{tpu_custom_call.1} parent=1 // pred_check
      _
    $region19: #{tpu_custom_call.1} parent=1 // pred_check_branch
      %64 = sbr.rel (0) target = $region21
    $region20: #{tpu_custom_call.1} parent=1 // pred_region
      _
    $region21: #{tpu_custom_call.1} parent=1 // pred_fallthru
      _
    // Predicated region
    $region22: #{tpu_custom_call.1} parent=1 // pred_check
      _
    $region23: #{tpu_custom_call.1} parent=1 // pred_check_branch
      %66 = sbr.rel (0) target = $region25
    $region24: #{tpu_custom_call.1} parent=1 // pred_region
      %s68 = ssub.s32 8192, 8192
      %69 = vsyncadd [#allocation12], %s68
      %s70 = sshll.u32 [#allocation11], 4
      %s71 = int_to_ptr.vmem [resolvable:$true] %s70
      %76 = dma.hbm_to_vmem [thread:$0]  %s5, 8192, %s71, [#allocation12], 128, 128, 8
    $region25: #{tpu_custom_call.1} parent=1 // pred_fallthru
      _
    // Predicated region
    $region26: #{tpu_custom_call.1} parent=1 // pred_check
      _
    $region27: #{tpu_custom_call.1} parent=1 // pred_check_branch
      %78 = sbr.rel (0) target = $region29
    $region28: #{tpu_custom_call.1} parent=1 // pred_region
      _
    $region29: #{tpu_custom_call.1} parent=1 // pred_fallthru
      _
    // Predicated region
    $region30: #{tpu_custom_call.1} parent=1 // pred_check
      _
    $region31: #{tpu_custom_call.1} parent=1 // pred_check_branch
      %80 = sbr.rel (0) target = $region33
    $region32: #{tpu_custom_call.1} parent=1 // pred_region
      %81 = dma.done [#allocation4], 2048
    $region33: #{tpu_custom_call.1} parent=1 // pred_fallthru
      _
    // Predicated region
    $region34: #{tpu_custom_call.1} parent=1 // pred_check
      _
    $region35: #{tpu_custom_call.1} parent=1 // pred_check_branch
      %83 = sbr.rel (0) target = $region37
    $region36: #{tpu_custom_call.1} parent=1 // pred_region
      %84 = dma.done [#allocation6], 32
    $region37: #{tpu_custom_call.1} parent=1 // pred_fallthru
      _
    // Predicated region
    $region38: #{tpu_custom_call.1} parent=1 // pred_check
      _
    $region39: #{tpu_custom_call.1} parent=1 // pred_check_branch
      %86 = sbr.rel (0) target = $region41
    $region40: #{tpu_custom_call.1} parent=1 // pred_region
      %87 = dma.done [#allocation9], 16
    $region41: #{tpu_custom_call.1} parent=1 // pred_fallthru
      _
    // Predicated region
    $region42: #{tpu_custom_call.1} parent=1 // pred_check
      _
    $region43: #{tpu_custom_call.1} parent=1 // pred_check_branch
      %89 = sbr.rel (0) target = $region45
    $region44: #{tpu_custom_call.1} parent=1 // pred_region
      %90 = dma.done [#allocation9], 16
    $region45: #{tpu_custom_call.1} parent=1 // pred_fallthru
      _
    // Predicated region
    $region46: #{tpu_custom_call.1} parent=1 // pred_check
      _
    $region47: #{tpu_custom_call.1} parent=1 // pred_check_branch
      %92 = sbr.rel (0) target = $region49
    $region48: #{tpu_custom_call.1} parent=1 // pred_region
      %93 = dma.done [#allocation12], 8192
    $region49: #{tpu_custom_call.1} parent=1 // pred_fallthru
      _
    %94 = sfence
    %v95 = vld [vmem:[#allocation3] sm:$0xff]
    %v96 = vld [vmem:[#allocation3 + $0x8] sm:$0xff]
    %v97 = vld [vmem:[#allocation3 + $0x10] sm:$0xff]
    %v98 = vld [vmem:[#allocation3 + $0x18] sm:$0xff]
    %v99 = vld [vmem:[#allocation3 + $0x20] sm:$0xff]
    %v100 = vld [vmem:[#allocation3 + $0x28] sm:$0xff]
    %v101 = vld [vmem:[#allocation3 + $0x30] sm:$0xff]
    %v102 = vld [vmem:[#allocation3 + $0x38] sm:$0xff]
    %v103 = vlog2.pop %v95
    %v104 = vmul.f32 %v103, 0.6931472
    %v105 = vlog2.pop %v96
    %v106 = vmul.f32 %v105, 0.6931472
    %v107 = vlog2.pop %v97
    %v108 = vmul.f32 %v107, 0.6931472
    %v109 = vlog2.pop %v98
    %v110 = vmul.f32 %v109, 0.6931472
    %v111 = vlog2.pop %v99
    %v112 = vmul.f32 %v111, 0.6931472
    %v113 = vlog2.pop %v100
    %v114 = vmul.f32 %v113, 0.6931472
    %v115 = vlog2.pop %v101
    %v116 = vmul.f32 %v115, 0.6931472
    %v117 = vlog2.pop %v102
    %v118 = vmul.f32 %v117, 0.6931472
    %s119 = sld [smem:[#allocation8]]
    %v120 = vstv %s119
    %v121 = vmul.f32 %v104, %v120
    %v122 = vmul.f32 %v106, %v120
    %v123 = vmul.f32 %v108, %v120
    %v124 = vmul.f32 %v110, %v120
    %v125 = vmul.f32 %v112, %v120
    %v126 = vmul.f32 %v114, %v120
    %v127 = vmul.f32 %v116, %v120
    %v128 = vmul.f32 %v118, %v120
    %s129 = sld [smem:[#allocation7]]
    %v130 = vstv %s129
    %v131 = vadd.f32 %v121, %v130
    %v132 = vadd.f32 %v122, %v130
    %v133 = vadd.f32 %v123, %v130
    %v134 = vadd.f32 %v124, %v130
    %v135 = vadd.f32 %v125, %v130
    %v136 = vadd.f32 %v126, %v130
    %v137 = vadd.f32 %v127, %v130
    %v138 = vadd.f32 %v128, %v130
    %v139 = vmax.f32 %v131, 0.0
    %v140 = vmax.f32 %v132, 0.0
    %v141 = vmax.f32 %v133, 0.0
    %v142 = vmax.f32 %v134, 0.0
    %v143 = vmax.f32 %v135, 0.0
    %v144 = vmax.f32 %v136, 0.0
    %v145 = vmax.f32 %v137, 0.0
    %v146 = vmax.f32 %v138, 0.0
    %s147 = sld [smem:[#allocation10]]
    %v148 = vstv %s147
    %v149 = vmul.f32 %v139, %v148
    %v150 = vmul.f32 %v140, %v148
    %v151 = vmul.f32 %v141, %v148
    %v152 = vmul.f32 %v142, %v148
    %v153 = vmul.f32 %v143, %v148
    %v154 = vmul.f32 %v144, %v148
    %v155 = vmul.f32 %v145, %v148
    %v156 = vmul.f32 %v146, %v148
    %v157 = vadd.f32 %v149, 0.0
    %v158 = vadd.f32 %v150, 0.0
    %v159 = vadd.f32 %v151, 0.0
    %v160 = vadd.f32 %v152, 0.0
    %v161 = vadd.f32 %v153, 0.0
    %v162 = vadd.f32 %v154, 0.0
    %v163 = vadd.f32 %v155, 0.0
    %v164 = vadd.f32 %v156, 0.0
    %s165 = sld [smem:[#allocation8 + $0x1]]
    %v166 = vstv %s165
    %v167 = vmul.f32 %v104, %v166
    %v168 = vmul.f32 %v106, %v166
    %v169 = vmul.f32 %v108, %v166
    %v170 = vmul.f32 %v110, %v166
    %v171 = vmul.f32 %v112, %v166
    %v172 = vmul.f32 %v114, %v166
    %v173 = vmul.f32 %v116, %v166
    %v174 = vmul.f32 %v118, %v166
    %s175 = sld [smem:[#allocation7 + $0x1]]
    %v176 = vstv %s175
    %v177 = vadd.f32 %v167, %v176
    %v178 = vadd.f32 %v168, %v176
    %v179 = vadd.f32 %v169, %v176
    %v180 = vadd.f32 %v170, %v176
    %v181 = vadd.f32 %v171, %v176
    %v182 = vadd.f32 %v172, %v176
    %v183 = vadd.f32 %v173, %v176
    %v184 = vadd.f32 %v174, %v176
    %v185 = vmax.f32 %v177, 0.0
    %v186 = vmax.f32 %v178, 0.0
    %v187 = vmax.f32 %v179, 0.0
    %v188 = vmax.f32 %v180, 0.0
    %v189 = vmax.f32 %v181, 0.0
    %v190 = vmax.f32 %v182, 0.0
    %v191 = vmax.f32 %v183, 0.0
    %v192 = vmax.f32 %v184, 0.0
    %s193 = sld [smem:[#allocation10 + $0x1]]
    %v194 = vstv %s193
    %v195 = vmul.f32 %v185, %v194
    %v196 = vmul.f32 %v186, %v194
    %v197 = vmul.f32 %v187, %v194
    %v198 = vmul.f32 %v188, %v194
    %v199 = vmul.f32 %v189, %v194
    %v200 = vmul.f32 %v190, %v194
    %v201 = vmul.f32 %v191, %v194
    %v202 = vmul.f32 %v192, %v194
    %v203 = vadd.f32 %v157, %v195
    %v204 = vadd.f32 %v158, %v196
    %v205 = vadd.f32 %v159, %v197
    %v206 = vadd.f32 %v160, %v198
    %v207 = vadd.f32 %v161, %v199
    %v208 = vadd.f32 %v162, %v200
    %v209 = vadd.f32 %v163, %v201
    %v210 = vadd.f32 %v164, %v202
    %s211 = sld [smem:[#allocation8 + $0x2]]
    %v212 = vstv %s211
    %v213 = vmul.f32 %v104, %v212
    %v214 = vmul.f32 %v106, %v212
    %v215 = vmul.f32 %v108, %v212
    %v216 = vmul.f32 %v110, %v212
    %v217 = vmul.f32 %v112, %v212
    %v218 = vmul.f32 %v114, %v212
    %v219 = vmul.f32 %v116, %v212
    %v220 = vmul.f32 %v118, %v212
    %s221 = sld [smem:[#allocation7 + $0x2]]
    %v222 = vstv %s221
    %v223 = vadd.f32 %v213, %v222
    %v224 = vadd.f32 %v214, %v222
    %v225 = vadd.f32 %v215, %v222
    %v226 = vadd.f32 %v216, %v222
    %v227 = vadd.f32 %v217, %v222
    %v228 = vadd.f32 %v218, %v222
    %v229 = vadd.f32 %v219, %v222
    %v230 = vadd.f32 %v220, %v222
    %v231 = vmax.f32 %v223, 0.0
    %v232 = vmax.f32 %v224, 0.0
    %v233 = vmax.f32 %v225, 0.0
    %v234 = vmax.f32 %v226, 0.0
    %v235 = vmax.f32 %v227, 0.0
    %v236 = vmax.f32 %v228, 0.0
    %v237 = vmax.f32 %v229, 0.0
    %v238 = vmax.f32 %v230, 0.0
    %s239 = sld [smem:[#allocation10 + $0x2]]
    %v240 = vstv %s239
    %v241 = vmul.f32 %v231, %v240
    %v242 = vmul.f32 %v232, %v240
    %v243 = vmul.f32 %v233, %v240
    %v244 = vmul.f32 %v234, %v240
    %v245 = vmul.f32 %v235, %v240
    %v246 = vmul.f32 %v236, %v240
    %v247 = vmul.f32 %v237, %v240
    %v248 = vmul.f32 %v238, %v240
    %v249 = vadd.f32 %v203, %v241
    %v250 = vadd.f32 %v204, %v242
    %v251 = vadd.f32 %v205, %v243
    %v252 = vadd.f32 %v206, %v244
    %v253 = vadd.f32 %v207, %v245
    %v254 = vadd.f32 %v208, %v246
    %v255 = vadd.f32 %v209, %v247
    %v256 = vadd.f32 %v210, %v248
    %s257 = sld [smem:[#allocation8 + $0x3]]
    %v258 = vstv %s257
    %v259 = vmul.f32 %v104, %v258
    %v260 = vmul.f32 %v106, %v258
    %v261 = vmul.f32 %v108, %v258
    %v262 = vmul.f32 %v110, %v258
    %v263 = vmul.f32 %v112, %v258
    %v264 = vmul.f32 %v114, %v258
    %v265 = vmul.f32 %v116, %v258
    %v266 = vmul.f32 %v118, %v258
    %s267 = sld [smem:[#allocation7 + $0x3]]
    %v268 = vstv %s267
    %v269 = vadd.f32 %v259, %v268
    %v270 = vadd.f32 %v260, %v268
    %v271 = vadd.f32 %v261, %v268
    %v272 = vadd.f32 %v262, %v268
    %v273 = vadd.f32 %v263, %v268
    %v274 = vadd.f32 %v264, %v268
    %v275 = vadd.f32 %v265, %v268
    %v276 = vadd.f32 %v266, %v268
    %v277 = vmax.f32 %v269, 0.0
    %v278 = vmax.f32 %v270, 0.0
    %v279 = vmax.f32 %v271, 0.0
    %v280 = vmax.f32 %v272, 0.0
    %v281 = vmax.f32 %v273, 0.0
    %v282 = vmax.f32 %v274, 0.0
    %v283 = vmax.f32 %v275, 0.0
    %v284 = vmax.f32 %v276, 0.0
    %s285 = sld [smem:[#allocation10 + $0x3]]
    %v286 = vstv %s285
    %v287 = vmul.f32 %v277, %v286
    %v288 = vmul.f32 %v278, %v286
    %v289 = vmul.f32 %v279, %v286
    %v290 = vmul.f32 %v280, %v286
    %v291 = vmul.f32 %v281, %v286
    %v292 = vmul.f32 %v282, %v286
    %v293 = vmul.f32 %v283, %v286
    %v294 = vmul.f32 %v284, %v286
    %v295 = vadd.f32 %v249, %v287
    %v296 = vadd.f32 %v250, %v288
    %v297 = vadd.f32 %v251, %v289
    %v298 = vadd.f32 %v252, %v290
    %v299 = vadd.f32 %v253, %v291
    %v300 = vadd.f32 %v254, %v292
    %v301 = vadd.f32 %v255, %v293
    %v302 = vadd.f32 %v256, %v294
    %s303 = sld [smem:[#allocation8 + $0x4]]
    %v304 = vstv %s303
    %v305 = vmul.f32 %v104, %v304
    %v306 = vmul.f32 %v106, %v304
    %v307 = vmul.f32 %v108, %v304
    %v308 = vmul.f32 %v110, %v304
    %v309 = vmul.f32 %v112, %v304
    %v310 = vmul.f32 %v114, %v304
    %v311 = vmul.f32 %v116, %v304
    %v312 = vmul.f32 %v118, %v304
    %s313 = sld [smem:[#allocation7 + $0x4]]
    %v314 = vstv %s313
    %v315 = vadd.f32 %v305, %v314
    %v316 = vadd.f32 %v306, %v314
    %v317 = vadd.f32 %v307, %v314
    %v318 = vadd.f32 %v308, %v314
    %v319 = vadd.f32 %v309, %v314
    %v320 = vadd.f32 %v310, %v314
    %v321 = vadd.f32 %v311, %v314
    %v322 = vadd.f32 %v312, %v314
    %v323 = vmax.f32 %v315, 0.0
    %v324 = vmax.f32 %v316, 0.0
    %v325 = vmax.f32 %v317, 0.0
    %v326 = vmax.f32 %v318, 0.0
    %v327 = vmax.f32 %v319, 0.0
    %v328 = vmax.f32 %v320, 0.0
    %v329 = vmax.f32 %v321, 0.0
    %v330 = vmax.f32 %v322, 0.0
    %s331 = sld [smem:[#allocation10 + $0x4]]
    %v332 = vstv %s331
    %v333 = vmul.f32 %v323, %v332
    %v334 = vmul.f32 %v324, %v332
    %v335 = vmul.f32 %v325, %v332
    %v336 = vmul.f32 %v326, %v332
    %v337 = vmul.f32 %v327, %v332
    %v338 = vmul.f32 %v328, %v332
    %v339 = vmul.f32 %v329, %v332
    %v340 = vmul.f32 %v330, %v332
    %v341 = vadd.f32 %v295, %v333
    %v342 = vadd.f32 %v296, %v334
    %v343 = vadd.f32 %v297, %v335
    %v344 = vadd.f32 %v298, %v336
    %v345 = vadd.f32 %v299, %v337
    %v346 = vadd.f32 %v300, %v338
    %v347 = vadd.f32 %v301, %v339
    %v348 = vadd.f32 %v302, %v340
    %s349 = sld [smem:[#allocation8 + $0x5]]
    %v350 = vstv %s349
    %v351 = vmul.f32 %v104, %v350
    %v352 = vmul.f32 %v106, %v350
    %v353 = vmul.f32 %v108, %v350
    %v354 = vmul.f32 %v110, %v350
    %v355 = vmul.f32 %v112, %v350
    %v356 = vmul.f32 %v114, %v350
    %v357 = vmul.f32 %v116, %v350
    %v358 = vmul.f32 %v118, %v350
    %s359 = sld [smem:[#allocation7 + $0x5]]
    %v360 = vstv %s359
    %v361 = vadd.f32 %v351, %v360
    %v362 = vadd.f32 %v352, %v360
    %v363 = vadd.f32 %v353, %v360
    %v364 = vadd.f32 %v354, %v360
    %v365 = vadd.f32 %v355, %v360
    %v366 = vadd.f32 %v356, %v360
    %v367 = vadd.f32 %v357, %v360
    %v368 = vadd.f32 %v358, %v360
    %v369 = vmax.f32 %v361, 0.0
    %v370 = vmax.f32 %v362, 0.0
    %v371 = vmax.f32 %v363, 0.0
    %v372 = vmax.f32 %v364, 0.0
    %v373 = vmax.f32 %v365, 0.0
    %v374 = vmax.f32 %v366, 0.0
    %v375 = vmax.f32 %v367, 0.0
    %v376 = vmax.f32 %v368, 0.0
    %s377 = sld [smem:[#allocation10 + $0x5]]
    %v378 = vstv %s377
    %v379 = vmul.f32 %v369, %v378
    %v380 = vmul.f32 %v370, %v378
    %v381 = vmul.f32 %v371, %v378
    %v382 = vmul.f32 %v372, %v378
    %v383 = vmul.f32 %v373, %v378
    %v384 = vmul.f32 %v374, %v378
    %v385 = vmul.f32 %v375, %v378
    %v386 = vmul.f32 %v376, %v378
    %v387 = vadd.f32 %v341, %v379
    %v388 = vadd.f32 %v342, %v380
    %v389 = vadd.f32 %v343, %v381
    %v390 = vadd.f32 %v344, %v382
    %v391 = vadd.f32 %v345, %v383
    %v392 = vadd.f32 %v346, %v384
    %v393 = vadd.f32 %v347, %v385
    %v394 = vadd.f32 %v348, %v386
    %s395 = sld [smem:[#allocation8 + $0x6]]
    %v396 = vstv %s395
    %v397 = vmul.f32 %v104, %v396
    %v398 = vmul.f32 %v106, %v396
    %v399 = vmul.f32 %v108, %v396
    %v400 = vmul.f32 %v110, %v396
    %v401 = vmul.f32 %v112, %v396
    %v402 = vmul.f32 %v114, %v396
    %v403 = vmul.f32 %v116, %v396
    %v404 = vmul.f32 %v118, %v396
    %s405 = sld [smem:[#allocation7 + $0x6]]
    %v406 = vstv %s405
    %v407 = vadd.f32 %v397, %v406
    %v408 = vadd.f32 %v398, %v406
    %v409 = vadd.f32 %v399, %v406
    %v410 = vadd.f32 %v400, %v406
    %v411 = vadd.f32 %v401, %v406
    %v412 = vadd.f32 %v402, %v406
    %v413 = vadd.f32 %v403, %v406
    %v414 = vadd.f32 %v404, %v406
    %v415 = vmax.f32 %v407, 0.0
    %v416 = vmax.f32 %v408, 0.0
    %v417 = vmax.f32 %v409, 0.0
    %v418 = vmax.f32 %v410, 0.0
    %v419 = vmax.f32 %v411, 0.0
    %v420 = vmax.f32 %v412, 0.0
    %v421 = vmax.f32 %v413, 0.0
    %v422 = vmax.f32 %v414, 0.0
    %s423 = sld [smem:[#allocation10 + $0x6]]
    %v424 = vstv %s423
    %v425 = vmul.f32 %v415, %v424
    %v426 = vmul.f32 %v416, %v424
    %v427 = vmul.f32 %v417, %v424
    %v428 = vmul.f32 %v418, %v424
    %v429 = vmul.f32 %v419, %v424
    %v430 = vmul.f32 %v420, %v424
    %v431 = vmul.f32 %v421, %v424
    %v432 = vmul.f32 %v422, %v424
    %v433 = vadd.f32 %v387, %v425
    %v434 = vadd.f32 %v388, %v426
    %v435 = vadd.f32 %v389, %v427
    %v436 = vadd.f32 %v390, %v428
    %v437 = vadd.f32 %v391, %v429
    %v438 = vadd.f32 %v392, %v430
    %v439 = vadd.f32 %v393, %v431
    %v440 = vadd.f32 %v394, %v432
    %s441 = sld [smem:[#allocation8 + $0x7]]
    %v442 = vstv %s441
    %v443 = vmul.f32 %v104, %v442
    %v444 = vmul.f32 %v106, %v442
    %v445 = vmul.f32 %v108, %v442
    %v446 = vmul.f32 %v110, %v442
    %v447 = vmul.f32 %v112, %v442
    %v448 = vmul.f32 %v114, %v442
    %v449 = vmul.f32 %v116, %v442
    %v450 = vmul.f32 %v118, %v442
    %s451 = sld [smem:[#allocation7 + $0x7]]
    %v452 = vstv %s451
    %v453 = vadd.f32 %v443, %v452
    %v454 = vadd.f32 %v444, %v452
    %v455 = vadd.f32 %v445, %v452
    %v456 = vadd.f32 %v446, %v452
    %v457 = vadd.f32 %v447, %v452
    %v458 = vadd.f32 %v448, %v452
    %v459 = vadd.f32 %v449, %v452
    %v460 = vadd.f32 %v450, %v452
    %v461 = vmax.f32 %v453, 0.0
    %v462 = vmax.f32 %v454, 0.0
    %v463 = vmax.f32 %v455, 0.0
    %v464 = vmax.f32 %v456, 0.0
    %v465 = vmax.f32 %v457, 0.0
    %v466 = vmax.f32 %v458, 0.0
    %v467 = vmax.f32 %v459, 0.0
    %v468 = vmax.f32 %v460, 0.0
    %s469 = sld [smem:[#allocation10 + $0x7]]
    %v470 = vstv %s469
    %v471 = vmul.f32 %v461, %v470
    %v472 = vmul.f32 %v462, %v470
    %v473 = vmul.f32 %v463, %v470
    %v474 = vmul.f32 %v464, %v470
    %v475 = vmul.f32 %v465, %v470
    %v476 = vmul.f32 %v466, %v470
    %v477 = vmul.f32 %v467, %v470
    %v478 = vmul.f32 %v468, %v470
    %v479 = vadd.f32 %v433, %v471
    %v480 = vadd.f32 %v434, %v472
    %v481 = vadd.f32 %v435, %v473
    %v482 = vadd.f32 %v436, %v474
    %v483 = vadd.f32 %v437, %v475
    %v484 = vadd.f32 %v438, %v476
    %v485 = vadd.f32 %v439, %v477
    %v486 = vadd.f32 %v440, %v478
    %s487 = sld [smem:[#allocation8 + $0x8]]
    %v488 = vstv %s487
    %v489 = vmul.f32 %v104, %v488
    %v490 = vmul.f32 %v106, %v488
    %v491 = vmul.f32 %v108, %v488
    %v492 = vmul.f32 %v110, %v488
    %v493 = vmul.f32 %v112, %v488
    %v494 = vmul.f32 %v114, %v488
    %v495 = vmul.f32 %v116, %v488
    %v496 = vmul.f32 %v118, %v488
    %s497 = sld [smem:[#allocation7 + $0x8]]
    %v498 = vstv %s497
    %v499 = vadd.f32 %v489, %v498
    %v500 = vadd.f32 %v490, %v498
    %v501 = vadd.f32 %v491, %v498
    %v502 = vadd.f32 %v492, %v498
    %v503 = vadd.f32 %v493, %v498
    %v504 = vadd.f32 %v494, %v498
    %v505 = vadd.f32 %v495, %v498
    %v506 = vadd.f32 %v496, %v498
    %v507 = vmax.f32 %v499, 0.0
    %v508 = vmax.f32 %v500, 0.0
    %v509 = vmax.f32 %v501, 0.0
    %v510 = vmax.f32 %v502, 0.0
    %v511 = vmax.f32 %v503, 0.0
    %v512 = vmax.f32 %v504, 0.0
    %v513 = vmax.f32 %v505, 0.0
    %v514 = vmax.f32 %v506, 0.0
    %s515 = sld [smem:[#allocation10 + $0x8]]
    %v516 = vstv %s515
    %v517 = vmul.f32 %v507, %v516
    %v518 = vmul.f32 %v508, %v516
    %v519 = vmul.f32 %v509, %v516
    %v520 = vmul.f32 %v510, %v516
    %v521 = vmul.f32 %v511, %v516
    %v522 = vmul.f32 %v512, %v516
    %v523 = vmul.f32 %v513, %v516
    %v524 = vmul.f32 %v514, %v516
    %v525 = vadd.f32 %v479, %v517
    %v526 = vadd.f32 %v480, %v518
    %v527 = vadd.f32 %v481, %v519
    %v528 = vadd.f32 %v482, %v520
    %v529 = vadd.f32 %v483, %v521
    %v530 = vadd.f32 %v484, %v522
    %v531 = vadd.f32 %v485, %v523
    %v532 = vadd.f32 %v486, %v524
    %s533 = sld [smem:[#allocation8 + $0x9]]
    %v534 = vstv %s533
    %v535 = vmul.f32 %v104, %v534
    %v536 = vmul.f32 %v106, %v534
    %v537 = vmul.f32 %v108, %v534
    %v538 = vmul.f32 %v110, %v534
    %v539 = vmul.f32 %v112, %v534
    %v540 = vmul.f32 %v114, %v534
    %v541 = vmul.f32 %v116, %v534
    %v542 = vmul.f32 %v118, %v534
    %s543 = sld [smem:[#allocation7 + $0x9]]
    %v544 = vstv %s543
    %v545 = vadd.f32 %v535, %v544
    %v546 = vadd.f32 %v536, %v544
    %v547 = vadd.f32 %v537, %v544
    %v548 = vadd.f32 %v538, %v544
    %v549 = vadd.f32 %v539, %v544
    %v550 = vadd.f32 %v540, %v544
    %v551 = vadd.f32 %v541, %v544
    %v552 = vadd.f32 %v542, %v544
    %v553 = vmax.f32 %v545, 0.0
    %v554 = vmax.f32 %v546, 0.0
    %v555 = vmax.f32 %v547, 0.0
    %v556 = vmax.f32 %v548, 0.0
    %v557 = vmax.f32 %v549, 0.0
    %v558 = vmax.f32 %v550, 0.0
    %v559 = vmax.f32 %v551, 0.0
    %v560 = vmax.f32 %v552, 0.0
    %s561 = sld [smem:[#allocation10 + $0x9]]
    %v562 = vstv %s561
    %v563 = vmul.f32 %v553, %v562
    %v564 = vmul.f32 %v554, %v562
    %v565 = vmul.f32 %v555, %v562
    %v566 = vmul.f32 %v556, %v562
    %v567 = vmul.f32 %v557, %v562
    %v568 = vmul.f32 %v558, %v562
    %v569 = vmul.f32 %v559, %v562
    %v570 = vmul.f32 %v560, %v562
    %v571 = vadd.f32 %v525, %v563
    %v572 = vadd.f32 %v526, %v564
    %v573 = vadd.f32 %v527, %v565
    %v574 = vadd.f32 %v528, %v566
    %v575 = vadd.f32 %v529, %v567
    %v576 = vadd.f32 %v530, %v568
    %v577 = vadd.f32 %v531, %v569
    %v578 = vadd.f32 %v532, %v570
    %s579 = sld [smem:[#allocation8 + $0xa]]
    %v580 = vstv %s579
    %v581 = vmul.f32 %v104, %v580
    %v582 = vmul.f32 %v106, %v580
    %v583 = vmul.f32 %v108, %v580
    %v584 = vmul.f32 %v110, %v580
    %v585 = vmul.f32 %v112, %v580
    %v586 = vmul.f32 %v114, %v580
    %v587 = vmul.f32 %v116, %v580
    %v588 = vmul.f32 %v118, %v580
    %s589 = sld [smem:[#allocation7 + $0xa]]
    %v590 = vstv %s589
    %v591 = vadd.f32 %v581, %v590
    %v592 = vadd.f32 %v582, %v590
    %v593 = vadd.f32 %v583, %v590
    %v594 = vadd.f32 %v584, %v590
    %v595 = vadd.f32 %v585, %v590
    %v596 = vadd.f32 %v586, %v590
    %v597 = vadd.f32 %v587, %v590
    %v598 = vadd.f32 %v588, %v590
    %v599 = vmax.f32 %v591, 0.0
    %v600 = vmax.f32 %v592, 0.0
    %v601 = vmax.f32 %v593, 0.0
    %v602 = vmax.f32 %v594, 0.0
    %v603 = vmax.f32 %v595, 0.0
    %v604 = vmax.f32 %v596, 0.0
    %v605 = vmax.f32 %v597, 0.0
    %v606 = vmax.f32 %v598, 0.0
    %s607 = sld [smem:[#allocation10 + $0xa]]
    %v608 = vstv %s607
    %v609 = vmul.f32 %v599, %v608
    %v610 = vmul.f32 %v600, %v608
    %v611 = vmul.f32 %v601, %v608
    %v612 = vmul.f32 %v602, %v608
    %v613 = vmul.f32 %v603, %v608
    %v614 = vmul.f32 %v604, %v608
    %v615 = vmul.f32 %v605, %v608
    %v616 = vmul.f32 %v606, %v608
    %v617 = vadd.f32 %v571, %v609
    %v618 = vadd.f32 %v572, %v610
    %v619 = vadd.f32 %v573, %v611
    %v620 = vadd.f32 %v574, %v612
    %v621 = vadd.f32 %v575, %v613
    %v622 = vadd.f32 %v576, %v614
    %v623 = vadd.f32 %v577, %v615
    %v624 = vadd.f32 %v578, %v616
    %s625 = sld [smem:[#allocation8 + $0xb]]
    %v626 = vstv %s625
    %v627 = vmul.f32 %v104, %v626
    %v628 = vmul.f32 %v106, %v626
    %v629 = vmul.f32 %v108, %v626
    %v630 = vmul.f32 %v110, %v626
    %v631 = vmul.f32 %v112, %v626
    %v632 = vmul.f32 %v114, %v626
    %v633 = vmul.f32 %v116, %v626
    %v634 = vmul.f32 %v118, %v626
    %s635 = sld [smem:[#allocation7 + $0xb]]
    %v636 = vstv %s635
    %v637 = vadd.f32 %v627, %v636
    %v638 = vadd.f32 %v628, %v636
    %v639 = vadd.f32 %v629, %v636
    %v640 = vadd.f32 %v630, %v636
    %v641 = vadd.f32 %v631, %v636
    %v642 = vadd.f32 %v632, %v636
    %v643 = vadd.f32 %v633, %v636
    %v644 = vadd.f32 %v634, %v636
    %v645 = vmax.f32 %v637, 0.0
    %v646 = vmax.f32 %v638, 0.0
    %v647 = vmax.f32 %v639, 0.0
    %v648 = vmax.f32 %v640, 0.0
    %v649 = vmax.f32 %v641, 0.0
    %v650 = vmax.f32 %v642, 0.0
    %v651 = vmax.f32 %v643, 0.0
    %v652 = vmax.f32 %v644, 0.0
    %s653 = sld [smem:[#allocation10 + $0xb]]
    %v654 = vstv %s653
    %v655 = vmul.f32 %v645, %v654
    %v656 = vmul.f32 %v646, %v654
    %v657 = vmul.f32 %v647, %v654
    %v658 = vmul.f32 %v648, %v654
    %v659 = vmul.f32 %v649, %v654
    %v660 = vmul.f32 %v650, %v654
    %v661 = vmul.f32 %v651, %v654
    %v662 = vmul.f32 %v652, %v654
    %v663 = vadd.f32 %v617, %v655
    %v664 = vadd.f32 %v618, %v656
    %v665 = vadd.f32 %v619, %v657
    %v666 = vadd.f32 %v620, %v658
    %v667 = vadd.f32 %v621, %v659
    %v668 = vadd.f32 %v622, %v660
    %v669 = vadd.f32 %v623, %v661
    %v670 = vadd.f32 %v624, %v662
    %s671 = sld [smem:[#allocation8 + $0xc]]
    %v672 = vstv %s671
    %v673 = vmul.f32 %v104, %v672
    %v674 = vmul.f32 %v106, %v672
    %v675 = vmul.f32 %v108, %v672
    %v676 = vmul.f32 %v110, %v672
    %v677 = vmul.f32 %v112, %v672
    %v678 = vmul.f32 %v114, %v672
    %v679 = vmul.f32 %v116, %v672
    %v680 = vmul.f32 %v118, %v672
    %s681 = sld [smem:[#allocation7 + $0xc]]
    %v682 = vstv %s681
    %v683 = vadd.f32 %v673, %v682
    %v684 = vadd.f32 %v674, %v682
    %v685 = vadd.f32 %v675, %v682
    %v686 = vadd.f32 %v676, %v682
    %v687 = vadd.f32 %v677, %v682
    %v688 = vadd.f32 %v678, %v682
    %v689 = vadd.f32 %v679, %v682
    %v690 = vadd.f32 %v680, %v682
    %v691 = vmax.f32 %v683, 0.0
    %v692 = vmax.f32 %v684, 0.0
    %v693 = vmax.f32 %v685, 0.0
    %v694 = vmax.f32 %v686, 0.0
    %v695 = vmax.f32 %v687, 0.0
    %v696 = vmax.f32 %v688, 0.0
    %v697 = vmax.f32 %v689, 0.0
    %v698 = vmax.f32 %v690, 0.0
    %s699 = sld [smem:[#allocation10 + $0xc]]
    %v700 = vstv %s699
    %v701 = vmul.f32 %v691, %v700
    %v702 = vmul.f32 %v692, %v700
    %v703 = vmul.f32 %v693, %v700
    %v704 = vmul.f32 %v694, %v700
    %v705 = vmul.f32 %v695, %v700
    %v706 = vmul.f32 %v696, %v700
    %v707 = vmul.f32 %v697, %v700
    %v708 = vmul.f32 %v698, %v700
    %v709 = vadd.f32 %v663, %v701
    %v710 = vadd.f32 %v664, %v702
    %v711 = vadd.f32 %v665, %v703
    %v712 = vadd.f32 %v666, %v704
    %v713 = vadd.f32 %v667, %v705
    %v714 = vadd.f32 %v668, %v706
    %v715 = vadd.f32 %v669, %v707
    %v716 = vadd.f32 %v670, %v708
    %s717 = sld [smem:[#allocation8 + $0xd]]
    %v718 = vstv %s717
    %v719 = vmul.f32 %v104, %v718
    %v720 = vmul.f32 %v106, %v718
    %v721 = vmul.f32 %v108, %v718
    %v722 = vmul.f32 %v110, %v718
    %v723 = vmul.f32 %v112, %v718
    %v724 = vmul.f32 %v114, %v718
    %v725 = vmul.f32 %v116, %v718
    %v726 = vmul.f32 %v118, %v718
    %s727 = sld [smem:[#allocation7 + $0xd]]
    %v728 = vstv %s727
    %v729 = vadd.f32 %v719, %v728
    %v730 = vadd.f32 %v720, %v728
    %v731 = vadd.f32 %v721, %v728
    %v732 = vadd.f32 %v722, %v728
    %v733 = vadd.f32 %v723, %v728
    %v734 = vadd.f32 %v724, %v728
    %v735 = vadd.f32 %v725, %v728
    %v736 = vadd.f32 %v726, %v728
    %v737 = vmax.f32 %v729, 0.0
    %v738 = vmax.f32 %v730, 0.0
    %v739 = vmax.f32 %v731, 0.0
    %v740 = vmax.f32 %v732, 0.0
    %v741 = vmax.f32 %v733, 0.0
    %v742 = vmax.f32 %v734, 0.0
    %v743 = vmax.f32 %v735, 0.0
    %v744 = vmax.f32 %v736, 0.0
    %s745 = sld [smem:[#allocation10 + $0xd]]
    %v746 = vstv %s745
    %v747 = vmul.f32 %v737, %v746
    %v748 = vmul.f32 %v738, %v746
    %v749 = vmul.f32 %v739, %v746
    %v750 = vmul.f32 %v740, %v746
    %v751 = vmul.f32 %v741, %v746
    %v752 = vmul.f32 %v742, %v746
    %v753 = vmul.f32 %v743, %v746
    %v754 = vmul.f32 %v744, %v746
    %v755 = vadd.f32 %v709, %v747
    %v756 = vadd.f32 %v710, %v748
    %v757 = vadd.f32 %v711, %v749
    %v758 = vadd.f32 %v712, %v750
    %v759 = vadd.f32 %v713, %v751
    %v760 = vadd.f32 %v714, %v752
    %v761 = vadd.f32 %v715, %v753
    %v762 = vadd.f32 %v716, %v754
    %s763 = sld [smem:[#allocation8 + $0xe]]
    %v764 = vstv %s763
    %v765 = vmul.f32 %v104, %v764
    %v766 = vmul.f32 %v106, %v764
    %v767 = vmul.f32 %v108, %v764
    %v768 = vmul.f32 %v110, %v764
    %v769 = vmul.f32 %v112, %v764
    %v770 = vmul.f32 %v114, %v764
    %v771 = vmul.f32 %v116, %v764
    %v772 = vmul.f32 %v118, %v764
    %s773 = sld [smem:[#allocation7 + $0xe]]
    %v774 = vstv %s773
    %v775 = vadd.f32 %v765, %v774
    %v776 = vadd.f32 %v766, %v774
    %v777 = vadd.f32 %v767, %v774
    %v778 = vadd.f32 %v768, %v774
    %v779 = vadd.f32 %v769, %v774
    %v780 = vadd.f32 %v770, %v774
    %v781 = vadd.f32 %v771, %v774
    %v782 = vadd.f32 %v772, %v774
    %v783 = vmax.f32 %v775, 0.0
    %v784 = vmax.f32 %v776, 0.0
    %v785 = vmax.f32 %v777, 0.0
    %v786 = vmax.f32 %v778, 0.0
    %v787 = vmax.f32 %v779, 0.0
    %v788 = vmax.f32 %v780, 0.0
    %v789 = vmax.f32 %v781, 0.0
    %v790 = vmax.f32 %v782, 0.0
    %s791 = sld [smem:[#allocation10 + $0xe]]
    %v792 = vstv %s791
    %v793 = vmul.f32 %v783, %v792
    %v794 = vmul.f32 %v784, %v792
    %v795 = vmul.f32 %v785, %v792
    %v796 = vmul.f32 %v786, %v792
    %v797 = vmul.f32 %v787, %v792
    %v798 = vmul.f32 %v788, %v792
    %v799 = vmul.f32 %v789, %v792
    %v800 = vmul.f32 %v790, %v792
    %v801 = vadd.f32 %v755, %v793
    %v802 = vadd.f32 %v756, %v794
    %v803 = vadd.f32 %v757, %v795
    %v804 = vadd.f32 %v758, %v796
    %v805 = vadd.f32 %v759, %v797
    %v806 = vadd.f32 %v760, %v798
    %v807 = vadd.f32 %v761, %v799
    %v808 = vadd.f32 %v762, %v800
    %s809 = sld [smem:[#allocation8 + $0xf]]
    %v810 = vstv %s809
    %v811 = vmul.f32 %v104, %v810
    %v812 = vmul.f32 %v106, %v810
    %v813 = vmul.f32 %v108, %v810
    %v814 = vmul.f32 %v110, %v810
    %v815 = vmul.f32 %v112, %v810
    %v816 = vmul.f32 %v114, %v810
    %v817 = vmul.f32 %v116, %v810
    %v818 = vmul.f32 %v118, %v810
    %s819 = sld [smem:[#allocation7 + $0xf]]
    %v820 = vstv %s819
    %v821 = vadd.f32 %v811, %v820
    %v822 = vadd.f32 %v812, %v820
    %v823 = vadd.f32 %v813, %v820
    %v824 = vadd.f32 %v814, %v820
    %v825 = vadd.f32 %v815, %v820
    %v826 = vadd.f32 %v816, %v820
    %v827 = vadd.f32 %v817, %v820
    %v828 = vadd.f32 %v818, %v820
    %v829 = vmax.f32 %v821, 0.0
    %v830 = vmax.f32 %v822, 0.0
    %v831 = vmax.f32 %v823, 0.0
    %v832 = vmax.f32 %v824, 0.0
    %v833 = vmax.f32 %v825, 0.0
    %v834 = vmax.f32 %v826, 0.0
    %v835 = vmax.f32 %v827, 0.0
    %v836 = vmax.f32 %v828, 0.0
    %s837 = sld [smem:[#allocation10 + $0xf]]
    %v838 = vstv %s837
    %v839 = vmul.f32 %v829, %v838
    %v840 = vmul.f32 %v830, %v838
    %v841 = vmul.f32 %v831, %v838
    %v842 = vmul.f32 %v832, %v838
    %v843 = vmul.f32 %v833, %v838
    %v844 = vmul.f32 %v834, %v838
    %v845 = vmul.f32 %v835, %v838
    %v846 = vmul.f32 %v836, %v838
    %v847 = vadd.f32 %v801, %v839
    %v848 = vadd.f32 %v802, %v840
    %v849 = vadd.f32 %v803, %v841
    %v850 = vadd.f32 %v804, %v842
    %v851 = vadd.f32 %v805, %v843
    %v852 = vadd.f32 %v806, %v844
    %v853 = vadd.f32 %v807, %v845
    %v854 = vadd.f32 %v808, %v846
    %s855 = sld [smem:[#allocation2]]
    %v856 = vstv %s855
    %v857 = vadd.f32 %v847, %v856
    %v858 = vadd.f32 %v848, %v856
    %v859 = vadd.f32 %v849, %v856
    %v860 = vadd.f32 %v850, %v856
    %v861 = vadd.f32 %v851, %v856
    %v862 = vadd.f32 %v852, %v856
    %v863 = vadd.f32 %v853, %v856
    %v864 = vadd.f32 %v854, %v856
    %v865 = vsub.f32 0.0, %v857
    %v866 = vsub.f32 0.0, %v858
    %v867 = vsub.f32 0.0, %v859
    %v868 = vsub.f32 0.0, %v860
    %v869 = vsub.f32 0.0, %v861
    %v870 = vsub.f32 0.0, %v862
    %v871 = vsub.f32 0.0, %v863
    %v872 = vsub.f32 0.0, %v864
    %v873 = vmul.f32 %v865, 1.442695
    %v874 = vpow.pop %v873
    %v875 = vmul.f32 %v866, 1.442695
    %v876 = vpow.pop %v875
    %v877 = vmul.f32 %v867, 1.442695
    %v878 = vpow.pop %v877
    %v879 = vmul.f32 %v868, 1.442695
    %v880 = vpow.pop %v879
    %v881 = vmul.f32 %v869, 1.442695
    %v882 = vpow.pop %v881
    %v883 = vmul.f32 %v870, 1.442695
    %v884 = vpow.pop %v883
    %v885 = vmul.f32 %v871, 1.442695
    %v886 = vpow.pop %v885
    %v887 = vmul.f32 %v872, 1.442695
    %v888 = vpow.pop %v887
    %v889 = vadd.f32 %v874, 1.0
    %v890 = vadd.f32 %v876, 1.0
    %v891 = vadd.f32 %v878, 1.0
    %v892 = vadd.f32 %v880, 1.0
    %v893 = vadd.f32 %v882, 1.0
    %v894 = vadd.f32 %v884, 1.0
    %v895 = vadd.f32 %v886, 1.0
    %v896 = vadd.f32 %v888, 1.0
    %v897 = vrcp.pop %v889
    %v898 = vrcp.pop %v890
    %v899 = vrcp.pop %v891
    %v900 = vrcp.pop %v892
    %v901 = vrcp.pop %v893
    %v902 = vrcp.pop %v894
    %v903 = vrcp.pop %v895
    %v904 = vrcp.pop %v896
    %905 = vst [vmem:[#allocation13] sm:$0xff] %v897
    %906 = vst [vmem:[#allocation13 + $0x8] sm:$0xff] %v898
    %907 = vst [vmem:[#allocation13 + $0x10] sm:$0xff] %v899
    %908 = vst [vmem:[#allocation13 + $0x18] sm:$0xff] %v900
    %909 = vst [vmem:[#allocation13 + $0x20] sm:$0xff] %v901
    %910 = vst [vmem:[#allocation13 + $0x28] sm:$0xff] %v902
    %911 = vst [vmem:[#allocation13 + $0x30] sm:$0xff] %v903
    %912 = vst [vmem:[#allocation13 + $0x38] sm:$0xff] %v904
    %s913 = scalar_lea.vmem [#allocation3], 64
    %v914 = vld [vmem:[%s913] sm:$0xff]
    %v915 = vld [vmem:[%s913 + $0x8] sm:$0xff]
    %v916 = vld [vmem:[%s913 + $0x10] sm:$0xff]
    %v917 = vld [vmem:[%s913 + $0x18] sm:$0xff]
    %v918 = vld [vmem:[%s913 + $0x20] sm:$0xff]
    %v919 = vld [vmem:[%s913 + $0x28] sm:$0xff]
    %v920 = vld [vmem:[%s913 + $0x30] sm:$0xff]
    %v921 = vld [vmem:[%s913 + $0x38] sm:$0xff]
    %v922 = vlog2.pop %v914
    %v923 = vmul.f32 %v922, 0.6931472
    %v924 = vlog2.pop %v915
    %v925 = vmul.f32 %v924, 0.6931472
    %v926 = vlog2.pop %v916
    %v927 = vmul.f32 %v926, 0.6931472
    %v928 = vlog2.pop %v917
    %v929 = vmul.f32 %v928, 0.6931472
    %v930 = vlog2.pop %v918
    %v931 = vmul.f32 %v930, 0.6931472
    %v932 = vlog2.pop %v919
    %v933 = vmul.f32 %v932, 0.6931472
    %v934 = vlog2.pop %v920
    %v935 = vmul.f32 %v934, 0.6931472
    %v936 = vlog2.pop %v921
    %v937 = vmul.f32 %v936, 0.6931472
    %s938 = sld [smem:[#allocation8]]
    %v939 = vstv %s938
    %v940 = vmul.f32 %v923, %v939
    %v941 = vmul.f32 %v925, %v939
    %v942 = vmul.f32 %v927, %v939
    %v943 = vmul.f32 %v929, %v939
    %v944 = vmul.f32 %v931, %v939
    %v945 = vmul.f32 %v933, %v939
    %v946 = vmul.f32 %v935, %v939
    %v947 = vmul.f32 %v937, %v939
    %s948 = sld [smem:[#allocation7 + $0x80]]
    %v949 = vstv %s948
    %v950 = vadd.f32 %v940, %v949
    %v951 = vadd.f32 %v941, %v949
    %v952 = vadd.f32 %v942, %v949
    %v953 = vadd.f32 %v943, %v949
    %v954 = vadd.f32 %v944, %v949
    %v955 = vadd.f32 %v945, %v949
    %v956 = vadd.f32 %v946, %v949
    %v957 = vadd.f32 %v947, %v949
    %v958 = vmax.f32 %v950, 0.0
    %v959 = vmax.f32 %v951, 0.0
    %v960 = vmax.f32 %v952, 0.0
    %v961 = vmax.f32 %v953, 0.0
    %v962 = vmax.f32 %v954, 0.0
    %v963 = vmax.f32 %v955, 0.0
    %v964 = vmax.f32 %v956, 0.0
    %v965 = vmax.f32 %v957, 0.0
    %s966 = sld [smem:[#allocation10]]
    %v967 = vstv %s966
    %v968 = vmul.f32 %v958, %v967
    %v969 = vmul.f32 %v959, %v967
    %v970 = vmul.f32 %v960, %v967
    %v971 = vmul.f32 %v961, %v967
    %v972 = vmul.f32 %v962, %v967
    %v973 = vmul.f32 %v963, %v967
    %v974 = vmul.f32 %v964, %v967
    %v975 = vmul.f32 %v965, %v967
    %v976 = vadd.f32 %v968, 0.0
    %v977 = vadd.f32 %v969, 0.0
    %v978 = vadd.f32 %v970, 0.0
    %v979 = vadd.f32 %v971, 0.0
    %v980 = vadd.f32 %v972, 0.0
    %v981 = vadd.f32 %v973, 0.0
    %v982 = vadd.f32 %v974, 0.0
    %v983 = vadd.f32 %v975, 0.0
    %s984 = sld [smem:[#allocation8 + $0x1]]
    %v985 = vstv %s984
    %v986 = vmul.f32 %v923, %v985
    %v987 = vmul.f32 %v925, %v985
    %v988 = vmul.f32 %v927, %v985
    %v989 = vmul.f32 %v929, %v985
    %v990 = vmul.f32 %v931, %v985
    %v991 = vmul.f32 %v933, %v985
    %v992 = vmul.f32 %v935, %v985
    %v993 = vmul.f32 %v937, %v985
    %s994 = sld [smem:[#allocation7 + $0x81]]
    %v995 = vstv %s994
    %v996 = vadd.f32 %v986, %v995
    %v997 = vadd.f32 %v987, %v995
    %v998 = vadd.f32 %v988, %v995
    %v999 = vadd.f32 %v989, %v995
    %v1000 = vadd.f32 %v990, %v995
    %v1001 = vadd.f32 %v991, %v995
    %v1002 = vadd.f32 %v992, %v995
    %v1003 = vadd.f32 %v993, %v995
    %v1004 = vmax.f32 %v996, 0.0
    %v1005 = vmax.f32 %v997, 0.0
    %v1006 = vmax.f32 %v998, 0.0
    %v1007 = vmax.f32 %v999, 0.0
    %v1008 = vmax.f32 %v1000, 0.0
    %v1009 = vmax.f32 %v1001, 0.0
    %v1010 = vmax.f32 %v1002, 0.0
    %v1011 = vmax.f32 %v1003, 0.0
    %s1012 = sld [smem:[#allocation10 + $0x1]]
    %v1013 = vstv %s1012
    %v1014 = vmul.f32 %v1004, %v1013
    %v1015 = vmul.f32 %v1005, %v1013
    %v1016 = vmul.f32 %v1006, %v1013
    %v1017 = vmul.f32 %v1007, %v1013
    %v1018 = vmul.f32 %v1008, %v1013
    %v1019 = vmul.f32 %v1009, %v1013
    %v1020 = vmul.f32 %v1010, %v1013
    %v1021 = vmul.f32 %v1011, %v1013
    %v1022 = vadd.f32 %v976, %v1014
    %v1023 = vadd.f32 %v977, %v1015
    %v1024 = vadd.f32 %v978, %v1016
    %v1025 = vadd.f32 %v979, %v1017
    %v1026 = vadd.f32 %v980, %v1018
    %v1027 = vadd.f32 %v981, %v1019
    %v1028 = vadd.f32 %v982, %v1020
    %v1029 = vadd.f32 %v983, %v1021
    %s1030 = sld [smem:[#allocation8 + $0x2]]
    %v1031 = vstv %s1030
    %v1032 = vmul.f32 %v923, %v1031
    %v1033 = vmul.f32 %v925, %v1031
    %v1034 = vmul.f32 %v927, %v1031
    %v1035 = vmul.f32 %v929, %v1031
    %v1036 = vmul.f32 %v931, %v1031
    %v1037 = vmul.f32 %v933, %v1031
    %v1038 = vmul.f32 %v935, %v1031
    %v1039 = vmul.f32 %v937, %v1031
    %s1040 = sld [smem:[#allocation7 + $0x82]]
    %v1041 = vstv %s1040
    %v1042 = vadd.f32 %v1032, %v1041
    %v1043 = vadd.f32 %v1033, %v1041
    %v1044 = vadd.f32 %v1034, %v1041
    %v1045 = vadd.f32 %v1035, %v1041
    %v1046 = vadd.f32 %v1036, %v1041
    %v1047 = vadd.f32 %v1037, %v1041
    %v1048 = vadd.f32 %v1038, %v1041
    %v1049 = vadd.f32 %v1039, %v1041
    %v1050 = vmax.f32 %v1042, 0.0
    %v1051 = vmax.f32 %v1043, 0.0
    %v1052 = vmax.f32 %v1044, 0.0
    %v1053 = vmax.f32 %v1045, 0.0
    %v1054 = vmax.f32 %v1046, 0.0
    %v1055 = vmax.f32 %v1047, 0.0
    %v1056 = vmax.f32 %v1048, 0.0
    %v1057 = vmax.f32 %v1049, 0.0
    %s1058 = sld [smem:[#allocation10 + $0x2]]
    %v1059 = vstv %s1058
    %v1060 = vmul.f32 %v1050, %v1059
    %v1061 = vmul.f32 %v1051, %v1059
    %v1062 = vmul.f32 %v1052, %v1059
    %v1063 = vmul.f32 %v1053, %v1059
    %v1064 = vmul.f32 %v1054, %v1059
    %v1065 = vmul.f32 %v1055, %v1059
    %v1066 = vmul.f32 %v1056, %v1059
    %v1067 = vmul.f32 %v1057, %v1059
    %v1068 = vadd.f32 %v1022, %v1060
    %v1069 = vadd.f32 %v1023, %v1061
    %v1070 = vadd.f32 %v1024, %v1062
    %v1071 = vadd.f32 %v1025, %v1063
    %v1072 = vadd.f32 %v1026, %v1064
    %v1073 = vadd.f32 %v1027, %v1065
    %v1074 = vadd.f32 %v1028, %v1066
    %v1075 = vadd.f32 %v1029, %v1067
    %s1076 = sld [smem:[#allocation8 + $0x3]]
    %v1077 = vstv %s1076
    %v1078 = vmul.f32 %v923, %v1077
    %v1079 = vmul.f32 %v925, %v1077
    %v1080 = vmul.f32 %v927, %v1077
    %v1081 = vmul.f32 %v929, %v1077
    %v1082 = vmul.f32 %v931, %v1077
    %v1083 = vmul.f32 %v933, %v1077
    %v1084 = vmul.f32 %v935, %v1077
    %v1085 = vmul.f32 %v937, %v1077
    %s1086 = sld [smem:[#allocation7 + $0x83]]
    %v1087 = vstv %s1086
    %v1088 = vadd.f32 %v1078, %v1087
    %v1089 = vadd.f32 %v1079, %v1087
    %v1090 = vadd.f32 %v1080, %v1087
    %v1091 = vadd.f32 %v1081, %v1087
    %v1092 = vadd.f32 %v1082, %v1087
    %v1093 = vadd.f32 %v1083, %v1087
    %v1094 = vadd.f32 %v1084, %v1087
    %v1095 = vadd.f32 %v1085, %v1087
    %v1096 = vmax.f32 %v1088, 0.0
    %v1097 = vmax.f32 %v1089, 0.0
    %v1098 = vmax.f32 %v1090, 0.0
    %v1099 = vmax.f32 %v1091, 0.0
    %v1100 = vmax.f32 %v1092, 0.0
    %v1101 = vmax.f32 %v1093, 0.0
    %v1102 = vmax.f32 %v1094, 0.0
    %v1103 = vmax.f32 %v1095, 0.0
    %s1104 = sld [smem:[#allocation10 + $0x3]]
    %v1105 = vstv %s1104
    %v1106 = vmul.f32 %v1096, %v1105
    %v1107 = vmul.f32 %v1097, %v1105
    %v1108 = vmul.f32 %v1098, %v1105
    %v1109 = vmul.f32 %v1099, %v1105
    %v1110 = vmul.f32 %v1100, %v1105
    %v1111 = vmul.f32 %v1101, %v1105
    %v1112 = vmul.f32 %v1102, %v1105
    %v1113 = vmul.f32 %v1103, %v1105
    %v1114 = vadd.f32 %v1068, %v1106
    %v1115 = vadd.f32 %v1069, %v1107
    %v1116 = vadd.f32 %v1070, %v1108
    %v1117 = vadd.f32 %v1071, %v1109
    %v1118 = vadd.f32 %v1072, %v1110
    %v1119 = vadd.f32 %v1073, %v1111
    %v1120 = vadd.f32 %v1074, %v1112
    %v1121 = vadd.f32 %v1075, %v1113
    %s1122 = sld [smem:[#allocation8 + $0x4]]
    %v1123 = vstv %s1122
    %v1124 = vmul.f32 %v923, %v1123
    %v1125 = vmul.f32 %v925, %v1123
    %v1126 = vmul.f32 %v927, %v1123
    %v1127 = vmul.f32 %v929, %v1123
    %v1128 = vmul.f32 %v931, %v1123
    %v1129 = vmul.f32 %v933, %v1123
    %v1130 = vmul.f32 %v935, %v1123
    %v1131 = vmul.f32 %v937, %v1123
    %s1132 = sld [smem:[#allocation7 + $0x84]]
    %v1133 = vstv %s1132
    %v1134 = vadd.f32 %v1124, %v1133
    %v1135 = vadd.f32 %v1125, %v1133
    %v1136 = vadd.f32 %v1126, %v1133
    %v1137 = vadd.f32 %v1127, %v1133
    %v1138 = vadd.f32 %v1128, %v1133
    %v1139 = vadd.f32 %v1129, %v1133
    %v1140 = vadd.f32 %v1130, %v1133
    %v1141 = vadd.f32 %v1131, %v1133
    %v1142 = vmax.f32 %v1134, 0.0
    %v1143 = vmax.f32 %v1135, 0.0
    %v1144 = vmax.f32 %v1136, 0.0
    %v1145 = vmax.f32 %v1137, 0.0
    %v1146 = vmax.f32 %v1138, 0.0
    %v1147 = vmax.f32 %v1139, 0.0
    %v1148 = vmax.f32 %v1140, 0.0
    %v1149 = vmax.f32 %v1141, 0.0
    %s1150 = sld [smem:[#allocation10 + $0x4]]
    %v1151 = vstv %s1150
    %v1152 = vmul.f32 %v1142, %v1151
    %v1153 = vmul.f32 %v1143, %v1151
    %v1154 = vmul.f32 %v1144, %v1151
    %v1155 = vmul.f32 %v1145, %v1151
    %v1156 = vmul.f32 %v1146, %v1151
    %v1157 = vmul.f32 %v1147, %v1151
    %v1158 = vmul.f32 %v1148, %v1151
    %v1159 = vmul.f32 %v1149, %v1151
    %v1160 = vadd.f32 %v1114, %v1152
    %v1161 = vadd.f32 %v1115, %v1153
    %v1162 = vadd.f32 %v1116, %v1154
    %v1163 = vadd.f32 %v1117, %v1155
    %v1164 = vadd.f32 %v1118, %v1156
    %v1165 = vadd.f32 %v1119, %v1157
    %v1166 = vadd.f32 %v1120, %v1158
    %v1167 = vadd.f32 %v1121, %v1159
    %s1168 = sld [smem:[#allocation8 + $0x5]]
    %v1169 = vstv %s1168
    %v1170 = vmul.f32 %v923, %v1169
    %v1171 = vmul.f32 %v925, %v1169
    %v1172 = vmul.f32 %v927, %v1169
    %v1173 = vmul.f32 %v929, %v1169
    %v1174 = vmul.f32 %v931, %v1169
    %v1175 = vmul.f32 %v933, %v1169
    %v1176 = vmul.f32 %v935, %v1169
    %v1177 = vmul.f32 %v937, %v1169
    %s1178 = sld [smem:[#allocation7 + $0x85]]
    %v1179 = vstv %s1178
    %v1180 = vadd.f32 %v1170, %v1179
    %v1181 = vadd.f32 %v1171, %v1179
    %v1182 = vadd.f32 %v1172, %v1179
    %v1183 = vadd.f32 %v1173, %v1179
    %v1184 = vadd.f32 %v1174, %v1179
    %v1185 = vadd.f32 %v1175, %v1179
    %v1186 = vadd.f32 %v1176, %v1179
    %v1187 = vadd.f32 %v1177, %v1179
    %v1188 = vmax.f32 %v1180, 0.0
    %v1189 = vmax.f32 %v1181, 0.0
    %v1190 = vmax.f32 %v1182, 0.0
    %v1191 = vmax.f32 %v1183, 0.0
    %v1192 = vmax.f32 %v1184, 0.0
    %v1193 = vmax.f32 %v1185, 0.0
    %v1194 = vmax.f32 %v1186, 0.0
    %v1195 = vmax.f32 %v1187, 0.0
    %s1196 = sld [smem:[#allocation10 + $0x5]]
    %v1197 = vstv %s1196
    %v1198 = vmul.f32 %v1188, %v1197
    %v1199 = vmul.f32 %v1189, %v1197
    %v1200 = vmul.f32 %v1190, %v1197
    %v1201 = vmul.f32 %v1191, %v1197
    %v1202 = vmul.f32 %v1192, %v1197
    %v1203 = vmul.f32 %v1193, %v1197
    %v1204 = vmul.f32 %v1194, %v1197
    %v1205 = vmul.f32 %v1195, %v1197
    %v1206 = vadd.f32 %v1160, %v1198
    %v1207 = vadd.f32 %v1161, %v1199
    %v1208 = vadd.f32 %v1162, %v1200
    %v1209 = vadd.f32 %v1163, %v1201
    %v1210 = vadd.f32 %v1164, %v1202
    %v1211 = vadd.f32 %v1165, %v1203
    %v1212 = vadd.f32 %v1166, %v1204
    %v1213 = vadd.f32 %v1167, %v1205
    %s1214 = sld [smem:[#allocation8 + $0x6]]
    %v1215 = vstv %s1214
    %v1216 = vmul.f32 %v923, %v1215
    %v1217 = vmul.f32 %v925, %v1215
    %v1218 = vmul.f32 %v927, %v1215
    %v1219 = vmul.f32 %v929, %v1215
    %v1220 = vmul.f32 %v931, %v1215
    %v1221 = vmul.f32 %v933, %v1215
    %v1222 = vmul.f32 %v935, %v1215
    %v1223 = vmul.f32 %v937, %v1215
    %s1224 = sld [smem:[#allocation7 + $0x86]]
    %v1225 = vstv %s1224
    %v1226 = vadd.f32 %v1216, %v1225
    %v1227 = vadd.f32 %v1217, %v1225
    %v1228 = vadd.f32 %v1218, %v1225
    %v1229 = vadd.f32 %v1219, %v1225
    %v1230 = vadd.f32 %v1220, %v1225
    %v1231 = vadd.f32 %v1221, %v1225
    %v1232 = vadd.f32 %v1222, %v1225
    %v1233 = vadd.f32 %v1223, %v1225
    %v1234 = vmax.f32 %v1226, 0.0
    %v1235 = vmax.f32 %v1227, 0.0
    %v1236 = vmax.f32 %v1228, 0.0
    %v1237 = vmax.f32 %v1229, 0.0
    %v1238 = vmax.f32 %v1230, 0.0
    %v1239 = vmax.f32 %v1231, 0.0
    %v1240 = vmax.f32 %v1232, 0.0
    %v1241 = vmax.f32 %v1233, 0.0
    %s1242 = sld [smem:[#allocation10 + $0x6]]
    %v1243 = vstv %s1242
    %v1244 = vmul.f32 %v1234, %v1243
    %v1245 = vmul.f32 %v1235, %v1243
    %v1246 = vmul.f32 %v1236, %v1243
    %v1247 = vmul.f32 %v1237, %v1243
    %v1248 = vmul.f32 %v1238, %v1243
    %v1249 = vmul.f32 %v1239, %v1243
    %v1250 = vmul.f32 %v1240, %v1243
    %v1251 = vmul.f32 %v1241, %v1243
    %v1252 = vadd.f32 %v1206, %v1244
    %v1253 = vadd.f32 %v1207, %v1245
    %v1254 = vadd.f32 %v1208, %v1246
    %v1255 = vadd.f32 %v1209, %v1247
    %v1256 = vadd.f32 %v1210, %v1248
    %v1257 = vadd.f32 %v1211, %v1249
    %v1258 = vadd.f32 %v1212, %v1250
    %v1259 = vadd.f32 %v1213, %v1251
    %s1260 = sld [smem:[#allocation8 + $0x7]]
    %v1261 = vstv %s1260
    %v1262 = vmul.f32 %v923, %v1261
    %v1263 = vmul.f32 %v925, %v1261
    %v1264 = vmul.f32 %v927, %v1261
    %v1265 = vmul.f32 %v929, %v1261
    %v1266 = vmul.f32 %v931, %v1261
    %v1267 = vmul.f32 %v933, %v1261
    %v1268 = vmul.f32 %v935, %v1261
    %v1269 = vmul.f32 %v937, %v1261
    %s1270 = sld [smem:[#allocation7 + $0x87]]
    %v1271 = vstv %s1270
    %v1272 = vadd.f32 %v1262, %v1271
    %v1273 = vadd.f32 %v1263, %v1271
    %v1274 = vadd.f32 %v1264, %v1271
    %v1275 = vadd.f32 %v1265, %v1271
    %v1276 = vadd.f32 %v1266, %v1271
    %v1277 = vadd.f32 %v1267, %v1271
    %v1278 = vadd.f32 %v1268, %v1271
    %v1279 = vadd.f32 %v1269, %v1271
    %v1280 = vmax.f32 %v1272, 0.0
    %v1281 = vmax.f32 %v1273, 0.0
    %v1282 = vmax.f32 %v1274, 0.0
    %v1283 = vmax.f32 %v1275, 0.0
    %v1284 = vmax.f32 %v1276, 0.0
    %v1285 = vmax.f32 %v1277, 0.0
    %v1286 = vmax.f32 %v1278, 0.0
    %v1287 = vmax.f32 %v1279, 0.0
    %s1288 = sld [smem:[#allocation10 + $0x7]]
    %v1289 = vstv %s1288
    %v1290 = vmul.f32 %v1280, %v1289
    %v1291 = vmul.f32 %v1281, %v1289
    %v1292 = vmul.f32 %v1282, %v1289
    %v1293 = vmul.f32 %v1283, %v1289
    %v1294 = vmul.f32 %v1284, %v1289
    %v1295 = vmul.f32 %v1285, %v1289
    %v1296 = vmul.f32 %v1286, %v1289
    %v1297 = vmul.f32 %v1287, %v1289
    %v1298 = vadd.f32 %v1252, %v1290
    %v1299 = vadd.f32 %v1253, %v1291
    %v1300 = vadd.f32 %v1254, %v1292
    %v1301 = vadd.f32 %v1255, %v1293
    %v1302 = vadd.f32 %v1256, %v1294
    %v1303 = vadd.f32 %v1257, %v1295
    %v1304 = vadd.f32 %v1258, %v1296
    %v1305 = vadd.f32 %v1259, %v1297
    %s1306 = sld [smem:[#allocation8 + $0x8]]
    %v1307 = vstv %s1306
    %v1308 = vmul.f32 %v923, %v1307
    %v1309 = vmul.f32 %v925, %v1307
    %v1310 = vmul.f32 %v927, %v1307
    %v1311 = vmul.f32 %v929, %v1307
    %v1312 = vmul.f32 %v931, %v1307
    %v1313 = vmul.f32 %v933, %v1307
    %v1314 = vmul.f32 %v935, %v1307
    %v1315 = vmul.f32 %v937, %v1307
    %s1316 = sld [smem:[#allocation7 + $0x88]]
    %v1317 = vstv %s1316
    %v1318 = vadd.f32 %v1308, %v1317
    %v1319 = vadd.f32 %v1309, %v1317
    %v1320 = vadd.f32 %v1310, %v1317
    %v1321 = vadd.f32 %v1311, %v1317
    %v1322 = vadd.f32 %v1312, %v1317
    %v1323 = vadd.f32 %v1313, %v1317
    %v1324 = vadd.f32 %v1314, %v1317
    %v1325 = vadd.f32 %v1315, %v1317
    %v1326 = vmax.f32 %v1318, 0.0
    %v1327 = vmax.f32 %v1319, 0.0
    %v1328 = vmax.f32 %v1320, 0.0
    %v1329 = vmax.f32 %v1321, 0.0
    %v1330 = vmax.f32 %v1322, 0.0
    %v1331 = vmax.f32 %v1323, 0.0
    %v1332 = vmax.f32 %v1324, 0.0
    %v1333 = vmax.f32 %v1325, 0.0
    %s1334 = sld [smem:[#allocation10 + $0x8]]
    %v1335 = vstv %s1334
    %v1336 = vmul.f32 %v1326, %v1335
    %v1337 = vmul.f32 %v1327, %v1335
    %v1338 = vmul.f32 %v1328, %v1335
    %v1339 = vmul.f32 %v1329, %v1335
    %v1340 = vmul.f32 %v1330, %v1335
    %v1341 = vmul.f32 %v1331, %v1335
    %v1342 = vmul.f32 %v1332, %v1335
    %v1343 = vmul.f32 %v1333, %v1335
    %v1344 = vadd.f32 %v1298, %v1336
    %v1345 = vadd.f32 %v1299, %v1337
    %v1346 = vadd.f32 %v1300, %v1338
    %v1347 = vadd.f32 %v1301, %v1339
    %v1348 = vadd.f32 %v1302, %v1340
    %v1349 = vadd.f32 %v1303, %v1341
    %v1350 = vadd.f32 %v1304, %v1342
    %v1351 = vadd.f32 %v1305, %v1343
    %s1352 = sld [smem:[#allocation8 + $0x9]]
    %v1353 = vstv %s1352
    %v1354 = vmul.f32 %v923, %v1353
    %v1355 = vmul.f32 %v925, %v1353
    %v1356 = vmul.f32 %v927, %v1353
    %v1357 = vmul.f32 %v929, %v1353
    %v1358 = vmul.f32 %v931, %v1353
    %v1359 = vmul.f32 %v933, %v1353
    %v1360 = vmul.f32 %v935, %v1353
    %v1361 = vmul.f32 %v937, %v1353
    %s1362 = sld [smem:[#allocation7 + $0x89]]
    %v1363 = vstv %s1362
    %v1364 = vadd.f32 %v1354, %v1363
    %v1365 = vadd.f32 %v1355, %v1363
    %v1366 = vadd.f32 %v1356, %v1363
    %v1367 = vadd.f32 %v1357, %v1363
    %v1368 = vadd.f32 %v1358, %v1363
    %v1369 = vadd.f32 %v1359, %v1363
    %v1370 = vadd.f32 %v1360, %v1363
    %v1371 = vadd.f32 %v1361, %v1363
    %v1372 = vmax.f32 %v1364, 0.0
    %v1373 = vmax.f32 %v1365, 0.0
    %v1374 = vmax.f32 %v1366, 0.0
    %v1375 = vmax.f32 %v1367, 0.0
    %v1376 = vmax.f32 %v1368, 0.0
    %v1377 = vmax.f32 %v1369, 0.0
    %v1378 = vmax.f32 %v1370, 0.0
    %v1379 = vmax.f32 %v1371, 0.0
    %s1380 = sld [smem:[#allocation10 + $0x9]]
    %v1381 = vstv %s1380
    %v1382 = vmul.f32 %v1372, %v1381
    %v1383 = vmul.f32 %v1373, %v1381
    %v1384 = vmul.f32 %v1374, %v1381
    %v1385 = vmul.f32 %v1375, %v1381
    %v1386 = vmul.f32 %v1376, %v1381
    %v1387 = vmul.f32 %v1377, %v1381
    %v1388 = vmul.f32 %v1378, %v1381
    %v1389 = vmul.f32 %v1379, %v1381
    %v1390 = vadd.f32 %v1344, %v1382
    %v1391 = vadd.f32 %v1345, %v1383
    %v1392 = vadd.f32 %v1346, %v1384
    %v1393 = vadd.f32 %v1347, %v1385
    %v1394 = vadd.f32 %v1348, %v1386
    %v1395 = vadd.f32 %v1349, %v1387
    %v1396 = vadd.f32 %v1350, %v1388
    %v1397 = vadd.f32 %v1351, %v1389
    %s1398 = sld [smem:[#allocation8 + $0xa]]
    %v1399 = vstv %s1398
    %v1400 = vmul.f32 %v923, %v1399
    %v1401 = vmul.f32 %v925, %v1399
    %v1402 = vmul.f32 %v927, %v1399
    %v1403 = vmul.f32 %v929, %v1399
    %v1404 = vmul.f32 %v931, %v1399
    %v1405 = vmul.f32 %v933, %v1399
    %v1406 = vmul.f32 %v935, %v1399
    %v1407 = vmul.f32 %v937, %v1399
    %s1408 = sld [smem:[#allocation7 + $0x8a]]
    %v1409 = vstv %s1408
    %v1410 = vadd.f32 %v1400, %v1409
    %v1411 = vadd.f32 %v1401, %v1409
    %v1412 = vadd.f32 %v1402, %v1409
    %v1413 = vadd.f32 %v1403, %v1409
    %v1414 = vadd.f32 %v1404, %v1409
    %v1415 = vadd.f32 %v1405, %v1409
    %v1416 = vadd.f32 %v1406, %v1409
    %v1417 = vadd.f32 %v1407, %v1409
    %v1418 = vmax.f32 %v1410, 0.0
    %v1419 = vmax.f32 %v1411, 0.0
    %v1420 = vmax.f32 %v1412, 0.0
    %v1421 = vmax.f32 %v1413, 0.0
    %v1422 = vmax.f32 %v1414, 0.0
    %v1423 = vmax.f32 %v1415, 0.0
    %v1424 = vmax.f32 %v1416, 0.0
    %v1425 = vmax.f32 %v1417, 0.0
    %s1426 = sld [smem:[#allocation10 + $0xa]]
    %v1427 = vstv %s1426
    %v1428 = vmul.f32 %v1418, %v1427
    %v1429 = vmul.f32 %v1419, %v1427
    %v1430 = vmul.f32 %v1420, %v1427
    %v1431 = vmul.f32 %v1421, %v1427
    %v1432 = vmul.f32 %v1422, %v1427
    %v1433 = vmul.f32 %v1423, %v1427
    %v1434 = vmul.f32 %v1424, %v1427
    %v1435 = vmul.f32 %v1425, %v1427
    %v1436 = vadd.f32 %v1390, %v1428
    %v1437 = vadd.f32 %v1391, %v1429
    %v1438 = vadd.f32 %v1392, %v1430
    %v1439 = vadd.f32 %v1393, %v1431
    %v1440 = vadd.f32 %v1394, %v1432
    %v1441 = vadd.f32 %v1395, %v1433
    %v1442 = vadd.f32 %v1396, %v1434
    %v1443 = vadd.f32 %v1397, %v1435
    %s1444 = sld [smem:[#allocation8 + $0xb]]
    %v1445 = vstv %s1444
    %v1446 = vmul.f32 %v923, %v1445
    %v1447 = vmul.f32 %v925, %v1445
    %v1448 = vmul.f32 %v927, %v1445
    %v1449 = vmul.f32 %v929, %v1445
    %v1450 = vmul.f32 %v931, %v1445
    %v1451 = vmul.f32 %v933, %v1445
    %v1452 = vmul.f32 %v935, %v1445
    %v1453 = vmul.f32 %v937, %v1445
    %s1454 = sld [smem:[#allocation7 + $0x8b]]
    %v1455 = vstv %s1454
    %v1456 = vadd.f32 %v1446, %v1455
    %v1457 = vadd.f32 %v1447, %v1455
    %v1458 = vadd.f32 %v1448, %v1455
    %v1459 = vadd.f32 %v1449, %v1455
    %v1460 = vadd.f32 %v1450, %v1455
    %v1461 = vadd.f32 %v1451, %v1455
    %v1462 = vadd.f32 %v1452, %v1455
    %v1463 = vadd.f32 %v1453, %v1455
    %v1464 = vmax.f32 %v1456, 0.0
    %v1465 = vmax.f32 %v1457, 0.0
    %v1466 = vmax.f32 %v1458, 0.0
    %v1467 = vmax.f32 %v1459, 0.0
    %v1468 = vmax.f32 %v1460, 0.0
    %v1469 = vmax.f32 %v1461, 0.0
    %v1470 = vmax.f32 %v1462, 0.0
    %v1471 = vmax.f32 %v1463, 0.0
    %s1472 = sld [smem:[#allocation10 + $0xb]]
    %v1473 = vstv %s1472
    %v1474 = vmul.f32 %v1464, %v1473
    %v1475 = vmul.f32 %v1465, %v1473
    %v1476 = vmul.f32 %v1466, %v1473
    %v1477 = vmul.f32 %v1467, %v1473
    %v1478 = vmul.f32 %v1468, %v1473
    %v1479 = vmul.f32 %v1469, %v1473
    %v1480 = vmul.f32 %v1470, %v1473
    %v1481 = vmul.f32 %v1471, %v1473
    %v1482 = vadd.f32 %v1436, %v1474
    %v1483 = vadd.f32 %v1437, %v1475
    %v1484 = vadd.f32 %v1438, %v1476
    %v1485 = vadd.f32 %v1439, %v1477
    %v1486 = vadd.f32 %v1440, %v1478
    %v1487 = vadd.f32 %v1441, %v1479
    %v1488 = vadd.f32 %v1442, %v1480
    %v1489 = vadd.f32 %v1443, %v1481
    %s1490 = sld [smem:[#allocation8 + $0xc]]
    %v1491 = vstv %s1490
    %v1492 = vmul.f32 %v923, %v1491
    %v1493 = vmul.f32 %v925, %v1491
    %v1494 = vmul.f32 %v927, %v1491
    %v1495 = vmul.f32 %v929, %v1491
    %v1496 = vmul.f32 %v931, %v1491
    %v1497 = vmul.f32 %v933, %v1491
    %v1498 = vmul.f32 %v935, %v1491
    %v1499 = vmul.f32 %v937, %v1491
    %s1500 = sld [smem:[#allocation7 + $0x8c]]
    %v1501 = vstv %s1500
    %v1502 = vadd.f32 %v1492, %v1501
    %v1503 = vadd.f32 %v1493, %v1501
    %v1504 = vadd.f32 %v1494, %v1501
    %v1505 = vadd.f32 %v1495, %v1501
    %v1506 = vadd.f32 %v1496, %v1501
    %v1507 = vadd.f32 %v1497, %v1501
    %v1508 = vadd.f32 %v1498, %v1501
    %v1509 = vadd.f32 %v1499, %v1501
    %v1510 = vmax.f32 %v1502, 0.0
    %v1511 = vmax.f32 %v1503, 0.0
    %v1512 = vmax.f32 %v1504, 0.0
    %v1513 = vmax.f32 %v1505, 0.0
    %v1514 = vmax.f32 %v1506, 0.0
    %v1515 = vmax.f32 %v1507, 0.0
    %v1516 = vmax.f32 %v1508, 0.0
    %v1517 = vmax.f32 %v1509, 0.0
    %s1518 = sld [smem:[#allocation10 + $0xc]]
    %v1519 = vstv %s1518
    %v1520 = vmul.f32 %v1510, %v1519
    %v1521 = vmul.f32 %v1511, %v1519
    %v1522 = vmul.f32 %v1512, %v1519
    %v1523 = vmul.f32 %v1513, %v1519
    %v1524 = vmul.f32 %v1514, %v1519
    %v1525 = vmul.f32 %v1515, %v1519
    %v1526 = vmul.f32 %v1516, %v1519
    %v1527 = vmul.f32 %v1517, %v1519
    %v1528 = vadd.f32 %v1482, %v1520
    %v1529 = vadd.f32 %v1483, %v1521
    %v1530 = vadd.f32 %v1484, %v1522
    %v1531 = vadd.f32 %v1485, %v1523
    %v1532 = vadd.f32 %v1486, %v1524
    %v1533 = vadd.f32 %v1487, %v1525
    %v1534 = vadd.f32 %v1488, %v1526
    %v1535 = vadd.f32 %v1489, %v1527
    %s1536 = sld [smem:[#allocation8 + $0xd]]
    %v1537 = vstv %s1536
    %v1538 = vmul.f32 %v923, %v1537
    %v1539 = vmul.f32 %v925, %v1537
    %v1540 = vmul.f32 %v927, %v1537
    %v1541 = vmul.f32 %v929, %v1537
    %v1542 = vmul.f32 %v931, %v1537
    %v1543 = vmul.f32 %v933, %v1537
    %v1544 = vmul.f32 %v935, %v1537
    %v1545 = vmul.f32 %v937, %v1537
    %s1546 = sld [smem:[#allocation7 + $0x8d]]
    %v1547 = vstv %s1546
    %v1548 = vadd.f32 %v1538, %v1547
    %v1549 = vadd.f32 %v1539, %v1547
    %v1550 = vadd.f32 %v1540, %v1547
    %v1551 = vadd.f32 %v1541, %v1547
    %v1552 = vadd.f32 %v1542, %v1547
    %v1553 = vadd.f32 %v1543, %v1547
    %v1554 = vadd.f32 %v1544, %v1547
    %v1555 = vadd.f32 %v1545, %v1547
    %v1556 = vmax.f32 %v1548, 0.0
    %v1557 = vmax.f32 %v1549, 0.0
    %v1558 = vmax.f32 %v1550, 0.0
    %v1559 = vmax.f32 %v1551, 0.0
    %v1560 = vmax.f32 %v1552, 0.0
    %v1561 = vmax.f32 %v1553, 0.0
    %v1562 = vmax.f32 %v1554, 0.0
    %v1563 = vmax.f32 %v1555, 0.0
    %s1564 = sld [smem:[#allocation10 + $0xd]]
    %v1565 = vstv %s1564
    %v1566 = vmul.f32 %v1556, %v1565
    %v1567 = vmul.f32 %v1557, %v1565
    %v1568 = vmul.f32 %v1558, %v1565
    %v1569 = vmul.f32 %v1559, %v1565
    %v1570 = vmul.f32 %v1560, %v1565
    %v1571 = vmul.f32 %v1561, %v1565
    %v1572 = vmul.f32 %v1562, %v1565
    %v1573 = vmul.f32 %v1563, %v1565
    %v1574 = vadd.f32 %v1528, %v1566
    %v1575 = vadd.f32 %v1529, %v1567
    %v1576 = vadd.f32 %v1530, %v1568
    %v1577 = vadd.f32 %v1531, %v1569
    %v1578 = vadd.f32 %v1532, %v1570
    %v1579 = vadd.f32 %v1533, %v1571
    %v1580 = vadd.f32 %v1534, %v1572
    %v1581 = vadd.f32 %v1535, %v1573
    %s1582 = sld [smem:[#allocation8 + $0xe]]
    %v1583 = vstv %s1582
    %v1584 = vmul.f32 %v923, %v1583
    %v1585 = vmul.f32 %v925, %v1583
    %v1586 = vmul.f32 %v927, %v1583
    %v1587 = vmul.f32 %v929, %v1583
    %v1588 = vmul.f32 %v931, %v1583
    %v1589 = vmul.f32 %v933, %v1583
    %v1590 = vmul.f32 %v935, %v1583
    %v1591 = vmul.f32 %v937, %v1583
    %s1592 = sld [smem:[#allocation7 + $0x8e]]
    %v1593 = vstv %s1592
    %v1594 = vadd.f32 %v1584, %v1593
    %v1595 = vadd.f32 %v1585, %v1593
    %v1596 = vadd.f32 %v1586, %v1593
    %v1597 = vadd.f32 %v1587, %v1593
    %v1598 = vadd.f32 %v1588, %v1593
    %v1599 = vadd.f32 %v1589, %v1593
    %v1600 = vadd.f32 %v1590, %v1593
    %v1601 = vadd.f32 %v1591, %v1593
    %v1602 = vmax.f32 %v1594, 0.0
    %v1603 = vmax.f32 %v1595, 0.0
    %v1604 = vmax.f32 %v1596, 0.0
    %v1605 = vmax.f32 %v1597, 0.0
    %v1606 = vmax.f32 %v1598, 0.0
    %v1607 = vmax.f32 %v1599, 0.0
    %v1608 = vmax.f32 %v1600, 0.0
    %v1609 = vmax.f32 %v1601, 0.0
    %s1610 = sld [smem:[#allocation10 + $0xe]]
    %v1611 = vstv %s1610
    %v1612 = vmul.f32 %v1602, %v1611
    %v1613 = vmul.f32 %v1603, %v1611
    %v1614 = vmul.f32 %v1604, %v1611
    %v1615 = vmul.f32 %v1605, %v1611
    %v1616 = vmul.f32 %v1606, %v1611
    %v1617 = vmul.f32 %v1607, %v1611
    %v1618 = vmul.f32 %v1608, %v1611
    %v1619 = vmul.f32 %v1609, %v1611
    %v1620 = vadd.f32 %v1574, %v1612
    %v1621 = vadd.f32 %v1575, %v1613
    %v1622 = vadd.f32 %v1576, %v1614
    %v1623 = vadd.f32 %v1577, %v1615
    %v1624 = vadd.f32 %v1578, %v1616
    %v1625 = vadd.f32 %v1579, %v1617
    %v1626 = vadd.f32 %v1580, %v1618
    %v1627 = vadd.f32 %v1581, %v1619
    %s1628 = sld [smem:[#allocation8 + $0xf]]
    %v1629 = vstv %s1628
    %v1630 = vmul.f32 %v923, %v1629
    %v1631 = vmul.f32 %v925, %v1629
    %v1632 = vmul.f32 %v927, %v1629
    %v1633 = vmul.f32 %v929, %v1629
    %v1634 = vmul.f32 %v931, %v1629
    %v1635 = vmul.f32 %v933, %v1629
    %v1636 = vmul.f32 %v935, %v1629
    %v1637 = vmul.f32 %v937, %v1629
    %s1638 = sld [smem:[#allocation7 + $0x8f]]
    %v1639 = vstv %s1638
    %v1640 = vadd.f32 %v1630, %v1639
    %v1641 = vadd.f32 %v1631, %v1639
    %v1642 = vadd.f32 %v1632, %v1639
    %v1643 = vadd.f32 %v1633, %v1639
    %v1644 = vadd.f32 %v1634, %v1639
    %v1645 = vadd.f32 %v1635, %v1639
    %v1646 = vadd.f32 %v1636, %v1639
    %v1647 = vadd.f32 %v1637, %v1639
    %v1648 = vmax.f32 %v1640, 0.0
    %v1649 = vmax.f32 %v1641, 0.0
    %v1650 = vmax.f32 %v1642, 0.0
    %v1651 = vmax.f32 %v1643, 0.0
    %v1652 = vmax.f32 %v1644, 0.0
    %v1653 = vmax.f32 %v1645, 0.0
    %v1654 = vmax.f32 %v1646, 0.0
    %v1655 = vmax.f32 %v1647, 0.0
    %s1656 = sld [smem:[#allocation10 + $0xf]]
    %v1657 = vstv %s1656
    %v1658 = vmul.f32 %v1648, %v1657
    %v1659 = vmul.f32 %v1649, %v1657
    %v1660 = vmul.f32 %v1650, %v1657
    %v1661 = vmul.f32 %v1651, %v1657
    %v1662 = vmul.f32 %v1652, %v1657
    %v1663 = vmul.f32 %v1653, %v1657
    %v1664 = vmul.f32 %v1654, %v1657
    %v1665 = vmul.f32 %v1655, %v1657
    %v1666 = vadd.f32 %v1620, %v1658
    %v1667 = vadd.f32 %v1621, %v1659
    %v1668 = vadd.f32 %v1622, %v1660
    %v1669 = vadd.f32 %v1623, %v1661
    %v1670 = vadd.f32 %v1624, %v1662
    %v1671 = vadd.f32 %v1625, %v1663
    %v1672 = vadd.f32 %v1626, %v1664
    %v1673 = vadd.f32 %v1627, %v1665
    %s1674 = sld [smem:[#allocation2]]
    %v1675 = vstv %s1674
    %v1676 = vadd.f32 %v1666, %v1675
    %v1677 = vadd.f32 %v1667, %v1675
    %v1678 = vadd.f32 %v1668, %v1675
    %v1679 = vadd.f32 %v1669, %v1675
    %v1680 = vadd.f32 %v1670, %v1675
    %v1681 = vadd.f32 %v1671, %v1675
    %v1682 = vadd.f32 %v1672, %v1675
    %v1683 = vadd.f32 %v1673, %v1675
    %v1684 = vsub.f32 0.0, %v1676
    %v1685 = vsub.f32 0.0, %v1677
    %v1686 = vsub.f32 0.0, %v1678
    %v1687 = vsub.f32 0.0, %v1679
    %v1688 = vsub.f32 0.0, %v1680
    %v1689 = vsub.f32 0.0, %v1681
    %v1690 = vsub.f32 0.0, %v1682
    %v1691 = vsub.f32 0.0, %v1683
    %v1692 = vmul.f32 %v1684, 1.442695
    %v1693 = vpow.pop %v1692
    %v1694 = vmul.f32 %v1685, 1.442695
    %v1695 = vpow.pop %v1694
    %v1696 = vmul.f32 %v1686, 1.442695
    %v1697 = vpow.pop %v1696
    %v1698 = vmul.f32 %v1687, 1.442695
    %v1699 = vpow.pop %v1698
    %v1700 = vmul.f32 %v1688, 1.442695
    %v1701 = vpow.pop %v1700
    %v1702 = vmul.f32 %v1689, 1.442695
    %v1703 = vpow.pop %v1702
    %v1704 = vmul.f32 %v1690, 1.442695
    %v1705 = vpow.pop %v1704
    %v1706 = vmul.f32 %v1691, 1.442695
    %v1707 = vpow.pop %v1706
    %v1708 = vadd.f32 %v1693, 1.0
    %v1709 = vadd.f32 %v1695, 1.0
    %v1710 = vadd.f32 %v1697, 1.0
    %v1711 = vadd.f32 %v1699, 1.0
    %v1712 = vadd.f32 %v1701, 1.0
    %v1713 = vadd.f32 %v1703, 1.0
    %v1714 = vadd.f32 %v1705, 1.0
    %v1715 = vadd.f32 %v1707, 1.0
    %v1716 = vrcp.pop %v1708
    %v1717 = vrcp.pop %v1709
    %v1718 = vrcp.pop %v1710
    %v1719 = vrcp.pop %v1711
    %v1720 = vrcp.pop %v1712
    %v1721 = vrcp.pop %v1713
    %v1722 = vrcp.pop %v1714
    %v1723 = vrcp.pop %v1715
    %s1724 = scalar_lea.vmem [#allocation13], 64
    %1725 = vst [vmem:[%s1724] sm:$0xff] %v1716
    %1726 = vst [vmem:[%s1724 + $0x8] sm:$0xff] %v1717
    %1727 = vst [vmem:[%s1724 + $0x10] sm:$0xff] %v1718
    %1728 = vst [vmem:[%s1724 + $0x18] sm:$0xff] %v1719
    %1729 = vst [vmem:[%s1724 + $0x20] sm:$0xff] %v1720
    %1730 = vst [vmem:[%s1724 + $0x28] sm:$0xff] %v1721
    %1731 = vst [vmem:[%s1724 + $0x30] sm:$0xff] %v1722
    %1732 = vst [vmem:[%s1724 + $0x38] sm:$0xff] %v1723
    %v1733 = vld [vmem:[#allocation3] sm:$0xff]
    %v1734 = vld [vmem:[#allocation3 + $0x8] sm:$0xff]
    %v1735 = vld [vmem:[#allocation3 + $0x10] sm:$0xff]
    %v1736 = vld [vmem:[#allocation3 + $0x18] sm:$0xff]
    %v1737 = vld [vmem:[#allocation3 + $0x20] sm:$0xff]
    %v1738 = vld [vmem:[#allocation3 + $0x28] sm:$0xff]
    %v1739 = vld [vmem:[#allocation3 + $0x30] sm:$0xff]
    %v1740 = vld [vmem:[#allocation3 + $0x38] sm:$0xff]
    %v1741 = vld [vmem:[#allocation13] sm:$0xff]
    %v1742 = vld [vmem:[#allocation13 + $0x8] sm:$0xff]
    %v1743 = vld [vmem:[#allocation13 + $0x10] sm:$0xff]
    %v1744 = vld [vmem:[#allocation13 + $0x18] sm:$0xff]
    %v1745 = vld [vmem:[#allocation13 + $0x20] sm:$0xff]
    %v1746 = vld [vmem:[#allocation13 + $0x28] sm:$0xff]
    %v1747 = vld [vmem:[#allocation13 + $0x30] sm:$0xff]
    %v1748 = vld [vmem:[#allocation13 + $0x38] sm:$0xff]
    %v1749 = vmul.f32 %v1733, %v1741
    %v1750 = vmul.f32 %v1734, %v1742
    %v1751 = vmul.f32 %v1735, %v1743
    %v1752 = vmul.f32 %v1736, %v1744
    %v1753 = vmul.f32 %v1737, %v1745
    %v1754 = vmul.f32 %v1738, %v1746
    %v1755 = vmul.f32 %v1739, %v1747
    %v1756 = vmul.f32 %v1740, %v1748
    %v1757 = vadd.f32 %v1749, 1e-10
    %v1758 = vadd.f32 %v1750, 1e-10
    %v1759 = vadd.f32 %v1751, 1e-10
    %v1760 = vadd.f32 %v1752, 1e-10
    %v1761 = vadd.f32 %v1753, 1e-10
    %v1762 = vadd.f32 %v1754, 1e-10
    %v1763 = vadd.f32 %v1755, 1e-10
    %v1764 = vadd.f32 %v1756, 1e-10
    %v1765 = vlog2.pop %v1757
    %v1766 = vmul.f32 %v1765, 0.6931472
    %v1767 = vlog2.pop %v1758
    %v1768 = vmul.f32 %v1767, 0.6931472
    %v1769 = vlog2.pop %v1759
    %v1770 = vmul.f32 %v1769, 0.6931472
    %v1771 = vlog2.pop %v1760
    %v1772 = vmul.f32 %v1771, 0.6931472
    %v1773 = vlog2.pop %v1761
    %v1774 = vmul.f32 %v1773, 0.6931472
    %v1775 = vlog2.pop %v1762
    %v1776 = vmul.f32 %v1775, 0.6931472
    %v1777 = vlog2.pop %v1763
    %v1778 = vmul.f32 %v1777, 0.6931472
    %v1779 = vlog2.pop %v1764
    %v1780 = vmul.f32 %v1779, 0.6931472
    %v1781 = vld [vmem:[#allocation11] sm:$0xff]
    %v1782 = vld [vmem:[#allocation11 + $0x8] sm:$0xff]
    %v1783 = vld [vmem:[#allocation11 + $0x10] sm:$0xff]
    %v1784 = vld [vmem:[#allocation11 + $0x18] sm:$0xff]
    %v1785 = vld [vmem:[#allocation11 + $0x20] sm:$0xff]
    %v1786 = vld [vmem:[#allocation11 + $0x28] sm:$0xff]
    %v1787 = vld [vmem:[#allocation11 + $0x30] sm:$0xff]
    %v1788 = vld [vmem:[#allocation11 + $0x38] sm:$0xff]
    %v1789 = vmul.f32 %v1766, %v1781
    %v1790 = vmul.f32 %v1768, %v1782
    %v1791 = vmul.f32 %v1770, %v1783
    %v1792 = vmul.f32 %v1772, %v1784
    %v1793 = vmul.f32 %v1774, %v1785
    %v1794 = vmul.f32 %v1776, %v1786
    %v1795 = vmul.f32 %v1778, %v1787
    %v1796 = vmul.f32 %v1780, %v1788
    %1797 = vadd.xlane.f32.xlu0 %v1789
    %v1798 = vpop.xlane.xlu0 %1797
    %1799 = vadd.xlane.f32.xlu0 %v1790
    %v1800 = vpop.xlane.xlu0 %1799
    %1801 = vadd.xlane.f32.xlu0 %v1791
    %v1802 = vpop.xlane.xlu0 %1801
    %1803 = vadd.xlane.f32.xlu0 %v1792
    %v1804 = vpop.xlane.xlu0 %1803
    %1805 = vadd.xlane.f32.xlu0 %v1793
    %v1806 = vpop.xlane.xlu0 %1805
    %1807 = vadd.xlane.f32.xlu0 %v1794
    %v1808 = vpop.xlane.xlu0 %1807
    %1809 = vadd.xlane.f32.xlu0 %v1795
    %v1810 = vpop.xlane.xlu0 %1809
    %1811 = vadd.xlane.f32.xlu0 %v1796
    %v1812 = vpop.xlane.xlu0 %1811
    %v1813 = vadd.f32 %v1798, %v1800
    %v1814 = vadd.f32 %v1813, %v1802
    %v1815 = vadd.f32 %v1814, %v1804
    %v1816 = vadd.f32 %v1815, %v1806
    %v1817 = vadd.f32 %v1816, %v1808
    %v1818 = vadd.f32 %v1817, %v1810
    %v1819 = vadd.f32 %v1818, %v1812
    %v1820 = vrot.slane %v1819, 4
    %v1821 = vadd.f32 %v1819, %v1820
    %v1822 = vrot.slane %v1821, 2
    %v1823 = vadd.f32 %v1821, %v1822
    %v1824 = vrot.slane %v1823, 1
    %v1825 = vadd.f32 %v1823, %v1824
    %s1826 = scalar_lea.vmem [#allocation11], 64
    %v1827 = vld [vmem:[%s1826] sm:$0xff]
    %v1828 = vld [vmem:[%s1826 + $0x8] sm:$0xff]
    %v1829 = vld [vmem:[%s1826 + $0x10] sm:$0xff]
    %v1830 = vld [vmem:[%s1826 + $0x18] sm:$0xff]
    %v1831 = vld [vmem:[%s1826 + $0x20] sm:$0xff]
    %v1832 = vld [vmem:[%s1826 + $0x28] sm:$0xff]
    %v1833 = vld [vmem:[%s1826 + $0x30] sm:$0xff]
    %v1834 = vld [vmem:[%s1826 + $0x38] sm:$0xff]
    %v1835 = vmul.f32 %v1766, %v1827
    %v1836 = vmul.f32 %v1768, %v1828
    %v1837 = vmul.f32 %v1770, %v1829
    %v1838 = vmul.f32 %v1772, %v1830
    %v1839 = vmul.f32 %v1774, %v1831
    %v1840 = vmul.f32 %v1776, %v1832
    %v1841 = vmul.f32 %v1778, %v1833
    %v1842 = vmul.f32 %v1780, %v1834
    %1843 = vadd.xlane.f32.xlu0 %v1835
    %v1844 = vpop.xlane.xlu0 %1843
    %1845 = vadd.xlane.f32.xlu0 %v1836
    %v1846 = vpop.xlane.xlu0 %1845
    %1847 = vadd.xlane.f32.xlu0 %v1837
    %v1848 = vpop.xlane.xlu0 %1847
    %1849 = vadd.xlane.f32.xlu0 %v1838
    %v1850 = vpop.xlane.xlu0 %1849
    %1851 = vadd.xlane.f32.xlu0 %v1839
    %v1852 = vpop.xlane.xlu0 %1851
    %1853 = vadd.xlane.f32.xlu0 %v1840
    %v1854 = vpop.xlane.xlu0 %1853
    %1855 = vadd.xlane.f32.xlu0 %v1841
    %v1856 = vpop.xlane.xlu0 %1855
    %1857 = vadd.xlane.f32.xlu0 %v1842
    %v1858 = vpop.xlane.xlu0 %1857
    %v1859 = vadd.f32 %v1844, %v1846
    %v1860 = vadd.f32 %v1859, %v1848
    %v1861 = vadd.f32 %v1860, %v1850
    %v1862 = vadd.f32 %v1861, %v1852
    %v1863 = vadd.f32 %v1862, %v1854
    %v1864 = vadd.f32 %v1863, %v1856
    %v1865 = vadd.f32 %v1864, %v1858
    %v1866 = vrot.slane %v1865, 4
    %v1867 = vadd.f32 %v1865, %v1866
    %v1868 = vrot.slane %v1867, 2
    %v1869 = vadd.f32 %v1867, %v1868
    %v1870 = vrot.slane %v1869, 1
    %v1871 = vadd.f32 %v1869, %v1870
    %s1872 = scalar_lea.vmem [#allocation11], 128
    %v1873 = vld [vmem:[%s1872] sm:$0xff]
    %v1874 = vld [vmem:[%s1872 + $0x8] sm:$0xff]
    %v1875 = vld [vmem:[%s1872 + $0x10] sm:$0xff]
    %v1876 = vld [vmem:[%s1872 + $0x18] sm:$0xff]
    %v1877 = vld [vmem:[%s1872 + $0x20] sm:$0xff]
    %v1878 = vld [vmem:[%s1872 + $0x28] sm:$0xff]
    %v1879 = vld [vmem:[%s1872 + $0x30] sm:$0xff]
    %v1880 = vld [vmem:[%s1872 + $0x38] sm:$0xff]
    %v1881 = vmul.f32 %v1766, %v1873
    %v1882 = vmul.f32 %v1768, %v1874
    %v1883 = vmul.f32 %v1770, %v1875
    %v1884 = vmul.f32 %v1772, %v1876
    %v1885 = vmul.f32 %v1774, %v1877
    %v1886 = vmul.f32 %v1776, %v1878
    %v1887 = vmul.f32 %v1778, %v1879
    %v1888 = vmul.f32 %v1780, %v1880
    %1889 = vadd.xlane.f32.xlu0 %v1881
    %v1890 = vpop.xlane.xlu0 %1889
    %1891 = vadd.xlane.f32.xlu0 %v1882
    %v1892 = vpop.xlane.xlu0 %1891
    %1893 = vadd.xlane.f32.xlu0 %v1883
    %v1894 = vpop.xlane.xlu0 %1893
    %1895 = vadd.xlane.f32.xlu0 %v1884
    %v1896 = vpop.xlane.xlu0 %1895
    %1897 = vadd.xlane.f32.xlu0 %v1885
    %v1898 = vpop.xlane.xlu0 %1897
    %1899 = vadd.xlane.f32.xlu0 %v1886
    %v1900 = vpop.xlane.xlu0 %1899
    %1901 = vadd.xlane.f32.xlu0 %v1887
    %v1902 = vpop.xlane.xlu0 %1901
    %1903 = vadd.xlane.f32.xlu0 %v1888
    %v1904 = vpop.xlane.xlu0 %1903
    %v1905 = vadd.f32 %v1890, %v1892
    %v1906 = vadd.f32 %v1905, %v1894
    %v1907 = vadd.f32 %v1906, %v1896
    %v1908 = vadd.f32 %v1907, %v1898
    %v1909 = vadd.f32 %v1908, %v1900
    %v1910 = vadd.f32 %v1909, %v1902
    %v1911 = vadd.f32 %v1910, %v1904
    %v1912 = vrot.slane %v1911, 4
    %v1913 = vadd.f32 %v1911, %v1912
    %v1914 = vrot.slane %v1913, 2
    %v1915 = vadd.f32 %v1913, %v1914
    %v1916 = vrot.slane %v1915, 1
    %v1917 = vadd.f32 %v1915, %v1916
    %s1918 = scalar_lea.vmem [#allocation11], 192
    %v1919 = vld [vmem:[%s1918] sm:$0xff]
    %v1920 = vld [vmem:[%s1918 + $0x8] sm:$0xff]
    %v1921 = vld [vmem:[%s1918 + $0x10] sm:$0xff]
    %v1922 = vld [vmem:[%s1918 + $0x18] sm:$0xff]
    %v1923 = vld [vmem:[%s1918 + $0x20] sm:$0xff]
    %v1924 = vld [vmem:[%s1918 + $0x28] sm:$0xff]
    %v1925 = vld [vmem:[%s1918 + $0x30] sm:$0xff]
    %v1926 = vld [vmem:[%s1918 + $0x38] sm:$0xff]
    %v1927 = vmul.f32 %v1766, %v1919
    %v1928 = vmul.f32 %v1768, %v1920
    %v1929 = vmul.f32 %v1770, %v1921
    %v1930 = vmul.f32 %v1772, %v1922
    %v1931 = vmul.f32 %v1774, %v1923
    %v1932 = vmul.f32 %v1776, %v1924
    %v1933 = vmul.f32 %v1778, %v1925
    %v1934 = vmul.f32 %v1780, %v1926
    %1935 = vadd.xlane.f32.xlu0 %v1927
    %v1936 = vpop.xlane.xlu0 %1935
    %1937 = vadd.xlane.f32.xlu0 %v1928
    %v1938 = vpop.xlane.xlu0 %1937
    %1939 = vadd.xlane.f32.xlu0 %v1929
    %v1940 = vpop.xlane.xlu0 %1939
    %1941 = vadd.xlane.f32.xlu0 %v1930
    %v1942 = vpop.xlane.xlu0 %1941
    %1943 = vadd.xlane.f32.xlu0 %v1931
    %v1944 = vpop.xlane.xlu0 %1943
    %1945 = vadd.xlane.f32.xlu0 %v1932
    %v1946 = vpop.xlane.xlu0 %1945
    %1947 = vadd.xlane.f32.xlu0 %v1933
    %v1948 = vpop.xlane.xlu0 %1947
    %1949 = vadd.xlane.f32.xlu0 %v1934
    %v1950 = vpop.xlane.xlu0 %1949
    %v1951 = vadd.f32 %v1936, %v1938
    %v1952 = vadd.f32 %v1951, %v1940
    %v1953 = vadd.f32 %v1952, %v1942
    %v1954 = vadd.f32 %v1953, %v1944
    %v1955 = vadd.f32 %v1954, %v1946
    %v1956 = vadd.f32 %v1955, %v1948
    %v1957 = vadd.f32 %v1956, %v1950
    %v1958 = vrot.slane %v1957, 4
    %v1959 = vadd.f32 %v1957, %v1958
    %v1960 = vrot.slane %v1959, 2
    %v1961 = vadd.f32 %v1959, %v1960
    %v1962 = vrot.slane %v1961, 1
    %v1963 = vadd.f32 %v1961, %v1962
    %s1964 = scalar_lea.vmem [#allocation11], 256
    %v1965 = vld [vmem:[%s1964] sm:$0xff]
    %v1966 = vld [vmem:[%s1964 + $0x8] sm:$0xff]
    %v1967 = vld [vmem:[%s1964 + $0x10] sm:$0xff]
    %v1968 = vld [vmem:[%s1964 + $0x18] sm:$0xff]
    %v1969 = vld [vmem:[%s1964 + $0x20] sm:$0xff]
    %v1970 = vld [vmem:[%s1964 + $0x28] sm:$0xff]
    %v1971 = vld [vmem:[%s1964 + $0x30] sm:$0xff]
    %v1972 = vld [vmem:[%s1964 + $0x38] sm:$0xff]
    %v1973 = vmul.f32 %v1766, %v1965
    %v1974 = vmul.f32 %v1768, %v1966
    %v1975 = vmul.f32 %v1770, %v1967
    %v1976 = vmul.f32 %v1772, %v1968
    %v1977 = vmul.f32 %v1774, %v1969
    %v1978 = vmul.f32 %v1776, %v1970
    %v1979 = vmul.f32 %v1778, %v1971
    %v1980 = vmul.f32 %v1780, %v1972
    %1981 = vadd.xlane.f32.xlu0 %v1973
    %v1982 = vpop.xlane.xlu0 %1981
    %1983 = vadd.xlane.f32.xlu0 %v1974
    %v1984 = vpop.xlane.xlu0 %1983
    %1985 = vadd.xlane.f32.xlu0 %v1975
    %v1986 = vpop.xlane.xlu0 %1985
    %1987 = vadd.xlane.f32.xlu0 %v1976
    %v1988 = vpop.xlane.xlu0 %1987
    %1989 = vadd.xlane.f32.xlu0 %v1977
    %v1990 = vpop.xlane.xlu0 %1989
    %1991 = vadd.xlane.f32.xlu0 %v1978
    %v1992 = vpop.xlane.xlu0 %1991
    %1993 = vadd.xlane.f32.xlu0 %v1979
    %v1994 = vpop.xlane.xlu0 %1993
    %1995 = vadd.xlane.f32.xlu0 %v1980
    %v1996 = vpop.xlane.xlu0 %1995
    %v1997 = vadd.f32 %v1982, %v1984
    %v1998 = vadd.f32 %v1997, %v1986
    %v1999 = vadd.f32 %v1998, %v1988
    %v2000 = vadd.f32 %v1999, %v1990
    %v2001 = vadd.f32 %v2000, %v1992
    %v2002 = vadd.f32 %v2001, %v1994
    %v2003 = vadd.f32 %v2002, %v1996
    %v2004 = vrot.slane %v2003, 4
    %v2005 = vadd.f32 %v2003, %v2004
    %v2006 = vrot.slane %v2005, 2
    %v2007 = vadd.f32 %v2005, %v2006
    %v2008 = vrot.slane %v2007, 1
    %v2009 = vadd.f32 %v2007, %v2008
    %s2010 = scalar_lea.vmem [#allocation11], 320
    %v2011 = vld [vmem:[%s2010] sm:$0xff]
    %v2012 = vld [vmem:[%s2010 + $0x8] sm:$0xff]
    %v2013 = vld [vmem:[%s2010 + $0x10] sm:$0xff]
    %v2014 = vld [vmem:[%s2010 + $0x18] sm:$0xff]
    %v2015 = vld [vmem:[%s2010 + $0x20] sm:$0xff]
    %v2016 = vld [vmem:[%s2010 + $0x28] sm:$0xff]
    %v2017 = vld [vmem:[%s2010 + $0x30] sm:$0xff]
    %v2018 = vld [vmem:[%s2010 + $0x38] sm:$0xff]
    %v2019 = vmul.f32 %v1766, %v2011
    %v2020 = vmul.f32 %v1768, %v2012
    %v2021 = vmul.f32 %v1770, %v2013
    %v2022 = vmul.f32 %v1772, %v2014
    %v2023 = vmul.f32 %v1774, %v2015
    %v2024 = vmul.f32 %v1776, %v2016
    %v2025 = vmul.f32 %v1778, %v2017
    %v2026 = vmul.f32 %v1780, %v2018
    %2027 = vadd.xlane.f32.xlu0 %v2019
    %v2028 = vpop.xlane.xlu0 %2027
    %2029 = vadd.xlane.f32.xlu0 %v2020
    %v2030 = vpop.xlane.xlu0 %2029
    %2031 = vadd.xlane.f32.xlu0 %v2021
    %v2032 = vpop.xlane.xlu0 %2031
    %2033 = vadd.xlane.f32.xlu0 %v2022
    %v2034 = vpop.xlane.xlu0 %2033
    %2035 = vadd.xlane.f32.xlu0 %v2023
    %v2036 = vpop.xlane.xlu0 %2035
    %2037 = vadd.xlane.f32.xlu0 %v2024
    %v2038 = vpop.xlane.xlu0 %2037
    %2039 = vadd.xlane.f32.xlu0 %v2025
    %v2040 = vpop.xlane.xlu0 %2039
    %2041 = vadd.xlane.f32.xlu0 %v2026
    %v2042 = vpop.xlane.xlu0 %2041
    %v2043 = vadd.f32 %v2028, %v2030
    %v2044 = vadd.f32 %v2043, %v2032
    %v2045 = vadd.f32 %v2044, %v2034
    %v2046 = vadd.f32 %v2045, %v2036
    %v2047 = vadd.f32 %v2046, %v2038
    %v2048 = vadd.f32 %v2047, %v2040
    %v2049 = vadd.f32 %v2048, %v2042
    %v2050 = vrot.slane %v2049, 4
    %v2051 = vadd.f32 %v2049, %v2050
    %v2052 = vrot.slane %v2051, 2
    %v2053 = vadd.f32 %v2051, %v2052
    %v2054 = vrot.slane %v2053, 1
    %v2055 = vadd.f32 %v2053, %v2054
    %s2056 = scalar_lea.vmem [#allocation11], 384
    %v2057 = vld [vmem:[%s2056] sm:$0xff]
    %v2058 = vld [vmem:[%s2056 + $0x8] sm:$0xff]
    %v2059 = vld [vmem:[%s2056 + $0x10] sm:$0xff]
    %v2060 = vld [vmem:[%s2056 + $0x18] sm:$0xff]
    %v2061 = vld [vmem:[%s2056 + $0x20] sm:$0xff]
    %v2062 = vld [vmem:[%s2056 + $0x28] sm:$0xff]
    %v2063 = vld [vmem:[%s2056 + $0x30] sm:$0xff]
    %v2064 = vld [vmem:[%s2056 + $0x38] sm:$0xff]
    %v2065 = vmul.f32 %v1766, %v2057
    %v2066 = vmul.f32 %v1768, %v2058
    %v2067 = vmul.f32 %v1770, %v2059
    %v2068 = vmul.f32 %v1772, %v2060
    %v2069 = vmul.f32 %v1774, %v2061
    %v2070 = vmul.f32 %v1776, %v2062
    %v2071 = vmul.f32 %v1778, %v2063
    %v2072 = vmul.f32 %v1780, %v2064
    %2073 = vadd.xlane.f32.xlu0 %v2065
    %v2074 = vpop.xlane.xlu0 %2073
    %2075 = vadd.xlane.f32.xlu0 %v2066
    %v2076 = vpop.xlane.xlu0 %2075
    %2077 = vadd.xlane.f32.xlu0 %v2067
    %v2078 = vpop.xlane.xlu0 %2077
    %2079 = vadd.xlane.f32.xlu0 %v2068
    %v2080 = vpop.xlane.xlu0 %2079
    %2081 = vadd.xlane.f32.xlu0 %v2069
    %v2082 = vpop.xlane.xlu0 %2081
    %2083 = vadd.xlane.f32.xlu0 %v2070
    %v2084 = vpop.xlane.xlu0 %2083
    %2085 = vadd.xlane.f32.xlu0 %v2071
    %v2086 = vpop.xlane.xlu0 %2085
    %2087 = vadd.xlane.f32.xlu0 %v2072
    %v2088 = vpop.xlane.xlu0 %2087
    %v2089 = vadd.f32 %v2074, %v2076
    %v2090 = vadd.f32 %v2089, %v2078
    %v2091 = vadd.f32 %v2090, %v2080
    %v2092 = vadd.f32 %v2091, %v2082
    %v2093 = vadd.f32 %v2092, %v2084
    %v2094 = vadd.f32 %v2093, %v2086
    %v2095 = vadd.f32 %v2094, %v2088
    %v2096 = vrot.slane %v2095, 4
    %v2097 = vadd.f32 %v2095, %v2096
    %v2098 = vrot.slane %v2097, 2
    %v2099 = vadd.f32 %v2097, %v2098
    %v2100 = vrot.slane %v2099, 1
    %v2101 = vadd.f32 %v2099, %v2100
    %s2102 = scalar_lea.vmem [#allocation11], 448
    %v2103 = vld [vmem:[%s2102] sm:$0xff]
    %v2104 = vld [vmem:[%s2102 + $0x8] sm:$0xff]
    %v2105 = vld [vmem:[%s2102 + $0x10] sm:$0xff]
    %v2106 = vld [vmem:[%s2102 + $0x18] sm:$0xff]
    %v2107 = vld [vmem:[%s2102 + $0x20] sm:$0xff]
    %v2108 = vld [vmem:[%s2102 + $0x28] sm:$0xff]
    %v2109 = vld [vmem:[%s2102 + $0x30] sm:$0xff]
    %v2110 = vld [vmem:[%s2102 + $0x38] sm:$0xff]
    %v2111 = vmul.f32 %v1766, %v2103
    %v2112 = vmul.f32 %v1768, %v2104
    %v2113 = vmul.f32 %v1770, %v2105
    %v2114 = vmul.f32 %v1772, %v2106
    %v2115 = vmul.f32 %v1774, %v2107
    %v2116 = vmul.f32 %v1776, %v2108
    %v2117 = vmul.f32 %v1778, %v2109
    %v2118 = vmul.f32 %v1780, %v2110
    %2119 = vadd.xlane.f32.xlu0 %v2111
    %v2120 = vpop.xlane.xlu0 %2119
    %2121 = vadd.xlane.f32.xlu0 %v2112
    %v2122 = vpop.xlane.xlu0 %2121
    %2123 = vadd.xlane.f32.xlu0 %v2113
    %v2124 = vpop.xlane.xlu0 %2123
    %2125 = vadd.xlane.f32.xlu0 %v2114
    %v2126 = vpop.xlane.xlu0 %2125
    %2127 = vadd.xlane.f32.xlu0 %v2115
    %v2128 = vpop.xlane.xlu0 %2127
    %2129 = vadd.xlane.f32.xlu0 %v2116
    %v2130 = vpop.xlane.xlu0 %2129
    %2131 = vadd.xlane.f32.xlu0 %v2117
    %v2132 = vpop.xlane.xlu0 %2131
    %2133 = vadd.xlane.f32.xlu0 %v2118
    %v2134 = vpop.xlane.xlu0 %2133
    %v2135 = vadd.f32 %v2120, %v2122
    %v2136 = vadd.f32 %v2135, %v2124
    %v2137 = vadd.f32 %v2136, %v2126
    %v2138 = vadd.f32 %v2137, %v2128
    %v2139 = vadd.f32 %v2138, %v2130
    %v2140 = vadd.f32 %v2139, %v2132
    %v2141 = vadd.f32 %v2140, %v2134
    %v2142 = vrot.slane %v2141, 4
    %v2143 = vadd.f32 %v2141, %v2142
    %v2144 = vrot.slane %v2143, 2
    %v2145 = vadd.f32 %v2143, %v2144
    %v2146 = vrot.slane %v2145, 1
    %v2147 = vadd.f32 %v2145, %v2146
    %vm2148 = vcmask 7168
    %v2149 = vsel %vm2148, %v1825, %v1871
    %vm2150 = vcmask 15360
    %v2151 = vsel %vm2150, %v2149, %v1917
    %vm2152 = vcmask 23552
    %v2153 = vsel %vm2152, %v2151, %v1963
    %vm2154 = vcmask 31744
    %v2155 = vsel %vm2154, %v2153, %v2009
    %vm2156 = vcmask 39936
    %v2157 = vsel %vm2156, %v2155, %v2055
    %vm2158 = vcmask 48128
    %v2159 = vsel %vm2158, %v2157, %v2101
    %vm2160 = vcmask 56320
    %v2161 = vsel %vm2160, %v2159, %v2147
    %v2162 = vld [vmem:[%s913] sm:$0xff]
    %v2163 = vld [vmem:[%s913 + $0x8] sm:$0xff]
    %v2164 = vld [vmem:[%s913 + $0x10] sm:$0xff]
    %v2165 = vld [vmem:[%s913 + $0x18] sm:$0xff]
    %v2166 = vld [vmem:[%s913 + $0x20] sm:$0xff]
    %v2167 = vld [vmem:[%s913 + $0x28] sm:$0xff]
    %v2168 = vld [vmem:[%s913 + $0x30] sm:$0xff]
    %v2169 = vld [vmem:[%s913 + $0x38] sm:$0xff]
    %v2170 = vld [vmem:[%s1724] sm:$0xff]
    %v2171 = vld [vmem:[%s1724 + $0x8] sm:$0xff]
    %v2172 = vld [vmem:[%s1724 + $0x10] sm:$0xff]
    %v2173 = vld [vmem:[%s1724 + $0x18] sm:$0xff]
    %v2174 = vld [vmem:[%s1724 + $0x20] sm:$0xff]
    %v2175 = vld [vmem:[%s1724 + $0x28] sm:$0xff]
    %v2176 = vld [vmem:[%s1724 + $0x30] sm:$0xff]
    %v2177 = vld [vmem:[%s1724 + $0x38] sm:$0xff]
    %v2178 = vmul.f32 %v2162, %v2170
    %v2179 = vmul.f32 %v2163, %v2171
    %v2180 = vmul.f32 %v2164, %v2172
    %v2181 = vmul.f32 %v2165, %v2173
    %v2182 = vmul.f32 %v2166, %v2174
    %v2183 = vmul.f32 %v2167, %v2175
    %v2184 = vmul.f32 %v2168, %v2176
    %v2185 = vmul.f32 %v2169, %v2177
    %v2186 = vadd.f32 %v2178, 1e-10
    %v2187 = vadd.f32 %v2179, 1e-10
    %v2188 = vadd.f32 %v2180, 1e-10
    %v2189 = vadd.f32 %v2181, 1e-10
    %v2190 = vadd.f32 %v2182, 1e-10
    %v2191 = vadd.f32 %v2183, 1e-10
    %v2192 = vadd.f32 %v2184, 1e-10
    %v2193 = vadd.f32 %v2185, 1e-10
    %v2194 = vlog2.pop %v2186
    %v2195 = vmul.f32 %v2194, 0.6931472
    %v2196 = vlog2.pop %v2187
    %v2197 = vmul.f32 %v2196, 0.6931472
    %v2198 = vlog2.pop %v2188
    %v2199 = vmul.f32 %v2198, 0.6931472
    %v2200 = vlog2.pop %v2189
    %v2201 = vmul.f32 %v2200, 0.6931472
    %v2202 = vlog2.pop %v2190
    %v2203 = vmul.f32 %v2202, 0.6931472
    %v2204 = vlog2.pop %v2191
    %v2205 = vmul.f32 %v2204, 0.6931472
    %v2206 = vlog2.pop %v2192
    %v2207 = vmul.f32 %v2206, 0.6931472
    %v2208 = vlog2.pop %v2193
    %v2209 = vmul.f32 %v2208, 0.6931472
    %v2210 = vmul.f32 %v2195, %v1781
    %v2211 = vmul.f32 %v2197, %v1782
    %v2212 = vmul.f32 %v2199, %v1783
    %v2213 = vmul.f32 %v2201, %v1784
    %v2214 = vmul.f32 %v2203, %v1785
    %v2215 = vmul.f32 %v2205, %v1786
    %v2216 = vmul.f32 %v2207, %v1787
    %v2217 = vmul.f32 %v2209, %v1788
    %2218 = vadd.xlane.f32.xlu0 %v2210
    %v2219 = vpop.xlane.xlu0 %2218
    %2220 = vadd.xlane.f32.xlu0 %v2211
    %v2221 = vpop.xlane.xlu0 %2220
    %2222 = vadd.xlane.f32.xlu0 %v2212
    %v2223 = vpop.xlane.xlu0 %2222
    %2224 = vadd.xlane.f32.xlu0 %v2213
    %v2225 = vpop.xlane.xlu0 %2224
    %2226 = vadd.xlane.f32.xlu0 %v2214
    %v2227 = vpop.xlane.xlu0 %2226
    %2228 = vadd.xlane.f32.xlu0 %v2215
    %v2229 = vpop.xlane.xlu0 %2228
    %2230 = vadd.xlane.f32.xlu0 %v2216
    %v2231 = vpop.xlane.xlu0 %2230
    %2232 = vadd.xlane.f32.xlu0 %v2217
    %v2233 = vpop.xlane.xlu0 %2232
    %v2234 = vadd.f32 %v2219, %v2221
    %v2235 = vadd.f32 %v2234, %v2223
    %v2236 = vadd.f32 %v2235, %v2225
    %v2237 = vadd.f32 %v2236, %v2227
    %v2238 = vadd.f32 %v2237, %v2229
    %v2239 = vadd.f32 %v2238, %v2231
    %v2240 = vadd.f32 %v2239, %v2233
    %v2241 = vrot.slane %v2240, 4
    %v2242 = vadd.f32 %v2240, %v2241
    %v2243 = vrot.slane %v2242, 2
    %v2244 = vadd.f32 %v2242, %v2243
    %v2245 = vrot.slane %v2244, 1
    %v2246 = vadd.f32 %v2244, %v2245
    %v2247 = vmul.f32 %v2195, %v1827
    %v2248 = vmul.f32 %v2197, %v1828
    %v2249 = vmul.f32 %v2199, %v1829
    %v2250 = vmul.f32 %v2201, %v1830
    %v2251 = vmul.f32 %v2203, %v1831
    %v2252 = vmul.f32 %v2205, %v1832
    %v2253 = vmul.f32 %v2207, %v1833
    %v2254 = vmul.f32 %v2209, %v1834
    %2255 = vadd.xlane.f32.xlu0 %v2247
    %v2256 = vpop.xlane.xlu0 %2255
    %2257 = vadd.xlane.f32.xlu0 %v2248
    %v2258 = vpop.xlane.xlu0 %2257
    %2259 = vadd.xlane.f32.xlu0 %v2249
    %v2260 = vpop.xlane.xlu0 %2259
    %2261 = vadd.xlane.f32.xlu0 %v2250
    %v2262 = vpop.xlane.xlu0 %2261
    %2263 = vadd.xlane.f32.xlu0 %v2251
    %v2264 = vpop.xlane.xlu0 %2263
    %2265 = vadd.xlane.f32.xlu0 %v2252
    %v2266 = vpop.xlane.xlu0 %2265
    %2267 = vadd.xlane.f32.xlu0 %v2253
    %v2268 = vpop.xlane.xlu0 %2267
    %2269 = vadd.xlane.f32.xlu0 %v2254
    %v2270 = vpop.xlane.xlu0 %2269
    %v2271 = vadd.f32 %v2256, %v2258
    %v2272 = vadd.f32 %v2271, %v2260
    %v2273 = vadd.f32 %v2272, %v2262
    %v2274 = vadd.f32 %v2273, %v2264
    %v2275 = vadd.f32 %v2274, %v2266
    %v2276 = vadd.f32 %v2275, %v2268
    %v2277 = vadd.f32 %v2276, %v2270
    %v2278 = vrot.slane %v2277, 4
    %v2279 = vadd.f32 %v2277, %v2278
    %v2280 = vrot.slane %v2279, 2
    %v2281 = vadd.f32 %v2279, %v2280
    %v2282 = vrot.slane %v2281, 1
    %v2283 = vadd.f32 %v2281, %v2282
    %v2284 = vmul.f32 %v2195, %v1873
    %v2285 = vmul.f32 %v2197, %v1874
    %v2286 = vmul.f32 %v2199, %v1875
    %v2287 = vmul.f32 %v2201, %v1876
    %v2288 = vmul.f32 %v2203, %v1877
    %v2289 = vmul.f32 %v2205, %v1878
    %v2290 = vmul.f32 %v2207, %v1879
    %v2291 = vmul.f32 %v2209, %v1880
    %2292 = vadd.xlane.f32.xlu0 %v2284
    %v2293 = vpop.xlane.xlu0 %2292
    %2294 = vadd.xlane.f32.xlu0 %v2285
    %v2295 = vpop.xlane.xlu0 %2294
    %2296 = vadd.xlane.f32.xlu0 %v2286
    %v2297 = vpop.xlane.xlu0 %2296
    %2298 = vadd.xlane.f32.xlu0 %v2287
    %v2299 = vpop.xlane.xlu0 %2298
    %2300 = vadd.xlane.f32.xlu0 %v2288
    %v2301 = vpop.xlane.xlu0 %2300
    %2302 = vadd.xlane.f32.xlu0 %v2289
    %v2303 = vpop.xlane.xlu0 %2302
    %2304 = vadd.xlane.f32.xlu0 %v2290
    %v2305 = vpop.xlane.xlu0 %2304
    %2306 = vadd.xlane.f32.xlu0 %v2291
    %v2307 = vpop.xlane.xlu0 %2306
    %v2308 = vadd.f32 %v2293, %v2295
    %v2309 = vadd.f32 %v2308, %v2297
    %v2310 = vadd.f32 %v2309, %v2299
    %v2311 = vadd.f32 %v2310, %v2301
    %v2312 = vadd.f32 %v2311, %v2303
    %v2313 = vadd.f32 %v2312, %v2305
    %v2314 = vadd.f32 %v2313, %v2307
    %v2315 = vrot.slane %v2314, 4
    %v2316 = vadd.f32 %v2314, %v2315
    %v2317 = vrot.slane %v2316, 2
    %v2318 = vadd.f32 %v2316, %v2317
    %v2319 = vrot.slane %v2318, 1
    %v2320 = vadd.f32 %v2318, %v2319
    %v2321 = vmul.f32 %v2195, %v1919
    %v2322 = vmul.f32 %v2197, %v1920
    %v2323 = vmul.f32 %v2199, %v1921
    %v2324 = vmul.f32 %v2201, %v1922
    %v2325 = vmul.f32 %v2203, %v1923
    %v2326 = vmul.f32 %v2205, %v1924
    %v2327 = vmul.f32 %v2207, %v1925
    %v2328 = vmul.f32 %v2209, %v1926
    %2329 = vadd.xlane.f32.xlu0 %v2321
    %v2330 = vpop.xlane.xlu0 %2329
    %2331 = vadd.xlane.f32.xlu0 %v2322
    %v2332 = vpop.xlane.xlu0 %2331
    %2333 = vadd.xlane.f32.xlu0 %v2323
    %v2334 = vpop.xlane.xlu0 %2333
    %2335 = vadd.xlane.f32.xlu0 %v2324
    %v2336 = vpop.xlane.xlu0 %2335
    %2337 = vadd.xlane.f32.xlu0 %v2325
    %v2338 = vpop.xlane.xlu0 %2337
    %2339 = vadd.xlane.f32.xlu0 %v2326
    %v2340 = vpop.xlane.xlu0 %2339
    %2341 = vadd.xlane.f32.xlu0 %v2327
    %v2342 = vpop.xlane.xlu0 %2341
    %2343 = vadd.xlane.f32.xlu0 %v2328
    %v2344 = vpop.xlane.xlu0 %2343
    %v2345 = vadd.f32 %v2330, %v2332
    %v2346 = vadd.f32 %v2345, %v2334
    %v2347 = vadd.f32 %v2346, %v2336
    %v2348 = vadd.f32 %v2347, %v2338
    %v2349 = vadd.f32 %v2348, %v2340
    %v2350 = vadd.f32 %v2349, %v2342
    %v2351 = vadd.f32 %v2350, %v2344
    %v2352 = vrot.slane %v2351, 4
    %v2353 = vadd.f32 %v2351, %v2352
    %v2354 = vrot.slane %v2353, 2
    %v2355 = vadd.f32 %v2353, %v2354
    %v2356 = vrot.slane %v2355, 1
    %v2357 = vadd.f32 %v2355, %v2356
    %v2358 = vmul.f32 %v2195, %v1965
    %v2359 = vmul.f32 %v2197, %v1966
    %v2360 = vmul.f32 %v2199, %v1967
    %v2361 = vmul.f32 %v2201, %v1968
    %v2362 = vmul.f32 %v2203, %v1969
    %v2363 = vmul.f32 %v2205, %v1970
    %v2364 = vmul.f32 %v2207, %v1971
    %v2365 = vmul.f32 %v2209, %v1972
    %2366 = vadd.xlane.f32.xlu0 %v2358
    %v2367 = vpop.xlane.xlu0 %2366
    %2368 = vadd.xlane.f32.xlu0 %v2359
    %v2369 = vpop.xlane.xlu0 %2368
    %2370 = vadd.xlane.f32.xlu0 %v2360
    %v2371 = vpop.xlane.xlu0 %2370
    %2372 = vadd.xlane.f32.xlu0 %v2361
    %v2373 = vpop.xlane.xlu0 %2372
    %2374 = vadd.xlane.f32.xlu0 %v2362
    %v2375 = vpop.xlane.xlu0 %2374
    %2376 = vadd.xlane.f32.xlu0 %v2363
    %v2377 = vpop.xlane.xlu0 %2376
    %2378 = vadd.xlane.f32.xlu0 %v2364
    %v2379 = vpop.xlane.xlu0 %2378
    %2380 = vadd.xlane.f32.xlu0 %v2365
    %v2381 = vpop.xlane.xlu0 %2380
    %v2382 = vadd.f32 %v2367, %v2369
    %v2383 = vadd.f32 %v2382, %v2371
    %v2384 = vadd.f32 %v2383, %v2373
    %v2385 = vadd.f32 %v2384, %v2375
    %v2386 = vadd.f32 %v2385, %v2377
    %v2387 = vadd.f32 %v2386, %v2379
    %v2388 = vadd.f32 %v2387, %v2381
    %v2389 = vrot.slane %v2388, 4
    %v2390 = vadd.f32 %v2388, %v2389
    %v2391 = vrot.slane %v2390, 2
    %v2392 = vadd.f32 %v2390, %v2391
    %v2393 = vrot.slane %v2392, 1
    %v2394 = vadd.f32 %v2392, %v2393
    %v2395 = vmul.f32 %v2195, %v2011
    %v2396 = vmul.f32 %v2197, %v2012
    %v2397 = vmul.f32 %v2199, %v2013
    %v2398 = vmul.f32 %v2201, %v2014
    %v2399 = vmul.f32 %v2203, %v2015
    %v2400 = vmul.f32 %v2205, %v2016
    %v2401 = vmul.f32 %v2207, %v2017
    %v2402 = vmul.f32 %v2209, %v2018
    %2403 = vadd.xlane.f32.xlu0 %v2395
    %v2404 = vpop.xlane.xlu0 %2403
    %2405 = vadd.xlane.f32.xlu0 %v2396
    %v2406 = vpop.xlane.xlu0 %2405
    %2407 = vadd.xlane.f32.xlu0 %v2397
    %v2408 = vpop.xlane.xlu0 %2407
    %2409 = vadd.xlane.f32.xlu0 %v2398
    %v2410 = vpop.xlane.xlu0 %2409
    %2411 = vadd.xlane.f32.xlu0 %v2399
    %v2412 = vpop.xlane.xlu0 %2411
    %2413 = vadd.xlane.f32.xlu0 %v2400
    %v2414 = vpop.xlane.xlu0 %2413
    %2415 = vadd.xlane.f32.xlu0 %v2401
    %v2416 = vpop.xlane.xlu0 %2415
    %2417 = vadd.xlane.f32.xlu0 %v2402
    %v2418 = vpop.xlane.xlu0 %2417
    %v2419 = vadd.f32 %v2404, %v2406
    %v2420 = vadd.f32 %v2419, %v2408
    %v2421 = vadd.f32 %v2420, %v2410
    %v2422 = vadd.f32 %v2421, %v2412
    %v2423 = vadd.f32 %v2422, %v2414
    %v2424 = vadd.f32 %v2423, %v2416
    %v2425 = vadd.f32 %v2424, %v2418
    %v2426 = vrot.slane %v2425, 4
    %v2427 = vadd.f32 %v2425, %v2426
    %v2428 = vrot.slane %v2427, 2
    %v2429 = vadd.f32 %v2427, %v2428
    %v2430 = vrot.slane %v2429, 1
    %v2431 = vadd.f32 %v2429, %v2430
    %v2432 = vmul.f32 %v2195, %v2057
    %v2433 = vmul.f32 %v2197, %v2058
    %v2434 = vmul.f32 %v2199, %v2059
    %v2435 = vmul.f32 %v2201, %v2060
    %v2436 = vmul.f32 %v2203, %v2061
    %v2437 = vmul.f32 %v2205, %v2062
    %v2438 = vmul.f32 %v2207, %v2063
    %v2439 = vmul.f32 %v2209, %v2064
    %2440 = vadd.xlane.f32.xlu0 %v2432
    %v2441 = vpop.xlane.xlu0 %2440
    %2442 = vadd.xlane.f32.xlu0 %v2433
    %v2443 = vpop.xlane.xlu0 %2442
    %2444 = vadd.xlane.f32.xlu0 %v2434
    %v2445 = vpop.xlane.xlu0 %2444
    %2446 = vadd.xlane.f32.xlu0 %v2435
    %v2447 = vpop.xlane.xlu0 %2446
    %2448 = vadd.xlane.f32.xlu0 %v2436
    %v2449 = vpop.xlane.xlu0 %2448
    %2450 = vadd.xlane.f32.xlu0 %v2437
    %v2451 = vpop.xlane.xlu0 %2450
    %2452 = vadd.xlane.f32.xlu0 %v2438
    %v2453 = vpop.xlane.xlu0 %2452
    %2454 = vadd.xlane.f32.xlu0 %v2439
    %v2455 = vpop.xlane.xlu0 %2454
    %v2456 = vadd.f32 %v2441, %v2443
    %v2457 = vadd.f32 %v2456, %v2445
    %v2458 = vadd.f32 %v2457, %v2447
    %v2459 = vadd.f32 %v2458, %v2449
    %v2460 = vadd.f32 %v2459, %v2451
    %v2461 = vadd.f32 %v2460, %v2453
    %v2462 = vadd.f32 %v2461, %v2455
    %v2463 = vrot.slane %v2462, 4
    %v2464 = vadd.f32 %v2462, %v2463
    %v2465 = vrot.slane %v2464, 2
    %v2466 = vadd.f32 %v2464, %v2465
    %v2467 = vrot.slane %v2466, 1
    %v2468 = vadd.f32 %v2466, %v2467
    %v2469 = vmul.f32 %v2195, %v2103
    %v2470 = vmul.f32 %v2197, %v2104
    %v2471 = vmul.f32 %v2199, %v2105
    %v2472 = vmul.f32 %v2201, %v2106
    %v2473 = vmul.f32 %v2203, %v2107
    %v2474 = vmul.f32 %v2205, %v2108
    %v2475 = vmul.f32 %v2207, %v2109
    %v2476 = vmul.f32 %v2209, %v2110
    %2477 = vadd.xlane.f32.xlu0 %v2469
    %v2478 = vpop.xlane.xlu0 %2477
    %2479 = vadd.xlane.f32.xlu0 %v2470
    %v2480 = vpop.xlane.xlu0 %2479
    %2481 = vadd.xlane.f32.xlu0 %v2471
    %v2482 = vpop.xlane.xlu0 %2481
    %2483 = vadd.xlane.f32.xlu0 %v2472
    %v2484 = vpop.xlane.xlu0 %2483
    %2485 = vadd.xlane.f32.xlu0 %v2473
    %v2486 = vpop.xlane.xlu0 %2485
    %2487 = vadd.xlane.f32.xlu0 %v2474
    %v2488 = vpop.xlane.xlu0 %2487
    %2489 = vadd.xlane.f32.xlu0 %v2475
    %v2490 = vpop.xlane.xlu0 %2489
    %2491 = vadd.xlane.f32.xlu0 %v2476
    %v2492 = vpop.xlane.xlu0 %2491
    %v2493 = vadd.f32 %v2478, %v2480
    %v2494 = vadd.f32 %v2493, %v2482
    %v2495 = vadd.f32 %v2494, %v2484
    %v2496 = vadd.f32 %v2495, %v2486
    %v2497 = vadd.f32 %v2496, %v2488
    %v2498 = vadd.f32 %v2497, %v2490
    %v2499 = vadd.f32 %v2498, %v2492
    %v2500 = vrot.slane %v2499, 4
    %v2501 = vadd.f32 %v2499, %v2500
    %v2502 = vrot.slane %v2501, 2
    %v2503 = vadd.f32 %v2501, %v2502
    %v2504 = vrot.slane %v2503, 1
    %v2505 = vadd.f32 %v2503, %v2504
    %v2506 = vsel %vm2148, %v2246, %v2283
    %v2507 = vsel %vm2150, %v2506, %v2320
    %v2508 = vsel %vm2152, %v2507, %v2357
    %v2509 = vsel %vm2154, %v2508, %v2394
    %v2510 = vsel %vm2156, %v2509, %v2431
    %v2511 = vsel %vm2158, %v2510, %v2468
    %v2512 = vsel %vm2160, %v2511, %v2505
    %v2514 = vrot.slane %v2512, 7
    %vm2516 = vcmask 1040384
    %v2517 = vsel %vm2516, %v2161, %v2514
    %v2518 = vld [vmem:[%s6] sm:$0x1]
    %v2520 = vlaneseq
    %v2521 = vshrl.u32 %v2520, 7
    %v2522 = vsub.s32 0, %v2521
    %v2523 = vrot.slane %v2518, %v2522
    %v2525 = vadd.f32 %v2517, %v2523
    %vm2526 = vcmask 58368
    %2527 = vst.msk [vmem:[#allocation14] sm:$0x3] %vm2526, %v2525
    // Predicated region
    $region50: #{tpu_custom_call.1} parent=1 // pred_check
      _
    $region51: #{tpu_custom_call.1} parent=1 // pred_check_branch
      %2529 = sbr.rel (0) target = $region53
    $region52: #{tpu_custom_call.1} parent=1 // pred_region
      %s2531 = ssub.s32 2048, 2048
      %2532 = vsyncadd [#allocation5], %s2531
      %s2533 = sshll.u32 [#allocation13], 4
      %s2534 = int_to_ptr.vmem [resolvable:$true] %s2533
      %2539 = dma.vmem_to_hbm [thread:$0]  %s2534, 2048, %s7, [#allocation5], 128, 128, 8
    $region53: #{tpu_custom_call.1} parent=1 // pred_fallthru
      _
    // Predicated region
    $region54: #{tpu_custom_call.1} parent=1 // pred_check
      _
    $region55: #{tpu_custom_call.1} parent=1 // pred_check_branch
      %2541 = sbr.rel (0) target = $region57
    $region56: #{tpu_custom_call.1} parent=1 // pred_region
      %s2543 = ssub.s32 32, 32
      %2544 = vsyncadd [#allocation15], %s2543
      %s2546 = sshll.u32 [#allocation14], 4
      %s2547 = int_to_ptr.vmem [resolvable:$true] %s2546
      %2549 = dma.vmem_to_hbm [thread:$0]  %s2547, 32, %s8, [#allocation15]
    $region57: #{tpu_custom_call.1} parent=1 // pred_fallthru
      _
    // Predicated region
    $region58: #{tpu_custom_call.1} parent=1 // pred_check
      _
    $region59: #{tpu_custom_call.1} parent=1 // pred_check_branch
      %2551 = sbr.rel (0) target = $region61
    $region60: #{tpu_custom_call.1} parent=1 // pred_region
      %2552 = dma.done [#allocation5], 2048
    $region61: #{tpu_custom_call.1} parent=1 // pred_fallthru
      _
    // Predicated region
    $region62: #{tpu_custom_call.1} parent=1 // pred_check
      _
    $region63: #{tpu_custom_call.1} parent=1 // pred_check_branch
      %2554 = sbr.rel (0) target = $region65
    $region64: #{tpu_custom_call.1} parent=1 // pred_region
      %2555 = dma.done [#allocation15], 32
    $region65: #{tpu_custom_call.1} parent=1 // pred_fallthru
      _
    %2556 = vsyncpa [#allocation4], 1
    %2557 = vsyncpa [#allocation12], 1
    %2558 = vsyncpa [#allocation5], 1
    %2559 = vsyncpa [#allocation15], 1
    %2560 = vsyncpa [#allocation6], 1
    %2561 = vsyncpa [#allocation9], 1

</llo_original>
